<compile_context>
chip_gen: v6e
topology: v6e:2x2x1
jax: 0.10.0
libtpu: 0.0.40
codegen_flags: <defaults>
</compile_context>

<pallas_src>
import functools
import math
import numpy as np
import jax
import jax.numpy as jnp
from jax import lax
from jax.experimental import pallas as pl
from jax.experimental.pallas import tpu as pltpu

EPS = 1e-5  # GroupNorm default eps


# ----------------------------- Pallas kernel -----------------------------

def self_attention_kernel(cond_ref, x_ref, gmat_ref, wm_ref, bm_ref,
                          wqkv_ref, bqkv_ref, wout_ref, bout_ref,
                          out_ref, *, n_head):
    """Fused AdaGN + QKV proj + all-head SDPA + out-proj + residual.

    One grid step == one image: everything (norm, FiLM, QKV, attention for all
    heads, out-proj, residual) is computed in-kernel with no HBM intermediates
    and no cross-step scratch.
    """
    x = x_ref[0]                                               # (S, C) f32
    S, C = x.shape
    dh = C // n_head

    # FiLM params from cond (tiny matmul, fused in-kernel).
    film = jnp.dot(cond_ref[0], wm_ref[...],
                   preferred_element_type=jnp.float32) + bm_ref[...]
    fw = film[:, :C]                                           # (1, C)
    fb = film[:, C:]                                           # (1, C)

    # GroupNorm stats on the MXU: ones-row sum + block-diagonal group average
    # (gmat already carries the 1/(S*group_size) factor). Frees VPU/XLU slots.
    ones_row = jnp.ones((1, S), jnp.float32)
    s1 = jnp.dot(ones_row, x, preferred_element_type=jnp.float32)        # (1, C)
    s2 = jnp.dot(ones_row, x * x, preferred_element_type=jnp.float32)    # (1, C)
    mean = jnp.dot(s1, gmat_ref[...], preferred_element_type=jnp.float32)
    ex2 = jnp.dot(s2, gmat_ref[...], preferred_element_type=jnp.float32)
    var = jnp.maximum(ex2 - mean * mean, 0.0)   # guard one-pass cancellation
    xn = (x - mean) * lax.rsqrt(var + EPS)
    xf = xn * (fw + 1.0) + fb                                  # AdaGN FiLM

    # One wide QKV projection, bf16 operands / f32 accumulation.
    # The 1/sqrt(dh) attention scale is pre-folded into the Q columns.
    qkv = jnp.dot(xf.astype(jnp.bfloat16), wqkv_ref[...],
                  preferred_element_type=jnp.float32) + bqkv_ref[...]
    qkv = qkv.astype(jnp.bfloat16)                             # (S, 3C)

    # Per-head SDPA (static loop; dh=32 slices only at matmul time).
    ys = []
    for h in range(n_head):
        q = qkv[:, h * dh:(h + 1) * dh]                        # (S, dh)
        k = qkv[:, C + h * dh:C + (h + 1) * dh]                # (S, dh)
        v = qkv[:, 2 * C + h * dh:2 * C + (h + 1) * dh]        # (S, dh)
        scores = lax.dot_general(q, k, (((1,), (1,)), ((), ())),
                                 preferred_element_type=jnp.float32)  # (S, S)
        m = jnp.max(scores, axis=-1, keepdims=True)            # XLU
        p = jnp.exp(scores - m)                                # EUP
        inv = pl.reciprocal(jnp.sum(p, axis=-1, keepdims=True), approx=True)
        att = (p * inv).astype(jnp.bfloat16)
        ys.append(jnp.dot(att, v, preferred_element_type=jnp.float32))  # (S, dh)

    # Concatenate heads back to (S, C) -> ONE full-depth out-proj matmul.
    y = jnp.concatenate(ys, axis=-1).astype(jnp.bfloat16)      # (S, C)
    out_ref[0] = x + jnp.dot(y, wout_ref[...],
                             preferred_element_type=jnp.float32) + bout_ref[...]


# ----------------------------- wrapper -----------------------------

def self_attention_2d(x_nchw, cond, params, *, n_head, num_groups):
    """SelfAttention2d.forward(input, cond) — returns NCHW like the module."""
    N, C, H, W = x_nchw.shape
    assert C % n_head == 0 and C % num_groups == 0
    S = H * W
    dh = C // n_head
    Fc = cond.shape[-1]

    # Resident (S,S) f32 scores + (S,3C) QKV must fit VMEM on every generation.
    # TODO(synk): flash-style S-tiling with online softmax once this trips.
    assert S * S * 4 + S * 3 * C * 4 <= 12 * 1024 * 1024, (
        "H*W too large for the VMEM-resident attention path; needs S-tiling")

    x_cl = jnp.transpose(x_nchw, (0, 2, 3, 1)).reshape(N, S, C)
    cond3 = cond.reshape(N, 1, Fc)

    # Block-diagonal group-average matrix: (row_sum @ gmat) = per-group mean
    # broadcast back to channels.  Includes the 1/(S*group_size) factor.
    cg = C // num_groups
    gid = np.arange(C) // cg
    gmat = jnp.asarray(
        (gid[:, None] == gid[None, :]).astype(np.float32) / (S * cg))

    wm = params["map_w"].T                                   # (Fc, 2C)
    bm = params["map_b"].reshape(1, 2 * C)

    # Fold the 1/sqrt(dh) attention scale into the Q columns (one-time, host).
    scale = 1.0 / math.sqrt(dh)
    col_scale = jnp.concatenate([jnp.full((C,), scale, jnp.float32),
                                 jnp.ones((2 * C,), jnp.float32)])
    wqkv = (params["qkv_w"][:, :, 0, 0].T * col_scale).astype(jnp.bfloat16)
    bqkv = (params["qkv_b"] * col_scale).reshape(1, 3 * C)    # stays f32
    wout = params["out_w"][:, :, 0, 0].T.astype(jnp.bfloat16)  # (C, C)
    bout = params["out_b"].reshape(1, C)

    kernel = functools.partial(self_attention_kernel, n_head=n_head)

    out = pl.pallas_call(
        kernel,
        out_shape=jax.ShapeDtypeStruct((N, S, C), jnp.float32),
        grid_spec=pltpu.PrefetchScalarGridSpec(
            num_scalar_prefetch=0,
            grid=(N,),                                        # batch only; heads in-kernel
            in_specs=[
                pl.BlockSpec((1, 1, Fc), lambda n: (n, 0, 0)),     # cond
                pl.BlockSpec((1, S, C), lambda n: (n, 0, 0)),      # x
                pl.BlockSpec((C, C), lambda n: (0, 0)),            # gmat
                pl.BlockSpec((Fc, 2 * C), lambda n: (0, 0)),       # mapper W
                pl.BlockSpec((1, 2 * C), lambda n: (0, 0)),        # mapper b
                pl.BlockSpec((C, 3 * C), lambda n: (0, 0)),        # qkv W (bf16)
                pl.BlockSpec((1, 3 * C), lambda n: (0, 0)),        # qkv b
                pl.BlockSpec((C, C), lambda n: (0, 0)),            # out W (bf16)
                pl.BlockSpec((1, C), lambda n: (0, 0)),            # out b
            ],
            out_specs=pl.BlockSpec((1, S, C), lambda n: (n, 0, 0)),
        ),
        # Working set is < ~2 MiB; default scoped VMEM suffices on v5e/v6e/v7x,
        # so no vmem_limit_bytes override (keeps headroom explicit per gen).
        compiler_params=pltpu.CompilerParams(
            dimension_semantics=("parallel",)),
    )(cond3, x_cl, gmat, wm, bm, wqkv, bqkv, wout, bout)

    return jnp.transpose(out.reshape(N, H, W, C), (0, 3, 1, 2))


# ----------------------------- pure-JAX reference -----------------------------

def reference_forward(x, cond, params, *, n_head, num_groups):
    N, C, H, W = x.shape
    dh = C // n_head
    # AdaGN: GroupNorm (no affine) + FiLM from cond.
    film = cond @ params["map_w"].T + params["map_b"]
    fw, fb = film[:, :C], film[:, C:]
    xg = x.reshape(N, num_groups, C // num_groups, H, W)
    m = xg.mean(axis=(2, 3, 4), keepdims=True)
    v = xg.var(axis=(2, 3, 4), keepdims=True)
    xn = ((xg - m) / jnp.sqrt(v + EPS)).reshape(N, C, H, W)
    h_ = xn * (fw[:, :, None, None] + 1.0) + fb[:, :, None, None]
    # 1x1 conv qkv projection + head split exactly as the module's view/transpose.
    qkv = jnp.einsum("nchw,oc->nohw", h_, params["qkv_w"][:, :, 0, 0]) \
        + params["qkv_b"][None, :, None, None]
    qkv = qkv.reshape(N, 3 * n_head, dh, H * W).transpose(0, 1, 3, 2)
    q, k, vv = qkv[:, :n_head], qkv[:, n_head:2 * n_head], qkv[:, 2 * n_head:]
    scores = jnp.einsum("nhqd,nhkd->nhqk", q, k) / jnp.sqrt(jnp.float32(dh))
    att = jax.nn.softmax(scores, axis=-1)
    y = jnp.einsum("nhqk,nhkd->nhqd", att, vv)
    y = y.transpose(0, 1, 3, 2).reshape(N, C, H, W)
    out = jnp.einsum("nchw,oc->nohw", y, params["out_w"][:, :, 0, 0]) \
        + params["out_b"][None, :, None, None]
    return x + out


# ----------------------------- main -----------------------------

if __name__ == "__main__":
    N, C, H, W = 2, 128, 16, 16          # C=128 keeps every block lane-dense
    n_head, num_groups, n_cond = 4, 32, 32

    keys = jax.random.split(jax.random.PRNGKey(0), 8)
    params = {
        "map_w": 0.2 * jax.random.normal(keys[0], (2 * C, n_cond), jnp.float32),
        "map_b": 0.1 * jax.random.normal(keys[1], (2 * C,), jnp.float32),
        "qkv_w": 0.03 * jax.random.normal(keys[2], (3 * C, C, 1, 1), jnp.float32),
        "qkv_b": 0.05 * jax.random.normal(keys[3], (3 * C,), jnp.float32),
        # NOTE: the module zero-inits out_proj; small random weights are used
        # here so the numerical check actually exercises the attention path.
        "out_w": 0.05 * jax.random.normal(keys[4], (C, C, 1, 1), jnp.float32),
        "out_b": 0.05 * jax.random.normal(keys[5], (C,), jnp.float32),
    }
    x = jax.random.normal(keys[6], (N, C, H, W), jnp.float32)
    cond = jax.random.normal(keys[7], (N, n_cond), jnp.float32)

    out = self_attention_2d(x, cond, params, n_head=n_head, num_groups=num_groups)
    out = jax.block_until_ready(out)

    ref = reference_forward(x, cond, params, n_head=n_head, num_groups=num_groups)
    # Tolerance loosened vs. the pure-f32 version: matmul operands are bf16
    # (f32 accumulation) and softmax uses approx reciprocal on the EUP.
    np.testing.assert_allclose(np.asarray(out), np.asarray(ref),
                               rtol=2e-2, atol=2e-2)
    print("KERNEL_OK")
</pallas_src>

<mosaic_0001>
module attributes {stable_mosaic.version = 11 : i64} {
  func.func @self_attention_kernel(%arg0: i32, %arg1: memref<1x1x32xf32, #tpu.memory_space<vmem>>, %arg2: memref<1x256x128xf32, #tpu.memory_space<vmem>>, %arg3: memref<128x128xf32, #tpu.memory_space<vmem>>, %arg4: memref<32x256xf32, #tpu.memory_space<vmem>>, %arg5: memref<1x256xf32, #tpu.memory_space<vmem>>, %arg6: memref<128x384xbf16, #tpu.memory_space<vmem>>, %arg7: memref<1x384xf32, #tpu.memory_space<vmem>>, %arg8: memref<128x128xbf16, #tpu.memory_space<vmem>>, %arg9: memref<1x128xf32, #tpu.memory_space<vmem>>, %arg10: memref<1x256x128xf32, #tpu.memory_space<vmem>>) attributes {dimension_semantics = [#tpu.dimension_semantics<parallel>], iteration_bounds = array<i64: 2>, scalar_prefetch = 0 : i64, scratch_operands = 0 : i64, tpu.core_type = #tpu.core_type<tc>, window_params = [{transform_indices = @transform_0, window_bounds = array<i64: 1, 1, 32>}, {transform_indices = @transform_1, window_bounds = array<i64: 1, 256, 128>}, {pipeline_mode = #tpu.pipeline_mode<synchronous>, transform_indices = @transform_2, window_bounds = array<i64: 128, 128>}, {pipeline_mode = #tpu.pipeline_mode<synchronous>, transform_indices = @transform_3, window_bounds = array<i64: 32, 256>}, {pipeline_mode = #tpu.pipeline_mode<synchronous>, transform_indices = @transform_4, window_bounds = array<i64: 1, 256>}, {pipeline_mode = #tpu.pipeline_mode<synchronous>, transform_indices = @transform_5, window_bounds = array<i64: 128, 384>}, {pipeline_mode = #tpu.pipeline_mode<synchronous>, transform_indices = @transform_6, window_bounds = array<i64: 1, 384>}, {pipeline_mode = #tpu.pipeline_mode<synchronous>, transform_indices = @transform_7, window_bounds = array<i64: 128, 128>}, {pipeline_mode = #tpu.pipeline_mode<synchronous>, transform_indices = @transform_8, window_bounds = array<i64: 1, 128>}, {transform_indices = @transform_9, window_bounds = array<i64: 1, 256, 128>}]} {
    %c0 = arith.constant 0 : index
    %c0_0 = arith.constant 0 : index
    %c0_1 = arith.constant 0 : index
    %0 = vector.load %arg2[%c0, %c0_0, %c0_1] : memref<1x256x128xf32, #tpu.memory_space<vmem>>, vector<1x256x128xf32>
    %1 = vector.shape_cast %0 : vector<1x256x128xf32> to vector<256x128xf32>
    %c0_2 = arith.constant 0 : index
    %c0_3 = arith.constant 0 : index
    %c0_4 = arith.constant 0 : index
    %2 = vector.load %arg1[%c0_2, %c0_3, %c0_4] : memref<1x1x32xf32, #tpu.memory_space<vmem>>, vector<1x1x32xf32>
    %3 = vector.shape_cast %2 : vector<1x1x32xf32> to vector<1x32xf32>
    %c0_5 = arith.constant 0 : index
    %c0_6 = arith.constant 0 : index
    %4 = vector.load %arg4[%c0_5, %c0_6] : memref<32x256xf32, #tpu.memory_space<vmem>>, vector<32x256xf32>
    %cst = arith.constant dense<0.000000e+00> : vector<1x256xf32>
    %5 = tpu.matmul %3, %4, %cst {dimension_numbers = #tpu.dot_dimension_numbers<[1], [0], [0], [1], [0, 0, 1, 1], [], []>} : vector<1x32xf32>, vector<32x256xf32>, vector<1x256xf32> -> vector<1x256xf32>
    %c0_7 = arith.constant 0 : index
    %c0_8 = arith.constant 0 : index
    %6 = vector.load %arg5[%c0_7, %c0_8] : memref<1x256xf32, #tpu.memory_space<vmem>>, vector<1x256xf32>
    %7 = arith.addf %5, %6 : vector<1x256xf32>
    %8 = vector.extract_strided_slice %7 {offsets = [0, 0], sizes = [1, 128], strides = [1, 1]} : vector<1x256xf32> to vector<1x128xf32>
    %9 = vector.extract_strided_slice %7 {offsets = [0, 128], sizes = [1, 128], strides = [1, 1]} : vector<1x256xf32> to vector<1x128xf32>
    %cst_9 = arith.constant 1.000000e+00 : f32
    %10 = vector.broadcast %cst_9 : f32 to vector<1x256xf32>
    %cst_10 = arith.constant dense<0.000000e+00> : vector<1x128xf32>
    %11 = tpu.matmul %10, %1, %cst_10 {dimension_numbers = #tpu.dot_dimension_numbers<[1], [0], [0], [1], [0, 0, 1, 1], [], []>} : vector<1x256xf32>, vector<256x128xf32>, vector<1x128xf32> -> vector<1x128xf32>
    %12 = arith.mulf %1, %1 : vector<256x128xf32>
    %cst_11 = arith.constant dense<0.000000e+00> : vector<1x128xf32>
    %13 = tpu.matmul %10, %12, %cst_11 {dimension_numbers = #tpu.dot_dimension_numbers<[1], [0], [0], [1], [0, 0, 1, 1], [], []>} : vector<1x256xf32>, vector<256x128xf32>, vector<1x128xf32> -> vector<1x128xf32>
    %c0_12 = arith.constant 0 : index
    %c0_13 = arith.constant 0 : index
    %14 = vector.load %arg3[%c0_12, %c0_13] : memref<128x128xf32, #tpu.memory_space<vmem>>, vector<128x128xf32>
    %cst_14 = arith.constant dense<0.000000e+00> : vector<1x128xf32>
    %15 = tpu.matmul %11, %14, %cst_14 {dimension_numbers = #tpu.dot_dimension_numbers<[1], [0], [0], [1], [0, 0, 1, 1], [], []>} : vector<1x128xf32>, vector<128x128xf32>, vector<1x128xf32> -> vector<1x128xf32>
    %c0_15 = arith.constant 0 : index
    %c0_16 = arith.constant 0 : index
    %16 = vector.load %arg3[%c0_15, %c0_16] : memref<128x128xf32, #tpu.memory_space<vmem>>, vector<128x128xf32>
    %cst_17 = arith.constant dense<0.000000e+00> : vector<1x128xf32>
    %17 = tpu.matmul %13, %16, %cst_17 {dimension_numbers = #tpu.dot_dimension_numbers<[1], [0], [0], [1], [0, 0, 1, 1], [], []>} : vector<1x128xf32>, vector<128x128xf32>, vector<1x128xf32> -> vector<1x128xf32>
    %18 = arith.mulf %15, %15 : vector<1x128xf32>
    %19 = arith.subf %17, %18 : vector<1x128xf32>
    %cst_18 = arith.constant 0.000000e+00 : f32
    %20 = vector.broadcast %cst_18 : f32 to vector<1x128xf32>
    %21 = arith.maximumf %19, %20 : vector<1x128xf32>
    %22 = vector.broadcast %15 : vector<1x128xf32> to vector<256x128xf32>
    %23 = arith.subf %1, %22 : vector<256x128xf32>
    %cst_19 = arith.constant 9.99999974E-6 : f32
    %24 = vector.broadcast %cst_19 : f32 to vector<1x128xf32>
    %25 = arith.addf %21, %24 : vector<1x128xf32>
    %26 = math.rsqrt %25 : vector<1x128xf32>
    %27 = vector.broadcast %26 : vector<1x128xf32> to vector<256x128xf32>
    %28 = arith.mulf %23, %27 : vector<256x128xf32>
    %cst_20 = arith.constant 1.000000e+00 : f32
    %29 = vector.broadcast %cst_20 : f32 to vector<1x128xf32>
    %30 = arith.addf %8, %29 : vector<1x128xf32>
    %31 = vector.broadcast %30 : vector<1x128xf32> to vector<256x128xf32>
    %32 = arith.mulf %28, %31 : vector<256x128xf32>
    %33 = vector.broadcast %9 : vector<1x128xf32> to vector<256x128xf32>
    %34 = arith.addf %32, %33 : vector<256x128xf32>
    %35 = arith.truncf %34 : vector<256x128xf32> to vector<256x128xbf16>
    %c0_21 = arith.constant 0 : index
    %c0_22 = arith.constant 0 : index
    %36 = vector.load %arg6[%c0_21, %c0_22] : memref<128x384xbf16, #tpu.memory_space<vmem>>, vector<128x384xbf16>
    %cst_23 = arith.constant dense<0.000000e+00> : vector<256x384xf32>
    %37 = tpu.matmul %35, %36, %cst_23 {dimension_numbers = #tpu.dot_dimension_numbers<[1], [0], [0], [1], [0, 0, 1, 1], [], []>} : vector<256x128xbf16>, vector<128x384xbf16>, vector<256x384xf32> -> vector<256x384xf32>
    %c0_24 = arith.constant 0 : index
    %c0_25 = arith.constant 0 : index
    %38 = vector.load %arg7[%c0_24, %c0_25] : memref<1x384xf32, #tpu.memory_space<vmem>>, vector<1x384xf32>
    %39 = vector.broadcast %38 : vector<1x384xf32> to vector<256x384xf32>
    %40 = arith.addf %37, %39 : vector<256x384xf32>
    %41 = arith.truncf %40 : vector<256x384xf32> to vector<256x384xbf16>
    %42 = vector.extract_strided_slice %41 {offsets = [0, 0], sizes = [256, 32], strides = [1, 1]} : vector<256x384xbf16> to vector<256x32xbf16>
    %43 = vector.extract_strided_slice %41 {offsets = [0, 128], sizes = [256, 32], strides = [1, 1]} : vector<256x384xbf16> to vector<256x32xbf16>
    %44 = vector.extract_strided_slice %41 {offsets = [0, 256], sizes = [256, 32], strides = [1, 1]} : vector<256x384xbf16> to vector<256x32xbf16>
    %cst_26 = arith.constant dense<0.000000e+00> : vector<256x256xf32>
    %45 = tpu.matmul %42, %43, %cst_26 {dimension_numbers = #tpu.dot_dimension_numbers<[1], [1], [0], [0], [0, 0, 1, 0], [], []>} : vector<256x32xbf16>, vector<256x32xbf16>, vector<256x256xf32> -> vector<256x256xf32>
    %cst_27 = arith.constant dense<0xFF800000> : vector<256xf32>
    %46 = vector.multi_reduction <maximumf>, %45, %cst_27 [1] : vector<256x256xf32> to vector<256xf32>
    %47 = vector.shape_cast %46 : vector<256xf32> to vector<256x1xf32>
    %48 = vector.broadcast %47 : vector<256x1xf32> to vector<256x256xf32>
    %49 = arith.subf %45, %48 : vector<256x256xf32>
    %50 = math.exp %49 : vector<256x256xf32>
    %cst_28 = arith.constant dense<0.000000e+00> : vector<256xf32>
    %51 = vector.multi_reduction <add>, %50, %cst_28 [1] : vector<256x256xf32> to vector<256xf32>
    %52 = vector.shape_cast %51 : vector<256xf32> to vector<256x1xf32>
    %53 = tpu.reciprocal %52 {approx = true} : vector<256x1xf32> -> vector<256x1xf32>
    %54 = vector.broadcast %53 : vector<256x1xf32> to vector<256x256xf32>
    %55 = arith.mulf %50, %54 : vector<256x256xf32>
    %56 = arith.truncf %55 : vector<256x256xf32> to vector<256x256xbf16>
    %cst_29 = arith.constant dense<0.000000e+00> : vector<256x32xf32>
    %57 = tpu.matmul %56, %44, %cst_29 {dimension_numbers = #tpu.dot_dimension_numbers<[1], [0], [0], [1], [0, 0, 1, 1], [], []>} : vector<256x256xbf16>, vector<256x32xbf16>, vector<256x32xf32> -> vector<256x32xf32>
    %58 = vector.extract_strided_slice %41 {offsets = [0, 32], sizes = [256, 32], strides = [1, 1]} : vector<256x384xbf16> to vector<256x32xbf16>
    %59 = vector.extract_strided_slice %41 {offsets = [0, 160], sizes = [256, 32], strides = [1, 1]} : vector<256x384xbf16> to vector<256x32xbf16>
    %60 = vector.extract_strided_slice %41 {offsets = [0, 288], sizes = [256, 32], strides = [1, 1]} : vector<256x384xbf16> to vector<256x32xbf16>
    %cst_30 = arith.constant dense<0.000000e+00> : vector<256x256xf32>
    %61 = tpu.matmul %58, %59, %cst_30 {dimension_numbers = #tpu.dot_dimension_numbers<[1], [1], [0], [0], [0, 0, 1, 0], [], []>} : vector<256x32xbf16>, vector<256x32xbf16>, vector<256x256xf32> -> vector<256x256xf32>
    %cst_31 = arith.constant dense<0xFF800000> : vector<256xf32>
    %62 = vector.multi_reduction <maximumf>, %61, %cst_31 [1] : vector<256x256xf32> to vector<256xf32>
    %63 = vector.shape_cast %62 : vector<256xf32> to vector<256x1xf32>
    %64 = vector.broadcast %63 : vector<256x1xf32> to vector<256x256xf32>
    %65 = arith.subf %61, %64 : vector<256x256xf32>
    %66 = math.exp %65 : vector<256x256xf32>
    %cst_32 = arith.constant dense<0.000000e+00> : vector<256xf32>
    %67 = vector.multi_reduction <add>, %66, %cst_32 [1] : vector<256x256xf32> to vector<256xf32>
    %68 = vector.shape_cast %67 : vector<256xf32> to vector<256x1xf32>
    %69 = tpu.reciprocal %68 {approx = true} : vector<256x1xf32> -> vector<256x1xf32>
    %70 = vector.broadcast %69 : vector<256x1xf32> to vector<256x256xf32>
    %71 = arith.mulf %66, %70 : vector<256x256xf32>
    %72 = arith.truncf %71 : vector<256x256xf32> to vector<256x256xbf16>
    %cst_33 = arith.constant dense<0.000000e+00> : vector<256x32xf32>
    %73 = tpu.matmul %72, %60, %cst_33 {dimension_numbers = #tpu.dot_dimension_numbers<[1], [0], [0], [1], [0, 0, 1, 1], [], []>} : vector<256x256xbf16>, vector<256x32xbf16>, vector<256x32xf32> -> vector<256x32xf32>
    %74 = vector.extract_strided_slice %41 {offsets = [0, 64], sizes = [256, 32], strides = [1, 1]} : vector<256x384xbf16> to vector<256x32xbf16>
    %75 = vector.extract_strided_slice %41 {offsets = [0, 192], sizes = [256, 32], strides = [1, 1]} : vector<256x384xbf16> to vector<256x32xbf16>
    %76 = vector.extract_strided_slice %41 {offsets = [0, 320], sizes = [256, 32], strides = [1, 1]} : vector<256x384xbf16> to vector<256x32xbf16>
    %cst_34 = arith.constant dense<0.000000e+00> : vector<256x256xf32>
    %77 = tpu.matmul %74, %75, %cst_34 {dimension_numbers = #tpu.dot_dimension_numbers<[1], [1], [0], [0], [0, 0, 1, 0], [], []>} : vector<256x32xbf16>, vector<256x32xbf16>, vector<256x256xf32> -> vector<256x256xf32>
    %cst_35 = arith.constant dense<0xFF800000> : vector<256xf32>
    %78 = vector.multi_reduction <maximumf>, %77, %cst_35 [1] : vector<256x256xf32> to vector<256xf32>
    %79 = vector.shape_cast %78 : vector<256xf32> to vector<256x1xf32>
    %80 = vector.broadcast %79 : vector<256x1xf32> to vector<256x256xf32>
    %81 = arith.subf %77, %80 : vector<256x256xf32>
    %82 = math.exp %81 : vector<256x256xf32>
    %cst_36 = arith.constant dense<0.000000e+00> : vector<256xf32>
    %83 = vector.multi_reduction <add>, %82, %cst_36 [1] : vector<256x256xf32> to vector<256xf32>
    %84 = vector.shape_cast %83 : vector<256xf32> to vector<256x1xf32>
    %85 = tpu.reciprocal %84 {approx = true} : vector<256x1xf32> -> vector<256x1xf32>
    %86 = vector.broadcast %85 : vector<256x1xf32> to vector<256x256xf32>
    %87 = arith.mulf %82, %86 : vector<256x256xf32>
    %88 = arith.truncf %87 : vector<256x256xf32> to vector<256x256xbf16>
    %cst_37 = arith.constant dense<0.000000e+00> : vector<256x32xf32>
    %89 = tpu.matmul %88, %76, %cst_37 {dimension_numbers = #tpu.dot_dimension_numbers<[1], [0], [0], [1], [0, 0, 1, 1], [], []>} : vector<256x256xbf16>, vector<256x32xbf16>, vector<256x32xf32> -> vector<256x32xf32>
    %90 = vector.extract_strided_slice %41 {offsets = [0, 96], sizes = [256, 32], strides = [1, 1]} : vector<256x384xbf16> to vector<256x32xbf16>
    %91 = vector.extract_strided_slice %41 {offsets = [0, 224], sizes = [256, 32], strides = [1, 1]} : vector<256x384xbf16> to vector<256x32xbf16>
    %92 = vector.extract_strided_slice %41 {offsets = [0, 352], sizes = [256, 32], strides = [1, 1]} : vector<256x384xbf16> to vector<256x32xbf16>
    %cst_38 = arith.constant dense<0.000000e+00> : vector<256x256xf32>
    %93 = tpu.matmul %90, %91, %cst_38 {dimension_numbers = #tpu.dot_dimension_numbers<[1], [1], [0], [0], [0, 0, 1, 0], [], []>} : vector<256x32xbf16>, vector<256x32xbf16>, vector<256x256xf32> -> vector<256x256xf32>
    %cst_39 = arith.constant dense<0xFF800000> : vector<256xf32>
    %94 = vector.multi_reduction <maximumf>, %93, %cst_39 [1] : vector<256x256xf32> to vector<256xf32>
    %95 = vector.shape_cast %94 : vector<256xf32> to vector<256x1xf32>
    %96 = vector.broadcast %95 : vector<256x1xf32> to vector<256x256xf32>
    %97 = arith.subf %93, %96 : vector<256x256xf32>
    %98 = math.exp %97 : vector<256x256xf32>
    %cst_40 = arith.constant dense<0.000000e+00> : vector<256xf32>
    %99 = vector.multi_reduction <add>, %98, %cst_40 [1] : vector<256x256xf32> to vector<256xf32>
    %100 = vector.shape_cast %99 : vector<256xf32> to vector<256x1xf32>
    %101 = tpu.reciprocal %100 {approx = true} : vector<256x1xf32> -> vector<256x1xf32>
    %102 = vector.broadcast %101 : vector<256x1xf32> to vector<256x256xf32>
    %103 = arith.mulf %98, %102 : vector<256x256xf32>
    %104 = arith.truncf %103 : vector<256x256xf32> to vector<256x256xbf16>
    %cst_41 = arith.constant dense<0.000000e+00> : vector<256x32xf32>
    %105 = tpu.matmul %104, %92, %cst_41 {dimension_numbers = #tpu.dot_dimension_numbers<[1], [0], [0], [1], [0, 0, 1, 1], [], []>} : vector<256x256xbf16>, vector<256x32xbf16>, vector<256x32xf32> -> vector<256x32xf32>
    %106 = tpu.concatenate %57, %73, %89, %105 in 1 : vector<256x32xf32>, vector<256x32xf32>, vector<256x32xf32>, vector<256x32xf32> -> vector<256x128xf32>
    %107 = arith.truncf %106 : vector<256x128xf32> to vector<256x128xbf16>
    %c0_42 = arith.constant 0 : index
    %c0_43 = arith.constant 0 : index
    %108 = vector.load %arg8[%c0_42, %c0_43] : memref<128x128xbf16, #tpu.memory_space<vmem>>, vector<128x128xbf16>
    %cst_44 = arith.constant dense<0.000000e+00> : vector<256x128xf32>
    %109 = tpu.matmul %107, %108, %cst_44 {dimension_numbers = #tpu.dot_dimension_numbers<[1], [0], [0], [1], [0, 0, 1, 1], [], []>} : vector<256x128xbf16>, vector<128x128xbf16>, vector<256x128xf32> -> vector<256x128xf32>
    %110 = arith.addf %1, %109 : vector<256x128xf32>
    %c0_45 = arith.constant 0 : index
    %c0_46 = arith.constant 0 : index
    %111 = vector.load %arg9[%c0_45, %c0_46] : memref<1x128xf32, #tpu.memory_space<vmem>>, vector<1x128xf32>
    %112 = vector.broadcast %111 : vector<1x128xf32> to vector<256x128xf32>
    %113 = arith.addf %110, %112 : vector<256x128xf32>
    %c0_47 = arith.constant 0 : index
    %c0_48 = arith.constant 0 : index
    %c0_49 = arith.constant 0 : index
    %114 = vector.load %arg10[%c0_47, %c0_48, %c0_49] : memref<1x256x128xf32, #tpu.memory_space<vmem>>, vector<1x256x128xf32>
    %115 = vector.shape_cast %114 : vector<1x256x128xf32> to vector<256x128xf32>
    %116 = vector.shape_cast %113 : vector<256x128xf32> to vector<1x256x128xf32>
    tpu.vector_store %arg10[%c0_47, %c0_48, %c0_49], %116 {strides = array<i32>} : memref<1x256x128xf32, #tpu.memory_space<vmem>>, vector<1x256x128xf32>,
    return
  }
  func.func @transform_0(%arg0: i32) -> (i32, i32, i32) {
    %c0_i32 = arith.constant 0 : i32
    %c0_i32_0 = arith.constant 0 : i32
    %c0_i32_1 = arith.constant 0 : i32
    return %arg0, %c0_i32, %c0_i32_0 : i32, i32, i32
  }
  func.func @transform_1(%arg0: i32) -> (i32, i32, i32) {
    %c0_i32 = arith.constant 0 : i32
    %c0_i32_0 = arith.constant 0 : i32
    %c0_i32_1 = arith.constant 0 : i32
    return %arg0, %c0_i32, %c0_i32_0 : i32, i32, i32
  }
  func.func @transform_2(%arg0: i32) -> (i32, i32) {
    %c0_i32 = arith.constant 0 : i32
    %c0_i32_0 = arith.constant 0 : i32
    %c0_i32_1 = arith.constant 0 : i32
    return %c0_i32, %c0_i32_0 : i32, i32
  }
  func.func @transform_3(%arg0: i32) -> (i32, i32) {
    %c0_i32 = arith.constant 0 : i32
    %c0_i32_0 = arith.constant 0 : i32
    %c0_i32_1 = arith.constant 0 : i32
    return %c0_i32, %c0_i32_0 : i32, i32
  }
  func.func @transform_4(%arg0: i32) -> (i32, i32) {
    %c0_i32 = arith.constant 0 : i32
    %c0_i32_0 = arith.constant 0 : i32
    %c0_i32_1 = arith.constant 0 : i32
    return %c0_i32, %c0_i32_0 : i32, i32
  }
  func.func @transform_5(%arg0: i32) -> (i32, i32) {
    %c0_i32 = arith.constant 0 : i32
    %c0_i32_0 = arith.constant 0 : i32
    %c0_i32_1 = arith.constant 0 : i32
    return %c0_i32, %c0_i32_0 : i32, i32
  }
  func.func @transform_6(%arg0: i32) -> (i32, i32) {
    %c0_i32 = arith.constant 0 : i32
    %c0_i32_0 = arith.constant 0 : i32
    %c0_i32_1 = arith.constant 0 : i32
    return %c0_i32, %c0_i32_0 : i32, i32
  }
  func.func @transform_7(%arg0: i32) -> (i32, i32) {
    %c0_i32 = arith.constant 0 : i32
    %c0_i32_0 = arith.constant 0 : i32
    %c0_i32_1 = arith.constant 0 : i32
    return %c0_i32, %c0_i32_0 : i32, i32
  }
  func.func @transform_8(%arg0: i32) -> (i32, i32) {
    %c0_i32 = arith.constant 0 : i32
    %c0_i32_0 = arith.constant 0 : i32
    %c0_i32_1 = arith.constant 0 : i32
    return %c0_i32, %c0_i32_0 : i32, i32
  }
  func.func @transform_9(%arg0: i32) -> (i32, i32, i32) {
    %c0_i32 = arith.constant 0 : i32
    %c0_i32_0 = arith.constant 0 : i32
    %c0_i32_1 = arith.constant 0 : i32
    return %arg0, %c0_i32, %c0_i32_0 : i32, i32, i32
  }
}

</mosaic_0001>

<llo_original>
// kernel: tpu_custom_call.1
$region0: #{tpu_custom_call.1}
  #allocation0 [shape = 'u32[]', space=smem, size = 0x4, offset = 0x4, fixed_abs, tag = 'smem constant byte address 0x4 - core index']
  #allocation1 [shape = 'u32[144,128]{1,0:T(1,128)}', space=vmem, size = 0x12000, scoped, tag = 'internal scratch']
  %s0 = inlined_call_operand.hbm [shape: f32[2,1,32], index: 0, kind: input, shape index: {}]
  %s1 = inlined_call_operand.hbm [shape: f32[2,256,128], index: 1, kind: input, shape index: {}]
  %s2 = inlined_call_operand.hbm [shape: f32[128,128], index: 2, kind: input, shape index: {}]
  %s3 = inlined_call_operand.hbm [shape: f32[32,256], index: 3, kind: input, shape index: {}]
  %s4 = inlined_call_operand.vmem [shape: f32[1,256], index: 4, kind: input, shape index: {}]
  %s5 = inlined_call_operand.hbm [shape: bf16[128,384], index: 5, kind: input, shape index: {}]
  %s6 = inlined_call_operand.vmem [shape: f32[1,384], index: 6, kind: input, shape index: {}]
  %s7 = inlined_call_operand.hbm [shape: bf16[128,128], index: 7, kind: input, shape index: {}]
  %s8 = inlined_call_operand.vmem [shape: f32[1,128], index: 8, kind: input, shape index: {}]
  %s9 = inlined_call_operand.hbm [shape: f32[2,256,128], index: 9, kind: output, shape index: {}]
  %s10 = sld [smem:[#allocation0]]
  $region93: #{tpu_custom_call.1} parent=0
    _
  %s12 = ssub.s32 1, %s10
  %s13 = scalar_select 0, %s12, %s10
  $region1: #{tpu_custom_call.1} parent=0
    #allocation2 [shape = 'u8[1024]{0}', space=vmem, size = 0x400, scoped, tag = 'input window, operand 0']
    #allocation3 [shape = 's32[2]{0}', space=sflag, size = 0x8, scoped, tag = 'scoped memory for tpu_custom_call.1']
    #allocation4 [shape = 's32[2]{0}', space=sflag, size = 0x8, scoped, tag = 'scoped memory for tpu_custom_call.1']
    #allocation5 [shape = 'u8[262144]{0}', space=vmem, size = 0x40000, scoped, tag = 'input window, operand 1']
    #allocation6 [shape = 's32[2]{0}', space=sflag, size = 0x8, scoped, tag = 'scoped memory for tpu_custom_call.1']
    #allocation7 [shape = 'u8[65536]{0}', space=vmem, size = 0x10000, scoped, tag = 'input window, operand 2, single buffered']
    #allocation8 [shape = 'u8[32768]{0}', space=vmem, size = 0x8000, scoped, tag = 'input window, operand 3, single buffered']
    #allocation9 [shape = 's32[1]{0}', space=sflag, size = 0x4, scoped, tag = 'scoped memory for tpu_custom_call.1']
    #allocation10 [shape = 'u8[98304]{0}', space=vmem, size = 0x18000, scoped, tag = 'input window, operand 5, single buffered']
    #allocation11 [shape = 'u8[32768]{0}', space=vmem, size = 0x8000, scoped, tag = 'input window, operand 7, single buffered']
    #allocation12 [shape = 's32[1]{0}', space=sflag, size = 0x4, scoped, tag = 'scoped memory for tpu_custom_call.1']
    #allocation13 [shape = 'u8[262144]{0}', space=vmem, size = 0x40000, scoped, tag = 'output window, operand 0']
    %14 = vsyncpa [#allocation3], 0
    %s15 = scalar_lea.sflag [#allocation3], 1
    %16 = vsyncpa %s15, 0
    %17 = vsyncpa [#allocation6], 0
    %s18 = scalar_lea.sflag [#allocation6], 1
    %19 = vsyncpa %s18, 0
    %20 = vsyncpa [#allocation9], 0
    %21 = vsyncpa [#allocation12], 0
    %22 = vsyncpa [#allocation4], 0
    %s23 = scalar_lea.sflag [#allocation4], 1
    %24 = vsyncpa %s23, 0
    loop: start=0, step=1, limit=4
    $region2: #{tpu_custom_call.1} parent=1 // loop_pre_header
      _
    $region3: #{tpu_custom_call.1} parent=1 // loop_header
      %s26 = sphi 0, %s30
      %p27 = scmp.ge.s32.totalorder %s26, 4
      %s36 = sphi 0, %s38
      %s39 = sphi 0, %s36
      %s40 = sphi 0, %s39
      %s56 = sphi 0, %s40
      %s62 = sphi 0, %s64
      %s65 = sphi 0, %s62
      %s66 = sphi 0, %s65
      %s82 = sphi 0, %s66
      %s86 = sphi 0, %s86
      %s88 = sphi 0, %s86
      %s89 = sphi 0, %s88
      %s103 = sphi 0, %s89
      %s107 = sphi 0, %s107
      %s109 = sphi 0, %s107
      %s110 = sphi 0, %s109
      %s124 = sphi 0, %s110
      %s128 = sphi 0, %s128
      %s130 = sphi 0, %s128
      %s131 = sphi 0, %s130
      %s145 = sphi 0, %s131
      %s149 = sphi 0, %s149
      %s151 = sphi 0, %s149
      %s152 = sphi 0, %s151
      %s166 = sphi 0, %s152
      %s170 = sphi 0, %s170
      %s172 = sphi 0, %s170
      %s173 = sphi 0, %s172
      %s187 = sphi 0, %s173
      %s191 = sphi 0, %s191
      %s193 = sphi 0, %s191
      %s194 = sphi 0, %s193
      %s208 = sphi 0, %s194
      %s212 = sphi 0, %s212
      %s214 = sphi 0, %s212
      %s215 = sphi 0, %s214
      %s229 = sphi 0, %s215
      %s235 = sphi 0, %s237
      %s238 = sphi 0, %s235
      %s239 = sphi 0, %s238
      %s255 = sphi 0, %s239
    $region4: #{tpu_custom_call.1} parent=1 // loop_header_branch
      %29 = sbr.rel (%p27) target = $region8
    $region5: #{tpu_custom_call.1} parent=1 // loop_body
      %s31 = ssub.s32 %s26, 1
      %s32 = ssub.s32 %s26, 2
      %s33 = sadd.s32 %s26, 1
      %s34 = ssub.s32 %s26, %s33
      %p35 = scmp.eq.s32.totalorder %s34, 0
      %s37 = sadd.s32 %s36, 1
      %s38 = scalar_select %p35, %s36, %s37
      %p41 = pneg %p35
      %p42 = scmp.eq.s32.totalorder %s26, 1
      %p43 = por %p41, %p42
      %p44 = scmp.ne.s32.totalorder %s36, %s39
      %p45 = scmp.eq.s32.totalorder %s26, 0
      %p46 = por %p44, %p45
      %p47 = scmp.ne.s32.totalorder %s36, %s39
      %p48 = scmp.eq.s32.totalorder %s31, 1
      %p49 = por %p47, %p48
      %p50 = scmp.ne.s32.totalorder %s39, %s40
      %p51 = scmp.eq.s32.totalorder %s31, 0
      %p52 = por %p50, %p51
      %p53 = scmp.ne.s32.totalorder %s39, %s40
      %p54 = scmp.eq.s32.totalorder %s32, 1
      %p55 = por %p53, %p54
      %p57 = scmp.ne.s32.totalorder %s40, %s56
      %p58 = scmp.eq.s32.totalorder %s32, 0
      %p59 = por %p57, %p58
      %s60 = ssub.s32 %s26, %s33
      %p61 = scmp.eq.s32.totalorder %s60, 0
      %s63 = sadd.s32 %s62, 1
      %s64 = scalar_select %p61, %s62, %s63
      %p67 = pneg %p61
      %p68 = scmp.eq.s32.totalorder %s26, 1
      %p69 = por %p67, %p68
      %p70 = scmp.ne.s32.totalorder %s62, %s65
      %p71 = scmp.eq.s32.totalorder %s26, 0
      %p72 = por %p70, %p71
      %p73 = scmp.ne.s32.totalorder %s62, %s65
      %p74 = scmp.eq.s32.totalorder %s31, 1
      %p75 = por %p73, %p74
      %p76 = scmp.ne.s32.totalorder %s65, %s66
      %p77 = scmp.eq.s32.totalorder %s31, 0
      %p78 = por %p76, %p77
      %p79 = scmp.ne.s32.totalorder %s65, %s66
      %p80 = scmp.eq.s32.totalorder %s32, 1
      %p81 = por %p79, %p80
      %p83 = scmp.ne.s32.totalorder %s66, %s82
      %p84 = scmp.eq.s32.totalorder %s32, 0
      %p85 = por %p83, %p84
      %s87 = sadd.s32 %s86, 1
      %p90 = scmp.eq.s32.totalorder %s26, 1
      %p91 = scmp.ne.s32.totalorder %s86, %s88
      %p92 = scmp.eq.s32.totalorder %s26, 0
      %p93 = por %p91, %p92
      %p94 = scmp.ne.s32.totalorder %s86, %s88
      %p95 = scmp.eq.s32.totalorder %s31, 1
      %p96 = por %p94, %p95
      %p97 = scmp.ne.s32.totalorder %s88, %s89
      %p98 = scmp.eq.s32.totalorder %s31, 0
      %p99 = por %p97, %p98
      %p100 = scmp.ne.s32.totalorder %s88, %s89
      %p101 = scmp.eq.s32.totalorder %s32, 1
      %p102 = por %p100, %p101
      %p104 = scmp.ne.s32.totalorder %s89, %s103
      %p105 = scmp.eq.s32.totalorder %s32, 0
      %p106 = por %p104, %p105
      %s108 = sadd.s32 %s107, 1
      %p111 = scmp.eq.s32.totalorder %s26, 1
      %p112 = scmp.ne.s32.totalorder %s107, %s109
      %p113 = scmp.eq.s32.totalorder %s26, 0
      %p114 = por %p112, %p113
      %p115 = scmp.ne.s32.totalorder %s107, %s109
      %p116 = scmp.eq.s32.totalorder %s31, 1
      %p117 = por %p115, %p116
      %p118 = scmp.ne.s32.totalorder %s109, %s110
      %p119 = scmp.eq.s32.totalorder %s31, 0
      %p120 = por %p118, %p119
      %p121 = scmp.ne.s32.totalorder %s109, %s110
      %p122 = scmp.eq.s32.totalorder %s32, 1
      %p123 = por %p121, %p122
      %p125 = scmp.ne.s32.totalorder %s110, %s124
      %p126 = scmp.eq.s32.totalorder %s32, 0
      %p127 = por %p125, %p126
      %s129 = sadd.s32 %s128, 1
      %p132 = scmp.eq.s32.totalorder %s26, 1
      %p133 = scmp.ne.s32.totalorder %s128, %s130
      %p134 = scmp.eq.s32.totalorder %s26, 0
      %p135 = por %p133, %p134
      %p136 = scmp.ne.s32.totalorder %s128, %s130
      %p137 = scmp.eq.s32.totalorder %s31, 1
      %p138 = por %p136, %p137
      %p139 = scmp.ne.s32.totalorder %s130, %s131
      %p140 = scmp.eq.s32.totalorder %s31, 0
      %p141 = por %p139, %p140
      %p142 = scmp.ne.s32.totalorder %s130, %s131
      %p143 = scmp.eq.s32.totalorder %s32, 1
      %p144 = por %p142, %p143
      %p146 = scmp.ne.s32.totalorder %s131, %s145
      %p147 = scmp.eq.s32.totalorder %s32, 0
      %p148 = por %p146, %p147
      %s150 = sadd.s32 %s149, 1
      %p153 = scmp.eq.s32.totalorder %s26, 1
      %p154 = scmp.ne.s32.totalorder %s149, %s151
      %p155 = scmp.eq.s32.totalorder %s26, 0
      %p156 = por %p154, %p155
      %p157 = scmp.ne.s32.totalorder %s149, %s151
      %p158 = scmp.eq.s32.totalorder %s31, 1
      %p159 = por %p157, %p158
      %p160 = scmp.ne.s32.totalorder %s151, %s152
      %p161 = scmp.eq.s32.totalorder %s31, 0
      %p162 = por %p160, %p161
      %p163 = scmp.ne.s32.totalorder %s151, %s152
      %p164 = scmp.eq.s32.totalorder %s32, 1
      %p165 = por %p163, %p164
      %p167 = scmp.ne.s32.totalorder %s152, %s166
      %p168 = scmp.eq.s32.totalorder %s32, 0
      %p169 = por %p167, %p168
      %s171 = sadd.s32 %s170, 1
      %p174 = scmp.eq.s32.totalorder %s26, 1
      %p175 = scmp.ne.s32.totalorder %s170, %s172
      %p176 = scmp.eq.s32.totalorder %s26, 0
      %p177 = por %p175, %p176
      %p178 = scmp.ne.s32.totalorder %s170, %s172
      %p179 = scmp.eq.s32.totalorder %s31, 1
      %p180 = por %p178, %p179
      %p181 = scmp.ne.s32.totalorder %s172, %s173
      %p182 = scmp.eq.s32.totalorder %s31, 0
      %p183 = por %p181, %p182
      %p184 = scmp.ne.s32.totalorder %s172, %s173
      %p185 = scmp.eq.s32.totalorder %s32, 1
      %p186 = por %p184, %p185
      %p188 = scmp.ne.s32.totalorder %s173, %s187
      %p189 = scmp.eq.s32.totalorder %s32, 0
      %p190 = por %p188, %p189
      %s192 = sadd.s32 %s191, 1
      %p195 = scmp.eq.s32.totalorder %s26, 1
      %p196 = scmp.ne.s32.totalorder %s191, %s193
      %p197 = scmp.eq.s32.totalorder %s26, 0
      %p198 = por %p196, %p197
      %p199 = scmp.ne.s32.totalorder %s191, %s193
      %p200 = scmp.eq.s32.totalorder %s31, 1
      %p201 = por %p199, %p200
      %p202 = scmp.ne.s32.totalorder %s193, %s194
      %p203 = scmp.eq.s32.totalorder %s31, 0
      %p204 = por %p202, %p203
      %p205 = scmp.ne.s32.totalorder %s193, %s194
      %p206 = scmp.eq.s32.totalorder %s32, 1
      %p207 = por %p205, %p206
      %p209 = scmp.ne.s32.totalorder %s194, %s208
      %p210 = scmp.eq.s32.totalorder %s32, 0
      %p211 = por %p209, %p210
      %s213 = sadd.s32 %s212, 1
      %p216 = scmp.eq.s32.totalorder %s26, 1
      %p217 = scmp.ne.s32.totalorder %s212, %s214
      %p218 = scmp.eq.s32.totalorder %s26, 0
      %p219 = por %p217, %p218
      %p220 = scmp.ne.s32.totalorder %s212, %s214
      %p221 = scmp.eq.s32.totalorder %s31, 1
      %p222 = por %p220, %p221
      %p223 = scmp.ne.s32.totalorder %s214, %s215
      %p224 = scmp.eq.s32.totalorder %s31, 0
      %p225 = por %p223, %p224
      %p226 = scmp.ne.s32.totalorder %s214, %s215
      %p227 = scmp.eq.s32.totalorder %s32, 1
      %p228 = por %p226, %p227
      %p230 = scmp.ne.s32.totalorder %s215, %s229
      %p231 = scmp.eq.s32.totalorder %s32, 0
      %p232 = por %p230, %p231
      %s233 = ssub.s32 %s26, %s33
      %p234 = scmp.eq.s32.totalorder %s233, 0
      %s236 = sadd.s32 %s235, 1
      %s237 = scalar_select %p234, %s235, %s236
      %p240 = pneg %p234
      %p241 = scmp.eq.s32.totalorder %s26, 1
      %p242 = por %p240, %p241
      %p243 = scmp.ne.s32.totalorder %s235, %s238
      %p244 = scmp.eq.s32.totalorder %s26, 0
      %p245 = por %p243, %p244
      %p246 = scmp.ne.s32.totalorder %s235, %s238
      %p247 = scmp.eq.s32.totalorder %s31, 1
      %p248 = por %p246, %p247
      %p249 = scmp.ne.s32.totalorder %s238, %s239
      %p250 = scmp.eq.s32.totalorder %s31, 0
      %p251 = por %p249, %p250
      %p252 = scmp.ne.s32.totalorder %s238, %s239
      %p253 = scmp.eq.s32.totalorder %s32, 1
      %p254 = por %p252, %p253
      %p256 = scmp.ne.s32.totalorder %s239, %s255
      %p257 = scmp.eq.s32.totalorder %s32, 0
      %p258 = por %p256, %p257
      %p259 = scmp.le.s32.totalorder 1, %s26
      %p260 = scmp.lt.s32.totalorder %s26, 3
      %p261 = pnand %p259, %p260
      %p262 = pneg %p261
      // Predicated region
      $region9: #{tpu_custom_call.1} parent=5 // pred_check
        _
      $region10: #{tpu_custom_call.1} parent=5 // pred_check_branch
        %264 = sbr.rel (%p261) target = $region12
      $region11: #{tpu_custom_call.1} parent=5 // pred_region
        %s265 = ssub.s32 %s26, 1
        // Predicated region
        $region13: #{tpu_custom_call.1} parent=11 // pred_check
          %p266 = pneg %p99
        $region14: #{tpu_custom_call.1} parent=11 // pred_check_branch
          %268 = sbr.rel (%p266) target = $region16
        $region15: #{tpu_custom_call.1} parent=11 // pred_region
          %s270 = ssub.s32 2048, 2048
          %271 = vsyncadd [#allocation6], %s270
          %s272 = sshll.u32 [#allocation7], 4
          %s273 = int_to_ptr.vmem [resolvable:$true] %s272
          %278 = dma.hbm_to_vmem [thread:$0]  %s2, 2048, %s273, [#allocation6], 128, 128, 8
        $region16: #{tpu_custom_call.1} parent=11 // pred_fallthru
          _
        // Predicated region
        $region17: #{tpu_custom_call.1} parent=11 // pred_check
          %p279 = pneg %p120
        $region18: #{tpu_custom_call.1} parent=11 // pred_check_branch
          %281 = sbr.rel (%p279) target = $region20
        $region19: #{tpu_custom_call.1} parent=11 // pred_region
          %s283 = ssub.s32 1024, 1024
          %284 = vsyncadd [#allocation9], %s283
          %s285 = sshll.u32 [#allocation8], 4
          %s286 = int_to_ptr.vmem [resolvable:$true] %s285
          %291 = dma.hbm_to_vmem [thread:$0]  %s3, 1024, %s286, [#allocation9], 256, 256, 16
        $region20: #{tpu_custom_call.1} parent=11 // pred_fallthru
          _
        // Predicated region
        $region21: #{tpu_custom_call.1} parent=11 // pred_check
          %p292 = pneg %p141
        $region22: #{tpu_custom_call.1} parent=11 // pred_check_branch
          %294 = sbr.rel (%p292) target = $region24
        $region23: #{tpu_custom_call.1} parent=11 // pred_region
          _
        $region24: #{tpu_custom_call.1} parent=11 // pred_fallthru
          _
        // Predicated region
        $region25: #{tpu_custom_call.1} parent=11 // pred_check
          %p295 = pneg %p162
        $region26: #{tpu_custom_call.1} parent=11 // pred_check_branch
          %297 = sbr.rel (%p295) target = $region28
        $region27: #{tpu_custom_call.1} parent=11 // pred_region
          %s299 = ssub.s32 3072, 3072
          %300 = vsyncadd [#allocation9], %s299
          %s301 = sshll.u32 [#allocation10], 4
          %s302 = int_to_ptr.vmem [resolvable:$true] %s301
          %307 = dma.hbm_to_vmem [thread:$0]  %s5, 3072, %s302, [#allocation9], 192, 192, 12
        $region28: #{tpu_custom_call.1} parent=11 // pred_fallthru
          _
        // Predicated region
        $region29: #{tpu_custom_call.1} parent=11 // pred_check
          %p308 = pneg %p183
        $region30: #{tpu_custom_call.1} parent=11 // pred_check_branch
          %310 = sbr.rel (%p308) target = $region32
        $region31: #{tpu_custom_call.1} parent=11 // pred_region
          _
        $region32: #{tpu_custom_call.1} parent=11 // pred_fallthru
          _
        // Predicated region
        $region33: #{tpu_custom_call.1} parent=11 // pred_check
          %p311 = pneg %p204
        $region34: #{tpu_custom_call.1} parent=11 // pred_check_branch
          %313 = sbr.rel (%p311) target = $region36
        $region35: #{tpu_custom_call.1} parent=11 // pred_region
          %s315 = ssub.s32 1024, 1024
          %316 = vsyncadd [#allocation12], %s315
          %s317 = sshll.u32 [#allocation11], 4
          %s318 = int_to_ptr.vmem [resolvable:$true] %s317
          %323 = dma.hbm_to_vmem [thread:$0]  %s7, 1024, %s318, [#allocation12], 64, 64, 4
        $region36: #{tpu_custom_call.1} parent=11 // pred_fallthru
          _
        // Predicated region
        $region37: #{tpu_custom_call.1} parent=11 // pred_check
          %p324 = pneg %p225
        $region38: #{tpu_custom_call.1} parent=11 // pred_check_branch
          %326 = sbr.rel (%p324) target = $region40
        $region39: #{tpu_custom_call.1} parent=11 // pred_region
          _
        $region40: #{tpu_custom_call.1} parent=11 // pred_fallthru
          _
      $region12: #{tpu_custom_call.1} parent=5 // pred_fallthru
        _
      %p327 = scmp.lt.s32.totalorder %s26, 2
      // Predicated region
      $region41: #{tpu_custom_call.1} parent=5 // pred_check
        %p328 = pneg %p327
      $region42: #{tpu_custom_call.1} parent=5 // pred_check_branch
        %330 = sbr.rel (%p328) target = $region44
      $region43: #{tpu_custom_call.1} parent=5 // pred_region
        // Predicated region
        $region45: #{tpu_custom_call.1} parent=43 // pred_check
          %p331 = pneg %p46
        $region46: #{tpu_custom_call.1} parent=43 // pred_check_branch
          %333 = sbr.rel (%p331) target = $region48
        $region47: #{tpu_custom_call.1} parent=43 // pred_region
          %s334 = sand.u32 %s36, 1
          %s335 = scalar_lea.sflag [#allocation3], %s334
          %s336 = sand.u32 %s36, 1
          %s337 = scalar_lea.vmem [#allocation2], %s336
          %s339 = ssub.s32 16, 16
          %340 = vsyncadd %s335, %s339
          %s341 = smul.addr %s26, 16
          %s342 = scalar_lea.hbm %s0, %s341
          %s344 = sshll.u32 %s337, 4
          %s345 = int_to_ptr.vmem [resolvable:$true] %s344
          %347 = dma.hbm_to_vmem [thread:$0]  %s342, 16, %s345, %s335
        $region48: #{tpu_custom_call.1} parent=43 // pred_fallthru
          _
        // Predicated region
        $region49: #{tpu_custom_call.1} parent=43 // pred_check
          %p348 = pneg %p72
        $region50: #{tpu_custom_call.1} parent=43 // pred_check_branch
          %350 = sbr.rel (%p348) target = $region52
        $region51: #{tpu_custom_call.1} parent=43 // pred_region
          %s351 = sand.u32 %s26, 1
          %s352 = scalar_lea.sflag [#allocation6], %s351
          %s353 = sand.u32 %s62, 1
          %s354 = smul.addr %s353, 256
          %s355 = scalar_lea.vmem [#allocation5], %s354
          %s357 = ssub.s32 4096, 4096
          %358 = vsyncadd %s352, %s357
          %s359 = smul.addr %s26, 32
          %s360 = smul.addr %s359, 128
          %s361 = scalar_lea.hbm %s1, %s360
          %s362 = sshll.u32 %s355, 4
          %s363 = int_to_ptr.vmem [resolvable:$true] %s362
          %368 = dma.hbm_to_vmem [thread:$0]  %s361, 4096, %s363, %s352, 128, 128, 8
        $region52: #{tpu_custom_call.1} parent=43 // pred_fallthru
          _
      $region44: #{tpu_custom_call.1} parent=5 // pred_fallthru
        _
      %p369 = scmp.le.s32.totalorder 1, %s26
      %p370 = scmp.lt.s32.totalorder %s26, 3
      %p371 = pnand %p369, %p370
      %p372 = pneg %p371
      // Predicated region
      $region53: #{tpu_custom_call.1} parent=5 // pred_check
        _
      $region54: #{tpu_custom_call.1} parent=5 // pred_check_branch
        %374 = sbr.rel (%p371) target = $region56
      $region55: #{tpu_custom_call.1} parent=5 // pred_region
        %s375 = ssub.s32 %s26, 1
        %s376 = sand.u32 %s39, 1
        %s377 = scalar_lea.sflag [#allocation3], %s376
        %s378 = sand.u32 %s39, 1
        %s379 = scalar_lea.vmem [#allocation2], %s378
        // Predicated region
        $region57: #{tpu_custom_call.1} parent=55 // pred_check
          %p380 = pneg %p52
        $region58: #{tpu_custom_call.1} parent=55 // pred_check_branch
          %382 = sbr.rel (%p380) target = $region60
        $region59: #{tpu_custom_call.1} parent=55 // pred_region
          %383 = dma.done %s377, 16
        $region60: #{tpu_custom_call.1} parent=55 // pred_fallthru
          _
        %s384 = sand.u32 %s31, 1
        %s385 = scalar_lea.sflag [#allocation6], %s384
        %s386 = sand.u32 %s65, 1
        %s387 = smul.addr %s386, 256
        %s388 = scalar_lea.vmem [#allocation5], %s387
        // Predicated region
        $region61: #{tpu_custom_call.1} parent=55 // pred_check
          %p389 = pneg %p78
        $region62: #{tpu_custom_call.1} parent=55 // pred_check_branch
          %391 = sbr.rel (%p389) target = $region64
        $region63: #{tpu_custom_call.1} parent=55 // pred_region
          %392 = dma.done %s385, 4096
        $region64: #{tpu_custom_call.1} parent=55 // pred_fallthru
          _
        // Predicated region
        $region65: #{tpu_custom_call.1} parent=55 // pred_check
          %p393 = pneg %p99
        $region66: #{tpu_custom_call.1} parent=55 // pred_check_branch
          %395 = sbr.rel (%p393) target = $region68
        $region67: #{tpu_custom_call.1} parent=55 // pred_region
          %396 = dma.done [#allocation6], 2048
        $region68: #{tpu_custom_call.1} parent=55 // pred_fallthru
          _
        // Predicated region
        $region69: #{tpu_custom_call.1} parent=55 // pred_check
          %p397 = pneg %p120
        $region70: #{tpu_custom_call.1} parent=55 // pred_check_branch
          %399 = sbr.rel (%p397) target = $region72
        $region71: #{tpu_custom_call.1} parent=55 // pred_region
          %400 = dma.done [#allocation9], 1024
        $region72: #{tpu_custom_call.1} parent=55 // pred_fallthru
          _
        // Predicated region
        $region73: #{tpu_custom_call.1} parent=55 // pred_check
          %p401 = pneg %p162
        $region74: #{tpu_custom_call.1} parent=55 // pred_check_branch
          %403 = sbr.rel (%p401) target = $region76
        $region75: #{tpu_custom_call.1} parent=55 // pred_region
          %404 = dma.done [#allocation9], 3072
        $region76: #{tpu_custom_call.1} parent=55 // pred_fallthru
          _
        // Predicated region
        $region77: #{tpu_custom_call.1} parent=55 // pred_check
          %p405 = pneg %p204
        $region78: #{tpu_custom_call.1} parent=55 // pred_check_branch
          %407 = sbr.rel (%p405) target = $region80
        $region79: #{tpu_custom_call.1} parent=55 // pred_region
          %408 = dma.done [#allocation12], 1024
        $region80: #{tpu_custom_call.1} parent=55 // pred_fallthru
          _
        %s409 = sand.u32 %s39, 1
        %s410 = scalar_lea.sflag [#allocation3], %s409
        %s411 = sand.u32 %s39, 1
        %s412 = scalar_lea.vmem [#allocation2], %s411
        %p413 = pneg %p52
        %p414 = pneg %p49
        %s415 = sand.u32 %s31, 1
        %s416 = scalar_lea.sflag [#allocation6], %s415
        %s417 = sand.u32 %s65, 1
        %s418 = smul.addr %s417, 256
        %s419 = scalar_lea.vmem [#allocation5], %s418
        %p420 = pneg %p78
        %p421 = pneg %p75
        %p422 = pneg %p99
        %p423 = pneg %p96
        %p424 = pneg %p120
        %p425 = pneg %p117
        %p426 = pneg %p141
        %p427 = pneg %p138
        %p428 = pneg %p162
        %p429 = pneg %p159
        %p430 = pneg %p183
        %p431 = pneg %p180
        %p432 = pneg %p204
        %p433 = pneg %p201
        %p434 = pneg %p225
        %p435 = pneg %p222
        %p436 = pneg %p251
        %p437 = pneg %p248
        %s438 = sand.u32 %s238, 1
        %s439 = scalar_lea.sflag [#allocation4], %s438
        %s440 = sand.u32 %s238, 1
        %s441 = smul.addr %s440, 256
        %s442 = scalar_lea.vmem [#allocation13], %s441
        %v444 = vld [vmem:[%s388] sm:$0xff]
        %v445 = vld [vmem:[%s388 + $0x8] sm:$0xff]
        %v446 = vld [vmem:[%s388 + $0x10] sm:$0xff]
        %v447 = vld [vmem:[%s388 + $0x18] sm:$0xff]
        %v448 = vld [vmem:[%s388 + $0x20] sm:$0xff]
        %v449 = vld [vmem:[%s388 + $0x28] sm:$0xff]
        %v450 = vld [vmem:[%s388 + $0x30] sm:$0xff]
        %v451 = vld [vmem:[%s388 + $0x38] sm:$0xff]
        %v452 = vld [vmem:[%s388 + $0x40] sm:$0xff]
        %v453 = vld [vmem:[%s388 + $0x48] sm:$0xff]
        %v454 = vld [vmem:[%s388 + $0x50] sm:$0xff]
        %v455 = vld [vmem:[%s388 + $0x58] sm:$0xff]
        %v456 = vld [vmem:[%s388 + $0x60] sm:$0xff]
        %v457 = vld [vmem:[%s388 + $0x68] sm:$0xff]
        %v458 = vld [vmem:[%s388 + $0x70] sm:$0xff]
        %v459 = vld [vmem:[%s388 + $0x78] sm:$0xff]
        %v460 = vld [vmem:[%s388 + $0x80] sm:$0xff]
        %v461 = vld [vmem:[%s388 + $0x88] sm:$0xff]
        %v462 = vld [vmem:[%s388 + $0x90] sm:$0xff]
        %v463 = vld [vmem:[%s388 + $0x98] sm:$0xff]
        %v464 = vld [vmem:[%s388 + $0xa0] sm:$0xff]
        %v465 = vld [vmem:[%s388 + $0xa8] sm:$0xff]
        %v466 = vld [vmem:[%s388 + $0xb0] sm:$0xff]
        %v467 = vld [vmem:[%s388 + $0xb8] sm:$0xff]
        %v468 = vld [vmem:[%s388 + $0xc0] sm:$0xff]
        %v469 = vld [vmem:[%s388 + $0xc8] sm:$0xff]
        %v470 = vld [vmem:[%s388 + $0xd0] sm:$0xff]
        %v471 = vld [vmem:[%s388 + $0xd8] sm:$0xff]
        %v472 = vld [vmem:[%s388 + $0xe0] sm:$0xff]
        %v473 = vld [vmem:[%s388 + $0xe8] sm:$0xff]
        %v474 = vld [vmem:[%s388 + $0xf0] sm:$0xff]
        %v475 = vld [vmem:[%s388 + $0xf8] sm:$0xff]
        %v476 = vld [vmem:[%s379] sm:$0x1]
        %v477 = vld [vmem:[#allocation8] sm:$0xff]
        %v478 = vld [vmem:[#allocation8 + $0x8] sm:$0xff]
        %v479 = vld [vmem:[#allocation8 + $0x10] sm:$0xff]
        %v480 = vld [vmem:[#allocation8 + $0x18] sm:$0xff]
        %v481 = vld [vmem:[#allocation8 + $0x20] sm:$0xff]
        %v482 = vld [vmem:[#allocation8 + $0x28] sm:$0xff]
        %v483 = vld [vmem:[#allocation8 + $0x30] sm:$0xff]
        %v484 = vld [vmem:[#allocation8 + $0x38] sm:$0xff]
        %v485 = vld [vmem:[%s4] sm:$0x3]
        %v487 = vlaneseq
        %v488 = vshrl.u32 %v487, 7
        %v489 = vsub.s32 0, %v488
        %v490 = vrot.slane %v485, %v489
        %v491 = vlaneseq
        %v492 = vshrl.u32 %v491, 7
        %v493 = vsub.s32 1, %v492
        %v494 = vrot.slane %v485, %v493
        %vm497 = vcmask 261120
        %v499 = vsel %vm497, %v476, 0
        %501 = vmatprep.subr.mxu0 0.0
        %502 = vmatpush1.msra.mxu0 0.0
        %503 = vmatprep.subr.mxu0 0.0
        %504 = vmatpush1.msra.mxu0 0.0
        %505 = vmatprep.subr.mxu0 0.0
        %506 = vmatpush1.msra.mxu0 0.0
        %507 = vmatprep.subr.mxu0 0.0
        %508 = vmatpush1.msra.mxu0 0.0
        %509 = vmatprep.subr.mxu0 0.0
        %510 = vmatpush1.msra.mxu0 0.0
        %511 = vmatprep.subr.mxu0 0.0
        %512 = vmatpush1.msra.mxu0 0.0
        %513 = vmatprep.subr.mxu0 0.0
        %514 = vmatpush1.msra.mxu0 0.0
        %515 = vmatprep.subr.mxu0 0.0
        %516 = vmatpush1.msra.mxu0 0.0
        %517 = vmatprep.subr.mxu0 0.0
        %518 = vmatpush1.msra.mxu0 0.0
        %519 = vmatprep.subr.mxu0 0.0
        %520 = vmatpush1.msra.mxu0 0.0
        %521 = vmatprep.subr.mxu0 0.0
        %522 = vmatpush1.msra.mxu0 0.0
        %523 = vmatprep.subr.mxu0 0.0
        %524 = vmatpush1.msra.mxu0 0.0
        %525 = vmatprep.subr.mxu0 %v484
        %526 = vmatpush1.msra.mxu0 %v483
        %527 = vmatprep.subr.mxu0 %v482
        %528 = vmatpush1.msra.mxu0 %v481
        %529 = vmatprep.subr.mxu0 %v480
        %530 = vmatpush1.msra.mxu0 %v479
        %531 = vmatprep.subr.mxu0 %v478
        %532 = vmatpush1.msra.mxu0 %v477
        %533 = vmatprep.subr.mxu0 0.0
        %534 = vmatpush2.msra.mxu0 0.0
        %535 = vmatprep.subr.mxu0 0.0
        %536 = vmatpush2.msra.mxu0 0.0
        %537 = vmatprep.subr.mxu0 0.0
        %538 = vmatpush2.msra.mxu0 0.0
        %539 = vmatprep.subr.mxu0 0.0
        %540 = vmatpush2.msra.mxu0 0.0
        %541 = vmatprep.subr.mxu0 0.0
        %542 = vmatpush2.msra.mxu0 0.0
        %543 = vmatprep.subr.mxu0 0.0
        %544 = vmatpush2.msra.mxu0 0.0
        %545 = vmatprep.subr.mxu0 0.0
        %546 = vmatpush2.msra.mxu0 0.0
        %547 = vmatprep.subr.mxu0 0.0
        %548 = vmatpush2.msra.mxu0 0.0
        %549 = vmatprep.subr.mxu0 0.0
        %550 = vmatpush2.msra.mxu0 0.0
        %551 = vmatprep.subr.mxu0 0.0
        %552 = vmatpush2.msra.mxu0 0.0
        %553 = vmatprep.subr.mxu0 0.0
        %554 = vmatpush2.msra.mxu0 0.0
        %555 = vmatprep.subr.mxu0 0.0
        %556 = vmatpush2.msra.mxu0 0.0
        %557 = vmatprep.subr.mxu0 0.0
        %558 = vmatpush2.msra.mxu0 0.0
        %559 = vmatprep.subr.mxu0 0.0
        %560 = vmatpush2.msra.mxu0 0.0
        %561 = vmatprep.subr.mxu0 0.0
        %562 = vmatpush2.msra.mxu0 0.0
        %563 = vmatprep.subr.mxu0 0.0
        %564 = vmatpush2.msra.mxu0 0.0
        %565 = vmatprep.mubr.f32.mxu0 0.0
        %566 = vmatmul.mubr.f32.gmra.mxu0 %v499
        %v567 = vpop.f32.mrf.mxu0
        %v568 = vadd.f32 %v490, %v567
        %v569 = vpop.f32.mrf.mxu0
        %v570 = vadd.f32 %v494, %v569
        %571 = vdwg.mxu0
        %572 = vmatprep.subr.mxu0 0.0
        %573 = vmatpush1.msra.mxu0 %v459
        %574 = vmatprep.subr.mxu0 0.0
        %575 = vmatpush1.msra.mxu0 %v458
        %576 = vmatprep.subr.mxu0 0.0
        %577 = vmatpush1.msra.mxu0 %v457
        %578 = vmatprep.subr.mxu0 0.0
        %579 = vmatpush1.msra.mxu0 %v456
        %580 = vmatprep.subr.mxu0 0.0
        %581 = vmatpush1.msra.mxu0 %v455
        %582 = vmatprep.subr.mxu0 0.0
        %583 = vmatpush1.msra.mxu0 %v454
        %584 = vmatprep.subr.mxu0 0.0
        %585 = vmatpush1.msra.mxu0 %v453
        %586 = vmatprep.subr.mxu0 0.0
        %587 = vmatpush1.msra.mxu0 %v452
        %588 = vmatprep.subr.mxu0 0.0
        %589 = vmatpush1.msra.mxu0 %v451
        %590 = vmatprep.subr.mxu0 0.0
        %591 = vmatpush1.msra.mxu0 %v450
        %592 = vmatprep.subr.mxu0 0.0
        %593 = vmatpush1.msra.mxu0 %v449
        %594 = vmatprep.subr.mxu0 0.0
        %595 = vmatpush1.msra.mxu0 %v448
        %596 = vmatprep.subr.mxu0 0.0
        %597 = vmatpush1.msra.mxu0 %v447
        %598 = vmatprep.subr.mxu0 0.0
        %599 = vmatpush1.msra.mxu0 %v446
        %600 = vmatprep.subr.mxu0 0.0
        %601 = vmatpush1.msra.mxu0 %v445
        %602 = vmatprep.subr.mxu0 0.0
        %603 = vmatpush1.msra.mxu0 %v444
        %604 = vmatprep.subr.mxu0 0.0
        %605 = vmatpush2.msra.mxu0 %v475
        %606 = vmatprep.subr.mxu0 0.0
        %607 = vmatpush2.msra.mxu0 %v474
        %608 = vmatprep.subr.mxu0 0.0
        %609 = vmatpush2.msra.mxu0 %v473
        %610 = vmatprep.subr.mxu0 0.0
        %611 = vmatpush2.msra.mxu0 %v472
        %612 = vmatprep.subr.mxu0 0.0
        %613 = vmatpush2.msra.mxu0 %v471
        %614 = vmatprep.subr.mxu0 0.0
        %615 = vmatpush2.msra.mxu0 %v470
        %616 = vmatprep.subr.mxu0 0.0
        %617 = vmatpush2.msra.mxu0 %v469
        %618 = vmatprep.subr.mxu0 0.0
        %619 = vmatpush2.msra.mxu0 %v468
        %620 = vmatprep.subr.mxu0 0.0
        %621 = vmatpush2.msra.mxu0 %v467
        %622 = vmatprep.subr.mxu0 0.0
        %623 = vmatpush2.msra.mxu0 %v466
        %624 = vmatprep.subr.mxu0 0.0
        %625 = vmatpush2.msra.mxu0 %v465
        %626 = vmatprep.subr.mxu0 0.0
        %627 = vmatpush2.msra.mxu0 %v464
        %628 = vmatprep.subr.mxu0 0.0
        %629 = vmatpush2.msra.mxu0 %v463
        %630 = vmatprep.subr.mxu0 0.0
        %631 = vmatpush2.msra.mxu0 %v462
        %632 = vmatprep.subr.mxu0 0.0
        %633 = vmatpush2.msra.mxu0 %v461
        %634 = vmatprep.subr.mxu0 0.0
        %635 = vmatpush2.msra.mxu0 %v460
        %636 = vmatprep.mubr.f32.mxu0 1.0
        %637 = vmatmul.mubr.f32.gmra.mxu0 1.0
        %v638 = vpop.f32.mrf.mxu0
        %v639 = vadd.f32 0.0, %v638
        %v640 = vpop.f32.mrf.mxu0
        %641 = vdwg.mxu0
        %v642 = vmul.f32 %v444, %v444
        %v643 = vmul.f32 %v445, %v445
        %v644 = vmul.f32 %v446, %v446
        %v645 = vmul.f32 %v447, %v447
        %v646 = vmul.f32 %v448, %v448
        %v647 = vmul.f32 %v449, %v449
        %v648 = vmul.f32 %v450, %v450
        %v649 = vmul.f32 %v451, %v451
        %v650 = vmul.f32 %v452, %v452
        %v651 = vmul.f32 %v453, %v453
        %v652 = vmul.f32 %v454, %v454
        %v653 = vmul.f32 %v455, %v455
        %v654 = vmul.f32 %v456, %v456
        %v655 = vmul.f32 %v457, %v457
        %v656 = vmul.f32 %v458, %v458
        %v657 = vmul.f32 %v459, %v459
        %v658 = vmul.f32 %v460, %v460
        %v659 = vmul.f32 %v461, %v461
        %v660 = vmul.f32 %v462, %v462
        %v661 = vmul.f32 %v463, %v463
        %v662 = vmul.f32 %v464, %v464
        %v663 = vmul.f32 %v465, %v465
        %v664 = vmul.f32 %v466, %v466
        %v665 = vmul.f32 %v467, %v467
        %v666 = vmul.f32 %v468, %v468
        %v667 = vmul.f32 %v469, %v469
        %v668 = vmul.f32 %v470, %v470
        %v669 = vmul.f32 %v471, %v471
        %v670 = vmul.f32 %v472, %v472
        %v671 = vmul.f32 %v473, %v473
        %v672 = vmul.f32 %v474, %v474
        %v673 = vmul.f32 %v475, %v475
        %674 = vmatprep.subr.mxu0 0.0
        %675 = vmatpush1.msra.mxu0 %v657
        %676 = vmatprep.subr.mxu0 0.0
        %677 = vmatpush1.msra.mxu0 %v656
        %678 = vmatprep.subr.mxu0 0.0
        %679 = vmatpush1.msra.mxu0 %v655
        %680 = vmatprep.subr.mxu0 0.0
        %681 = vmatpush1.msra.mxu0 %v654
        %682 = vmatprep.subr.mxu0 0.0
        %683 = vmatpush1.msra.mxu0 %v653
        %684 = vmatprep.subr.mxu0 0.0
        %685 = vmatpush1.msra.mxu0 %v652
        %686 = vmatprep.subr.mxu0 0.0
        %687 = vmatpush1.msra.mxu0 %v651
        %688 = vmatprep.subr.mxu0 0.0
        %689 = vmatpush1.msra.mxu0 %v650
        %690 = vmatprep.subr.mxu0 0.0
        %691 = vmatpush1.msra.mxu0 %v649
        %692 = vmatprep.subr.mxu0 0.0
        %693 = vmatpush1.msra.mxu0 %v648
        %694 = vmatprep.subr.mxu0 0.0
        %695 = vmatpush1.msra.mxu0 %v647
        %696 = vmatprep.subr.mxu0 0.0
        %697 = vmatpush1.msra.mxu0 %v646
        %698 = vmatprep.subr.mxu0 0.0
        %699 = vmatpush1.msra.mxu0 %v645
        %700 = vmatprep.subr.mxu0 0.0
        %701 = vmatpush1.msra.mxu0 %v644
        %702 = vmatprep.subr.mxu0 0.0
        %703 = vmatpush1.msra.mxu0 %v643
        %704 = vmatprep.subr.mxu0 0.0
        %705 = vmatpush1.msra.mxu0 %v642
        %706 = vmatprep.subr.mxu0 0.0
        %707 = vmatpush2.msra.mxu0 %v673
        %708 = vmatprep.subr.mxu0 0.0
        %709 = vmatpush2.msra.mxu0 %v672
        %710 = vmatprep.subr.mxu0 0.0
        %711 = vmatpush2.msra.mxu0 %v671
        %712 = vmatprep.subr.mxu0 0.0
        %713 = vmatpush2.msra.mxu0 %v670
        %714 = vmatprep.subr.mxu0 0.0
        %715 = vmatpush2.msra.mxu0 %v669
        %716 = vmatprep.subr.mxu0 0.0
        %717 = vmatpush2.msra.mxu0 %v668
        %718 = vmatprep.subr.mxu0 0.0
        %719 = vmatpush2.msra.mxu0 %v667
        %720 = vmatprep.subr.mxu0 0.0
        %721 = vmatpush2.msra.mxu0 %v666
        %722 = vmatprep.subr.mxu0 0.0
        %723 = vmatpush2.msra.mxu0 %v665
        %724 = vmatprep.subr.mxu0 0.0
        %725 = vmatpush2.msra.mxu0 %v664
        %726 = vmatprep.subr.mxu0 0.0
        %727 = vmatpush2.msra.mxu0 %v663
        %728 = vmatprep.subr.mxu0 0.0
        %729 = vmatpush2.msra.mxu0 %v662
        %730 = vmatprep.subr.mxu0 0.0
        %731 = vmatpush2.msra.mxu0 %v661
        %732 = vmatprep.subr.mxu0 0.0
        %733 = vmatpush2.msra.mxu0 %v660
        %734 = vmatprep.subr.mxu0 0.0
        %735 = vmatpush2.msra.mxu0 %v659
        %736 = vmatprep.subr.mxu0 0.0
        %737 = vmatpush2.msra.mxu0 %v658
        %738 = vmatprep.mubr.f32.mxu0 1.0
        %739 = vmatmul.mubr.f32.gmra.mxu0 1.0
        %v740 = vpop.f32.mrf.mxu0
        %v741 = vadd.f32 0.0, %v740
        %v742 = vpop.f32.mrf.mxu0
        %743 = vdwg.mxu0
        %v744 = vld [vmem:[#allocation7] sm:$0xff]
        %v745 = vld [vmem:[#allocation7 + $0x8] sm:$0xff]
        %v746 = vld [vmem:[#allocation7 + $0x10] sm:$0xff]
        %v747 = vld [vmem:[#allocation7 + $0x18] sm:$0xff]
        %v748 = vld [vmem:[#allocation7 + $0x20] sm:$0xff]
        %v749 = vld [vmem:[#allocation7 + $0x28] sm:$0xff]
        %v750 = vld [vmem:[#allocation7 + $0x30] sm:$0xff]
        %v751 = vld [vmem:[#allocation7 + $0x38] sm:$0xff]
        %v752 = vld [vmem:[#allocation7 + $0x40] sm:$0xff]
        %v753 = vld [vmem:[#allocation7 + $0x48] sm:$0xff]
        %v754 = vld [vmem:[#allocation7 + $0x50] sm:$0xff]
        %v755 = vld [vmem:[#allocation7 + $0x58] sm:$0xff]
        %v756 = vld [vmem:[#allocation7 + $0x60] sm:$0xff]
        %v757 = vld [vmem:[#allocation7 + $0x68] sm:$0xff]
        %v758 = vld [vmem:[#allocation7 + $0x70] sm:$0xff]
        %v759 = vld [vmem:[#allocation7 + $0x78] sm:$0xff]
        %760 = vmatprep.subr.mxu0 0.0
        %761 = vmatpush1.msra.mxu0 %v759
        %762 = vmatprep.subr.mxu0 0.0
        %763 = vmatpush1.msra.mxu0 %v758
        %764 = vmatprep.subr.mxu0 0.0
        %765 = vmatpush1.msra.mxu0 %v757
        %766 = vmatprep.subr.mxu0 0.0
        %767 = vmatpush1.msra.mxu0 %v756
        %768 = vmatprep.subr.mxu0 0.0
        %769 = vmatpush1.msra.mxu0 %v755
        %770 = vmatprep.subr.mxu0 0.0
        %771 = vmatpush1.msra.mxu0 %v754
        %772 = vmatprep.subr.mxu0 0.0
        %773 = vmatpush1.msra.mxu0 %v753
        %774 = vmatprep.subr.mxu0 0.0
        %775 = vmatpush1.msra.mxu0 %v752
        %776 = vmatprep.subr.mxu0 0.0
        %777 = vmatpush1.msra.mxu0 %v751
        %778 = vmatprep.subr.mxu0 0.0
        %779 = vmatpush1.msra.mxu0 %v750
        %780 = vmatprep.subr.mxu0 0.0
        %781 = vmatpush1.msra.mxu0 %v749
        %782 = vmatprep.subr.mxu0 0.0
        %783 = vmatpush1.msra.mxu0 %v748
        %784 = vmatprep.subr.mxu0 0.0
        %785 = vmatpush1.msra.mxu0 %v747
        %786 = vmatprep.subr.mxu0 0.0
        %787 = vmatpush1.msra.mxu0 %v746
        %788 = vmatprep.subr.mxu0 0.0
        %789 = vmatpush1.msra.mxu0 %v745
        %790 = vmatprep.subr.mxu0 0.0
        %791 = vmatpush1.msra.mxu0 %v744
        %792 = vmatprep.subr.mxu0 0.0
        %793 = vmatpush2.msra.mxu0 0.0
        %794 = vmatprep.subr.mxu0 0.0
        %795 = vmatpush2.msra.mxu0 0.0
        %796 = vmatprep.subr.mxu0 0.0
        %797 = vmatpush2.msra.mxu0 0.0
        %798 = vmatprep.subr.mxu0 0.0
        %799 = vmatpush2.msra.mxu0 0.0
        %800 = vmatprep.subr.mxu0 0.0
        %801 = vmatpush2.msra.mxu0 0.0
        %802 = vmatprep.subr.mxu0 0.0
        %803 = vmatpush2.msra.mxu0 0.0
        %804 = vmatprep.subr.mxu0 0.0
        %805 = vmatpush2.msra.mxu0 0.0
        %806 = vmatprep.subr.mxu0 0.0
        %807 = vmatpush2.msra.mxu0 0.0
        %808 = vmatprep.subr.mxu0 0.0
        %809 = vmatpush2.msra.mxu0 0.0
        %810 = vmatprep.subr.mxu0 0.0
        %811 = vmatpush2.msra.mxu0 0.0
        %812 = vmatprep.subr.mxu0 0.0
        %813 = vmatpush2.msra.mxu0 0.0
        %814 = vmatprep.subr.mxu0 0.0
        %815 = vmatpush2.msra.mxu0 0.0
        %816 = vmatprep.subr.mxu0 0.0
        %817 = vmatpush2.msra.mxu0 0.0
        %818 = vmatprep.subr.mxu0 0.0
        %819 = vmatpush2.msra.mxu0 0.0
        %820 = vmatprep.subr.mxu0 0.0
        %821 = vmatpush2.msra.mxu0 0.0
        %822 = vmatprep.subr.mxu0 0.0
        %823 = vmatpush2.msra.mxu0 0.0
        %824 = vmatprep.mubr.f32.mxu0 0.0
        %825 = vmatmul.mubr.f32.gmra.mxu0 %v639
        %v826 = vpop.f32.mrf.mxu0
        %v827 = vadd.f32 0.0, %v826
        %v828 = vpop.f32.mrf.mxu0
        %829 = vdwg.mxu0
        %830 = vmatprep.subr.mxu0 0.0
        %831 = vmatpush1.msra.mxu0 %v759
        %832 = vmatprep.subr.mxu0 0.0
        %833 = vmatpush1.msra.mxu0 %v758
        %834 = vmatprep.subr.mxu0 0.0
        %835 = vmatpush1.msra.mxu0 %v757
        %836 = vmatprep.subr.mxu0 0.0
        %837 = vmatpush1.msra.mxu0 %v756
        %838 = vmatprep.subr.mxu0 0.0
        %839 = vmatpush1.msra.mxu0 %v755
        %840 = vmatprep.subr.mxu0 0.0
        %841 = vmatpush1.msra.mxu0 %v754
        %842 = vmatprep.subr.mxu0 0.0
        %843 = vmatpush1.msra.mxu0 %v753
        %844 = vmatprep.subr.mxu0 0.0
        %845 = vmatpush1.msra.mxu0 %v752
        %846 = vmatprep.subr.mxu0 0.0
        %847 = vmatpush1.msra.mxu0 %v751
        %848 = vmatprep.subr.mxu0 0.0
        %849 = vmatpush1.msra.mxu0 %v750
        %850 = vmatprep.subr.mxu0 0.0
        %851 = vmatpush1.msra.mxu0 %v749
        %852 = vmatprep.subr.mxu0 0.0
        %853 = vmatpush1.msra.mxu0 %v748
        %854 = vmatprep.subr.mxu0 0.0
        %855 = vmatpush1.msra.mxu0 %v747
        %856 = vmatprep.subr.mxu0 0.0
        %857 = vmatpush1.msra.mxu0 %v746
        %858 = vmatprep.subr.mxu0 0.0
        %859 = vmatpush1.msra.mxu0 %v745
        %860 = vmatprep.subr.mxu0 0.0
        %861 = vmatpush1.msra.mxu0 %v744
        %862 = vmatprep.subr.mxu0 0.0
        %863 = vmatpush2.msra.mxu0 0.0
        %864 = vmatprep.subr.mxu0 0.0
        %865 = vmatpush2.msra.mxu0 0.0
        %866 = vmatprep.subr.mxu0 0.0
        %867 = vmatpush2.msra.mxu0 0.0
        %868 = vmatprep.subr.mxu0 0.0
        %869 = vmatpush2.msra.mxu0 0.0
        %870 = vmatprep.subr.mxu0 0.0
        %871 = vmatpush2.msra.mxu0 0.0
        %872 = vmatprep.subr.mxu0 0.0
        %873 = vmatpush2.msra.mxu0 0.0
        %874 = vmatprep.subr.mxu0 0.0
        %875 = vmatpush2.msra.mxu0 0.0
        %876 = vmatprep.subr.mxu0 0.0
        %877 = vmatpush2.msra.mxu0 0.0
        %878 = vmatprep.subr.mxu0 0.0
        %879 = vmatpush2.msra.mxu0 0.0
        %880 = vmatprep.subr.mxu0 0.0
        %881 = vmatpush2.msra.mxu0 0.0
        %882 = vmatprep.subr.mxu0 0.0
        %883 = vmatpush2.msra.mxu0 0.0
        %884 = vmatprep.subr.mxu0 0.0
        %885 = vmatpush2.msra.mxu0 0.0
        %886 = vmatprep.subr.mxu0 0.0
        %887 = vmatpush2.msra.mxu0 0.0
        %888 = vmatprep.subr.mxu0 0.0
        %889 = vmatpush2.msra.mxu0 0.0
        %890 = vmatprep.subr.mxu0 0.0
        %891 = vmatpush2.msra.mxu0 0.0
        %892 = vmatprep.subr.mxu0 0.0
        %893 = vmatpush2.msra.mxu0 0.0
        %894 = vmatprep.mubr.f32.mxu0 0.0
        %895 = vmatmul.mubr.f32.gmra.mxu0 %v741
        %v896 = vpop.f32.mrf.mxu0
        %v897 = vadd.f32 0.0, %v896
        %v898 = vpop.f32.mrf.mxu0
        %899 = vdwg.mxu0
        %v900 = vmul.f32 %v827, %v827
        %v901 = vsub.f32 %v897, %v900
        %v902 = vmax.f32 %v901, 0.0
        %v903 = vlaneseq
        %v904 = vshrl.u32 %v903, 7
        %v905 = vsub.s32 0, %v904
        %v906 = vrot.slane %v827, %v905
        %v907 = vsub.f32 %v444, %v906
        %v908 = vsub.f32 %v445, %v906
        %v909 = vsub.f32 %v446, %v906
        %v910 = vsub.f32 %v447, %v906
        %v911 = vsub.f32 %v448, %v906
        %v912 = vsub.f32 %v449, %v906
        %v913 = vsub.f32 %v450, %v906
        %v914 = vsub.f32 %v451, %v906
        %v915 = vsub.f32 %v452, %v906
        %v916 = vsub.f32 %v453, %v906
        %v917 = vsub.f32 %v454, %v906
        %v918 = vsub.f32 %v455, %v906
        %v919 = vsub.f32 %v456, %v906
        %v920 = vsub.f32 %v457, %v906
        %v921 = vsub.f32 %v458, %v906
        %v922 = vsub.f32 %v459, %v906
        %v923 = vsub.f32 %v460, %v906
        %v924 = vsub.f32 %v461, %v906
        %v925 = vsub.f32 %v462, %v906
        %v926 = vsub.f32 %v463, %v906
        %v927 = vsub.f32 %v464, %v906
        %v928 = vsub.f32 %v465, %v906
        %v929 = vsub.f32 %v466, %v906
        %v930 = vsub.f32 %v467, %v906
        %v931 = vsub.f32 %v468, %v906
        %v932 = vsub.f32 %v469, %v906
        %v933 = vsub.f32 %v470, %v906
        %v934 = vsub.f32 %v471, %v906
        %v935 = vsub.f32 %v472, %v906
        %v936 = vsub.f32 %v473, %v906
        %v937 = vsub.f32 %v474, %v906
        %v938 = vsub.f32 %v475, %v906
        %v939 = vadd.f32 %v902, 1e-05
        %v940 = vrsqrt.pop %v939
        %v941 = vlaneseq
        %v942 = vshrl.u32 %v941, 7
        %v943 = vsub.s32 0, %v942
        %v944 = vrot.slane %v940, %v943
        %v945 = vmul.f32 %v907, %v944
        %v946 = vmul.f32 %v908, %v944
        %v947 = vmul.f32 %v909, %v944
        %v948 = vmul.f32 %v910, %v944
        %v949 = vmul.f32 %v911, %v944
        %v950 = vmul.f32 %v912, %v944
        %v951 = vmul.f32 %v913, %v944
        %v952 = vmul.f32 %v914, %v944
        %v953 = vmul.f32 %v915, %v944
        %v954 = vmul.f32 %v916, %v944
        %v955 = vmul.f32 %v917, %v944
        %v956 = vmul.f32 %v918, %v944
        %v957 = vmul.f32 %v919, %v944
        %v958 = vmul.f32 %v920, %v944
        %v959 = vmul.f32 %v921, %v944
        %v960 = vmul.f32 %v922, %v944
        %v961 = vmul.f32 %v923, %v944
        %v962 = vmul.f32 %v924, %v944
        %v963 = vmul.f32 %v925, %v944
        %v964 = vmul.f32 %v926, %v944
        %v965 = vmul.f32 %v927, %v944
        %v966 = vmul.f32 %v928, %v944
        %v967 = vmul.f32 %v929, %v944
        %v968 = vmul.f32 %v930, %v944
        %v969 = vmul.f32 %v931, %v944
        %v970 = vmul.f32 %v932, %v944
        %v971 = vmul.f32 %v933, %v944
        %v972 = vmul.f32 %v934, %v944
        %v973 = vmul.f32 %v935, %v944
        %v974 = vmul.f32 %v936, %v944
        %v975 = vmul.f32 %v937, %v944
        %v976 = vmul.f32 %v938, %v944
        %v977 = vadd.f32 %v568, 1.0
        %v978 = vlaneseq
        %v979 = vshrl.u32 %v978, 7
        %v980 = vsub.s32 0, %v979
        %v981 = vrot.slane %v977, %v980
        %v982 = vmul.f32 %v945, %v981
        %v983 = vmul.f32 %v946, %v981
        %v984 = vmul.f32 %v947, %v981
        %v985 = vmul.f32 %v948, %v981
        %v986 = vmul.f32 %v949, %v981
        %v987 = vmul.f32 %v950, %v981
        %v988 = vmul.f32 %v951, %v981
        %v989 = vmul.f32 %v952, %v981
        %v990 = vmul.f32 %v953, %v981
        %v991 = vmul.f32 %v954, %v981
        %v992 = vmul.f32 %v955, %v981
        %v993 = vmul.f32 %v956, %v981
        %v994 = vmul.f32 %v957, %v981
        %v995 = vmul.f32 %v958, %v981
        %v996 = vmul.f32 %v959, %v981
        %v997 = vmul.f32 %v960, %v981
        %v998 = vmul.f32 %v961, %v981
        %v999 = vmul.f32 %v962, %v981
        %v1000 = vmul.f32 %v963, %v981
        %v1001 = vmul.f32 %v964, %v981
        %v1002 = vmul.f32 %v965, %v981
        %v1003 = vmul.f32 %v966, %v981
        %v1004 = vmul.f32 %v967, %v981
        %v1005 = vmul.f32 %v968, %v981
        %v1006 = vmul.f32 %v969, %v981
        %v1007 = vmul.f32 %v970, %v981
        %v1008 = vmul.f32 %v971, %v981
        %v1009 = vmul.f32 %v972, %v981
        %v1010 = vmul.f32 %v973, %v981
        %v1011 = vmul.f32 %v974, %v981
        %v1012 = vmul.f32 %v975, %v981
        %v1013 = vmul.f32 %v976, %v981
        %v1014 = vlaneseq
        %v1015 = vshrl.u32 %v1014, 7
        %v1016 = vsub.s32 0, %v1015
        %v1017 = vrot.slane %v570, %v1016
        %v1018 = vadd.f32 %v982, %v1017
        %v1019 = vadd.f32 %v983, %v1017
        %v1020 = vadd.f32 %v984, %v1017
        %v1021 = vadd.f32 %v985, %v1017
        %v1022 = vadd.f32 %v986, %v1017
        %v1023 = vadd.f32 %v987, %v1017
        %v1024 = vadd.f32 %v988, %v1017
        %v1025 = vadd.f32 %v989, %v1017
        %v1026 = vadd.f32 %v990, %v1017
        %v1027 = vadd.f32 %v991, %v1017
        %v1028 = vadd.f32 %v992, %v1017
        %v1029 = vadd.f32 %v993, %v1017
        %v1030 = vadd.f32 %v994, %v1017
        %v1031 = vadd.f32 %v995, %v1017
        %v1032 = vadd.f32 %v996, %v1017
        %v1033 = vadd.f32 %v997, %v1017
        %v1034 = vadd.f32 %v998, %v1017
        %v1035 = vadd.f32 %v999, %v1017
        %v1036 = vadd.f32 %v1000, %v1017
        %v1037 = vadd.f32 %v1001, %v1017
        %v1038 = vadd.f32 %v1002, %v1017
        %v1039 = vadd.f32 %v1003, %v1017
        %v1040 = vadd.f32 %v1004, %v1017
        %v1041 = vadd.f32 %v1005, %v1017
        %v1042 = vadd.f32 %v1006, %v1017
        %v1043 = vadd.f32 %v1007, %v1017
        %v1044 = vadd.f32 %v1008, %v1017
        %v1045 = vadd.f32 %v1009, %v1017
        %v1046 = vadd.f32 %v1010, %v1017
        %v1047 = vadd.f32 %v1011, %v1017
        %v1048 = vadd.f32 %v1012, %v1017
        %v1049 = vadd.f32 %v1013, %v1017
        %v1050 = vpack.c.bf16 %v1019, %v1018
        %v1051 = vpack.c.bf16 %v1021, %v1020
        %v1052 = vpack.c.bf16 %v1023, %v1022
        %v1053 = vpack.c.bf16 %v1025, %v1024
        %v1054 = vpack.c.bf16 %v1027, %v1026
        %v1055 = vpack.c.bf16 %v1029, %v1028
        %v1056 = vpack.c.bf16 %v1031, %v1030
        %v1057 = vpack.c.bf16 %v1033, %v1032
        %v1058 = vpack.c.bf16 %v1035, %v1034
        %v1059 = vpack.c.bf16 %v1037, %v1036
        %v1060 = vpack.c.bf16 %v1039, %v1038
        %v1061 = vpack.c.bf16 %v1041, %v1040
        %v1062 = vpack.c.bf16 %v1043, %v1042
        %v1063 = vpack.c.bf16 %v1045, %v1044
        %v1064 = vpack.c.bf16 %v1047, %v1046
        %v1065 = vpack.c.bf16 %v1049, %v1048
        %v1066 = vld [vmem:[#allocation10] sm:$0xff]
        %v1067 = vld [vmem:[#allocation10 + $0x8] sm:$0xf]
        %v1068 = vld [vmem:[#allocation10 + $0xc] sm:$0xff]
        %v1069 = vld [vmem:[#allocation10 + $0x14] sm:$0xf]
        %v1070 = vld [vmem:[#allocation10 + $0x18] sm:$0xff]
        %v1071 = vld [vmem:[#allocation10 + $0x20] sm:$0xf]
        %v1072 = vld [vmem:[#allocation10 + $0x24] sm:$0xff]
        %v1073 = vld [vmem:[#allocation10 + $0x2c] sm:$0xf]
        %v1074 = vld [vmem:[#allocation10 + $0x30] sm:$0xff]
        %v1075 = vld [vmem:[#allocation10 + $0x38] sm:$0xf]
        %v1076 = vld [vmem:[#allocation10 + $0x3c] sm:$0xff]
        %v1077 = vld [vmem:[#allocation10 + $0x44] sm:$0xf]
        %v1078 = vld [vmem:[#allocation10 + $0x48] sm:$0xff]
        %v1079 = vld [vmem:[#allocation10 + $0x50] sm:$0xf]
        %v1080 = vld [vmem:[#allocation10 + $0x54] sm:$0xff]
        %v1081 = vld [vmem:[#allocation10 + $0x5c] sm:$0xf]
        %v1082 = vld [vmem:[#allocation10 + $0x60] sm:$0xff]
        %v1083 = vld [vmem:[#allocation10 + $0x68] sm:$0xf]
        %v1084 = vld [vmem:[#allocation10 + $0x6c] sm:$0xff]
        %v1085 = vld [vmem:[#allocation10 + $0x74] sm:$0xf]
        %v1086 = vld [vmem:[#allocation10 + $0x78] sm:$0xff]
        %v1087 = vld [vmem:[#allocation10 + $0x80] sm:$0xf]
        %v1088 = vld [vmem:[#allocation10 + $0x84] sm:$0xff]
        %v1089 = vld [vmem:[#allocation10 + $0x8c] sm:$0xf]
        %v1090 = vld [vmem:[#allocation10 + $0x90] sm:$0xff]
        %v1091 = vld [vmem:[#allocation10 + $0x98] sm:$0xf]
        %v1092 = vld [vmem:[#allocation10 + $0x9c] sm:$0xff]
        %v1093 = vld [vmem:[#allocation10 + $0xa4] sm:$0xf]
        %v1094 = vld [vmem:[#allocation10 + $0xa8] sm:$0xff]
        %v1095 = vld [vmem:[#allocation10 + $0xb0] sm:$0xf]
        %v1096 = vld [vmem:[#allocation10 + $0xb4] sm:$0xff]
        %v1097 = vld [vmem:[#allocation10 + $0xbc] sm:$0xf]
        %v1098 = vld [vmem:[%s6] sm:$0x7]
        %v1100 = vlaneseq
        %v1101 = vshrl.u32 %v1100, 7
        %v1102 = vsub.s32 0, %v1101
        %v1103 = vrot.slane %v1098, %v1102
        %v1104 = vlaneseq
        %v1105 = vshrl.u32 %v1104, 7
        %v1106 = vsub.s32 1, %v1105
        %v1107 = vrot.slane %v1098, %v1106
        %v1108 = vlaneseq
        %v1109 = vshrl.u32 %v1108, 7
        %v1110 = vsub.s32 2, %v1109
        %v1111 = vrot.slane %v1098, %v1110
        %v1147 = vunpack.c.l.b16 %v1066
        %v1148 = vunpack.c.h.b16 %v1066
        %v1149 = vunpack.c.l.b16 %v1067
        %v1150 = vunpack.c.l.b16 %v1068
        %v1151 = vunpack.c.h.b16 %v1068
        %v1152 = vunpack.c.l.b16 %v1069
        %v1153 = vunpack.c.l.b16 %v1070
        %v1154 = vunpack.c.h.b16 %v1070
        %v1155 = vunpack.c.l.b16 %v1071
        %v1156 = vunpack.c.l.b16 %v1072
        %v1157 = vunpack.c.h.b16 %v1072
        %v1158 = vunpack.c.l.b16 %v1073
        %v1159 = vunpack.c.l.b16 %v1074
        %v1160 = vunpack.c.h.b16 %v1074
        %v1161 = vunpack.c.l.b16 %v1075
        %v1162 = vunpack.c.l.b16 %v1076
        %v1163 = vunpack.c.h.b16 %v1076
        %v1164 = vunpack.c.l.b16 %v1077
        %v1165 = vunpack.c.l.b16 %v1078
        %v1166 = vunpack.c.h.b16 %v1078
        %v1167 = vunpack.c.l.b16 %v1079
        %v1168 = vunpack.c.l.b16 %v1080
        %v1169 = vunpack.c.h.b16 %v1080
        %v1170 = vunpack.c.l.b16 %v1081
        %v1171 = vunpack.c.l.b16 %v1082
        %v1172 = vunpack.c.h.b16 %v1082
        %v1173 = vunpack.c.l.b16 %v1083
        %v1174 = vunpack.c.l.b16 %v1084
        %v1175 = vunpack.c.h.b16 %v1084
        %v1176 = vunpack.c.l.b16 %v1085
        %v1177 = vunpack.c.l.b16 %v1086
        %v1178 = vunpack.c.h.b16 %v1086
        %v1179 = vunpack.c.l.b16 %v1087
        %v1180 = vunpack.c.l.b16 %v1088
        %v1181 = vunpack.c.h.b16 %v1088
        %v1182 = vunpack.c.l.b16 %v1089
        %v1183 = vunpack.c.l.b16 %v1090
        %v1184 = vunpack.c.h.b16 %v1090
        %v1185 = vunpack.c.l.b16 %v1091
        %v1186 = vunpack.c.l.b16 %v1092
        %v1187 = vunpack.c.h.b16 %v1092
        %v1188 = vunpack.c.l.b16 %v1093
        %v1189 = vunpack.c.l.b16 %v1094
        %v1190 = vunpack.c.h.b16 %v1094
        %v1191 = vunpack.c.l.b16 %v1095
        %v1192 = vunpack.c.l.b16 %v1096
        %v1193 = vunpack.c.h.b16 %v1096
        %v1194 = vunpack.c.l.b16 %v1097
        %v1195 = vpack.c.b16 %v1150, %v1147
        %v1196 = vpack.c.b16 %v1151, %v1148
        %v1197 = vpack.c.b16 %v1152, %v1149
        %v1198 = vpack.c.b16 %v1156, %v1153
        %v1199 = vpack.c.b16 %v1157, %v1154
        %v1200 = vpack.c.b16 %v1158, %v1155
        %v1201 = vpack.c.b16 %v1162, %v1159
        %v1202 = vpack.c.b16 %v1163, %v1160
        %v1203 = vpack.c.b16 %v1164, %v1161
        %v1204 = vpack.c.b16 %v1168, %v1165
        %v1205 = vpack.c.b16 %v1169, %v1166
        %v1206 = vpack.c.b16 %v1170, %v1167
        %v1207 = vpack.c.b16 %v1174, %v1171
        %v1208 = vpack.c.b16 %v1175, %v1172
        %v1209 = vpack.c.b16 %v1176, %v1173
        %v1210 = vpack.c.b16 %v1180, %v1177
        %v1211 = vpack.c.b16 %v1181, %v1178
        %v1212 = vpack.c.b16 %v1182, %v1179
        %v1213 = vpack.c.b16 %v1186, %v1183
        %v1214 = vpack.c.b16 %v1187, %v1184
        %v1215 = vpack.c.b16 %v1188, %v1185
        %v1216 = vpack.c.b16 %v1192, %v1189
        %v1217 = vpack.c.b16 %v1193, %v1190
        %v1218 = vpack.c.b16 %v1194, %v1191
        %1243 = vmatprep.subr.bf16.mxu0 %v1217
        %1244 = vmatpush1.bf16.msra.mxu0 %v1216
        %1245 = vmatprep.subr.bf16.mxu0 %v1214
        %1246 = vmatpush1.bf16.msra.mxu0 %v1213
        %1247 = vmatprep.subr.bf16.mxu0 %v1211
        %1248 = vmatpush1.bf16.msra.mxu0 %v1210
        %1249 = vmatprep.subr.bf16.mxu0 %v1208
        %1250 = vmatpush1.bf16.msra.mxu0 %v1207
        %1251 = vmatprep.subr.bf16.mxu0 %v1205
        %1252 = vmatpush1.bf16.msra.mxu0 %v1204
        %1253 = vmatprep.subr.bf16.mxu0 %v1202
        %1254 = vmatpush1.bf16.msra.mxu0 %v1201
        %1255 = vmatprep.subr.bf16.mxu0 %v1199
        %1256 = vmatpush1.bf16.msra.mxu0 %v1198
        %1257 = vmatprep.subr.bf16.mxu0 %v1196
        %1258 = vmatpush1.bf16.msra.mxu0 %v1195
        %1259 = vmatprep.subr.bf16.mxu0 0
        %1260 = vmatpush2.bf16.msra.mxu0 0
        %1261 = vmatprep.subr.bf16.mxu0 0
        %1262 = vmatpush2.bf16.msra.mxu0 0
        %1263 = vmatprep.subr.bf16.mxu0 0
        %1264 = vmatpush2.bf16.msra.mxu0 0
        %1265 = vmatprep.subr.bf16.mxu0 0
        %1266 = vmatpush2.bf16.msra.mxu0 0
        %1267 = vmatprep.subr.bf16.mxu0 0
        %1268 = vmatpush2.bf16.msra.mxu0 0
        %1269 = vmatprep.subr.bf16.mxu0 0
        %1270 = vmatpush2.bf16.msra.mxu0 0
        %1271 = vmatprep.subr.bf16.mxu0 0
        %1272 = vmatpush2.bf16.msra.mxu0 0
        %1273 = vmatprep.subr.bf16.mxu0 0
        %1274 = vmatpush2.bf16.msra.mxu0 0
        %1275 = vmatprep.mubr.bf16.mxu0 0
        %1276 = vmatmul.mubr.bf16.gmra.mxu0 %v1050
        %v1277 = vpop.f32.mrf.mxu0
        %v1278 = vadd.f32 %v1103, %v1277
        %v1279 = vpop.f32.mrf.mxu0
        %v1280 = vadd.f32 %v1107, %v1279
        %v1281 = vpop.f32.mrf.mxu0
        %v1282 = vadd.f32 %v1103, %v1281
        %v1283 = vpop.f32.mrf.mxu0
        %v1284 = vadd.f32 %v1107, %v1283
        %1285 = vmatprep.mubr.bf16.mxu0 0
        %1286 = vmatmul.mubr.bf16.gmra.mxu0 %v1051
        %v1287 = vpop.f32.mrf.mxu0
        %v1288 = vadd.f32 %v1103, %v1287
        %v1289 = vpop.f32.mrf.mxu0
        %v1290 = vadd.f32 %v1107, %v1289
        %v1291 = vpop.f32.mrf.mxu0
        %v1292 = vadd.f32 %v1103, %v1291
        %v1293 = vpop.f32.mrf.mxu0
        %v1294 = vadd.f32 %v1107, %v1293
        %1295 = vmatprep.mubr.bf16.mxu0 0
        %1296 = vmatmul.mubr.bf16.gmra.mxu0 %v1052
        %v1297 = vpop.f32.mrf.mxu0
        %v1298 = vadd.f32 %v1103, %v1297
        %v1299 = vpop.f32.mrf.mxu0
        %v1300 = vadd.f32 %v1107, %v1299
        %v1301 = vpop.f32.mrf.mxu0
        %v1302 = vadd.f32 %v1103, %v1301
        %v1303 = vpop.f32.mrf.mxu0
        %v1304 = vadd.f32 %v1107, %v1303
        %1305 = vmatprep.mubr.bf16.mxu0 0
        %1306 = vmatmul.mubr.bf16.gmra.mxu0 %v1053
        %v1307 = vpop.f32.mrf.mxu0
        %v1308 = vadd.f32 %v1103, %v1307
        %v1309 = vpop.f32.mrf.mxu0
        %v1310 = vadd.f32 %v1107, %v1309
        %v1311 = vpop.f32.mrf.mxu0
        %v1312 = vadd.f32 %v1103, %v1311
        %v1313 = vpop.f32.mrf.mxu0
        %v1314 = vadd.f32 %v1107, %v1313
        %1315 = vmatprep.mubr.bf16.mxu0 0
        %1316 = vmatmul.mubr.bf16.gmra.mxu0 %v1054
        %v1317 = vpop.f32.mrf.mxu0
        %v1318 = vadd.f32 %v1103, %v1317
        %v1319 = vpop.f32.mrf.mxu0
        %v1320 = vadd.f32 %v1107, %v1319
        %v1321 = vpop.f32.mrf.mxu0
        %v1322 = vadd.f32 %v1103, %v1321
        %v1323 = vpop.f32.mrf.mxu0
        %v1324 = vadd.f32 %v1107, %v1323
        %1325 = vmatprep.mubr.bf16.mxu0 0
        %1326 = vmatmul.mubr.bf16.gmra.mxu0 %v1055
        %v1327 = vpop.f32.mrf.mxu0
        %v1328 = vadd.f32 %v1103, %v1327
        %v1329 = vpop.f32.mrf.mxu0
        %v1330 = vadd.f32 %v1107, %v1329
        %v1331 = vpop.f32.mrf.mxu0
        %v1332 = vadd.f32 %v1103, %v1331
        %v1333 = vpop.f32.mrf.mxu0
        %v1334 = vadd.f32 %v1107, %v1333
        %1335 = vmatprep.mubr.bf16.mxu0 0
        %1336 = vmatmul.mubr.bf16.gmra.mxu0 %v1056
        %v1337 = vpop.f32.mrf.mxu0
        %v1338 = vadd.f32 %v1103, %v1337
        %v1339 = vpop.f32.mrf.mxu0
        %v1340 = vadd.f32 %v1107, %v1339
        %v1341 = vpop.f32.mrf.mxu0
        %v1342 = vadd.f32 %v1103, %v1341
        %v1343 = vpop.f32.mrf.mxu0
        %v1344 = vadd.f32 %v1107, %v1343
        %1345 = vmatprep.mubr.bf16.mxu0 0
        %1346 = vmatmul.mubr.bf16.gmra.mxu0 %v1057
        %v1347 = vpop.f32.mrf.mxu0
        %v1348 = vadd.f32 %v1103, %v1347
        %v1349 = vpop.f32.mrf.mxu0
        %v1350 = vadd.f32 %v1107, %v1349
        %v1351 = vpop.f32.mrf.mxu0
        %v1352 = vadd.f32 %v1103, %v1351
        %v1353 = vpop.f32.mrf.mxu0
        %v1354 = vadd.f32 %v1107, %v1353
        %1355 = vmatprep.mubr.bf16.mxu0 0
        %1356 = vmatmul.mubr.bf16.gmra.mxu0 %v1058
        %v1357 = vpop.f32.mrf.mxu0
        %v1358 = vadd.f32 %v1103, %v1357
        %v1359 = vpop.f32.mrf.mxu0
        %v1360 = vadd.f32 %v1107, %v1359
        %v1361 = vpop.f32.mrf.mxu0
        %v1362 = vadd.f32 %v1103, %v1361
        %v1363 = vpop.f32.mrf.mxu0
        %v1364 = vadd.f32 %v1107, %v1363
        %1365 = vmatprep.mubr.bf16.mxu0 0
        %1366 = vmatmul.mubr.bf16.gmra.mxu0 %v1059
        %v1367 = vpop.f32.mrf.mxu0
        %v1368 = vadd.f32 %v1103, %v1367
        %v1369 = vpop.f32.mrf.mxu0
        %v1370 = vadd.f32 %v1107, %v1369
        %v1371 = vpop.f32.mrf.mxu0
        %v1372 = vadd.f32 %v1103, %v1371
        %v1373 = vpop.f32.mrf.mxu0
        %v1374 = vadd.f32 %v1107, %v1373
        %1375 = vmatprep.mubr.bf16.mxu0 0
        %1376 = vmatmul.mubr.bf16.gmra.mxu0 %v1060
        %v1377 = vpop.f32.mrf.mxu0
        %v1378 = vadd.f32 %v1103, %v1377
        %v1379 = vpop.f32.mrf.mxu0
        %v1380 = vadd.f32 %v1107, %v1379
        %v1381 = vpop.f32.mrf.mxu0
        %v1382 = vadd.f32 %v1103, %v1381
        %v1383 = vpop.f32.mrf.mxu0
        %v1384 = vadd.f32 %v1107, %v1383
        %1385 = vmatprep.mubr.bf16.mxu0 0
        %1386 = vmatmul.mubr.bf16.gmra.mxu0 %v1061
        %v1387 = vpop.f32.mrf.mxu0
        %v1388 = vadd.f32 %v1103, %v1387
        %v1389 = vpop.f32.mrf.mxu0
        %v1390 = vadd.f32 %v1107, %v1389
        %v1391 = vpop.f32.mrf.mxu0
        %v1392 = vadd.f32 %v1103, %v1391
        %v1393 = vpop.f32.mrf.mxu0
        %v1394 = vadd.f32 %v1107, %v1393
        %1395 = vmatprep.mubr.bf16.mxu0 0
        %1396 = vmatmul.mubr.bf16.gmra.mxu0 %v1062
        %v1397 = vpop.f32.mrf.mxu0
        %v1398 = vadd.f32 %v1103, %v1397
        %v1399 = vpop.f32.mrf.mxu0
        %v1400 = vadd.f32 %v1107, %v1399
        %v1401 = vpop.f32.mrf.mxu0
        %v1402 = vadd.f32 %v1103, %v1401
        %v1403 = vpop.f32.mrf.mxu0
        %v1404 = vadd.f32 %v1107, %v1403
        %1405 = vmatprep.mubr.bf16.mxu0 0
        %1406 = vmatmul.mubr.bf16.gmra.mxu0 %v1063
        %v1407 = vpop.f32.mrf.mxu0
        %v1408 = vadd.f32 %v1103, %v1407
        %v1409 = vpop.f32.mrf.mxu0
        %v1410 = vadd.f32 %v1107, %v1409
        %v1411 = vpop.f32.mrf.mxu0
        %v1412 = vadd.f32 %v1103, %v1411
        %v1413 = vpop.f32.mrf.mxu0
        %v1414 = vadd.f32 %v1107, %v1413
        %1415 = vmatprep.mubr.bf16.mxu0 0
        %1416 = vmatmul.mubr.bf16.gmra.mxu0 %v1064
        %v1417 = vpop.f32.mrf.mxu0
        %v1418 = vadd.f32 %v1103, %v1417
        %v1419 = vpop.f32.mrf.mxu0
        %v1420 = vadd.f32 %v1107, %v1419
        %v1421 = vpop.f32.mrf.mxu0
        %v1422 = vadd.f32 %v1103, %v1421
        %v1423 = vpop.f32.mrf.mxu0
        %v1424 = vadd.f32 %v1107, %v1423
        %1425 = vmatprep.mubr.bf16.mxu0 0
        %1426 = vmatmul.mubr.bf16.gmra.mxu0 %v1065
        %v1427 = vpop.f32.mrf.mxu0
        %v1428 = vadd.f32 %v1103, %v1427
        %v1429 = vpop.f32.mrf.mxu0
        %v1430 = vadd.f32 %v1107, %v1429
        %v1431 = vpop.f32.mrf.mxu0
        %v1432 = vadd.f32 %v1103, %v1431
        %v1433 = vpop.f32.mrf.mxu0
        %v1434 = vadd.f32 %v1107, %v1433
        %1435 = vdwg.mxu0
        %1436 = vmatprep.subr.bf16.mxu0 0
        %1437 = vmatpush1.bf16.msra.mxu0 %v1218
        %1438 = vmatprep.subr.bf16.mxu0 0
        %1439 = vmatpush1.bf16.msra.mxu0 %v1215
        %1440 = vmatprep.subr.bf16.mxu0 0
        %1441 = vmatpush1.bf16.msra.mxu0 %v1212
        %1442 = vmatprep.subr.bf16.mxu0 0
        %1443 = vmatpush1.bf16.msra.mxu0 %v1209
        %1444 = vmatprep.subr.bf16.mxu0 0
        %1445 = vmatpush1.bf16.msra.mxu0 %v1206
        %1446 = vmatprep.subr.bf16.mxu0 0
        %1447 = vmatpush1.bf16.msra.mxu0 %v1203
        %1448 = vmatprep.subr.bf16.mxu0 0
        %1449 = vmatpush1.bf16.msra.mxu0 %v1200
        %1450 = vmatprep.subr.bf16.mxu0 0
        %1451 = vmatpush1.bf16.msra.mxu0 %v1197
        %1452 = vmatprep.subr.bf16.mxu0 0
        %1453 = vmatpush2.bf16.msra.mxu0 0
        %1454 = vmatprep.subr.bf16.mxu0 0
        %1455 = vmatpush2.bf16.msra.mxu0 0
        %1456 = vmatprep.subr.bf16.mxu0 0
        %1457 = vmatpush2.bf16.msra.mxu0 0
        %1458 = vmatprep.subr.bf16.mxu0 0
        %1459 = vmatpush2.bf16.msra.mxu0 0
        %1460 = vmatprep.subr.bf16.mxu0 0
        %1461 = vmatpush2.bf16.msra.mxu0 0
        %1462 = vmatprep.subr.bf16.mxu0 0
        %1463 = vmatpush2.bf16.msra.mxu0 0
        %1464 = vmatprep.subr.bf16.mxu0 0
        %1465 = vmatpush2.bf16.msra.mxu0 0
        %1466 = vmatprep.subr.bf16.mxu0 0
        %1467 = vmatpush2.bf16.msra.mxu0 0
        %1468 = vmatprep.mubr.bf16.mxu0 0
        %1469 = vmatmul.mubr.bf16.gmra.mxu0 %v1050
        %v1470 = vpop.f32.mrf.mxu0
        %v1471 = vadd.f32 %v1111, %v1470
        %v1472 = vpop.f32.mrf.mxu0
        %v1473 = vpop.f32.mrf.mxu0
        %v1474 = vadd.f32 %v1111, %v1473
        %v1475 = vpop.f32.mrf.mxu0
        %1476 = vmatprep.mubr.bf16.mxu0 0
        %1477 = vmatmul.mubr.bf16.gmra.mxu0 %v1051
        %v1478 = vpop.f32.mrf.mxu0
        %v1479 = vadd.f32 %v1111, %v1478
        %v1480 = vpop.f32.mrf.mxu0
        %v1481 = vpop.f32.mrf.mxu0
        %v1482 = vadd.f32 %v1111, %v1481
        %v1483 = vpop.f32.mrf.mxu0
        %1484 = vmatprep.mubr.bf16.mxu0 0
        %1485 = vmatmul.mubr.bf16.gmra.mxu0 %v1052
        %v1486 = vpop.f32.mrf.mxu0
        %v1487 = vadd.f32 %v1111, %v1486
        %v1488 = vpop.f32.mrf.mxu0
        %v1489 = vpop.f32.mrf.mxu0
        %v1490 = vadd.f32 %v1111, %v1489
        %v1491 = vpop.f32.mrf.mxu0
        %1492 = vmatprep.mubr.bf16.mxu0 0
        %1493 = vmatmul.mubr.bf16.gmra.mxu0 %v1053
        %v1494 = vpop.f32.mrf.mxu0
        %v1495 = vadd.f32 %v1111, %v1494
        %v1496 = vpop.f32.mrf.mxu0
        %v1497 = vpop.f32.mrf.mxu0
        %v1498 = vadd.f32 %v1111, %v1497
        %v1499 = vpop.f32.mrf.mxu0
        %1500 = vmatprep.mubr.bf16.mxu0 0
        %1501 = vmatmul.mubr.bf16.gmra.mxu0 %v1054
        %v1502 = vpop.f32.mrf.mxu0
        %v1503 = vadd.f32 %v1111, %v1502
        %v1504 = vpop.f32.mrf.mxu0
        %v1505 = vpop.f32.mrf.mxu0
        %v1506 = vadd.f32 %v1111, %v1505
        %v1507 = vpop.f32.mrf.mxu0
        %1508 = vmatprep.mubr.bf16.mxu0 0
        %1509 = vmatmul.mubr.bf16.gmra.mxu0 %v1055
        %v1510 = vpop.f32.mrf.mxu0
        %v1511 = vadd.f32 %v1111, %v1510
        %v1512 = vpop.f32.mrf.mxu0
        %v1513 = vpop.f32.mrf.mxu0
        %v1514 = vadd.f32 %v1111, %v1513
        %v1515 = vpop.f32.mrf.mxu0
        %1516 = vmatprep.mubr.bf16.mxu0 0
        %1517 = vmatmul.mubr.bf16.gmra.mxu0 %v1056
        %v1518 = vpop.f32.mrf.mxu0
        %v1519 = vadd.f32 %v1111, %v1518
        %v1520 = vpop.f32.mrf.mxu0
        %v1521 = vpop.f32.mrf.mxu0
        %v1522 = vadd.f32 %v1111, %v1521
        %v1523 = vpop.f32.mrf.mxu0
        %1524 = vmatprep.mubr.bf16.mxu0 0
        %1525 = vmatmul.mubr.bf16.gmra.mxu0 %v1057
        %v1526 = vpop.f32.mrf.mxu0
        %v1527 = vadd.f32 %v1111, %v1526
        %v1528 = vpop.f32.mrf.mxu0
        %v1529 = vpop.f32.mrf.mxu0
        %v1530 = vadd.f32 %v1111, %v1529
        %v1531 = vpop.f32.mrf.mxu0
        %1532 = vmatprep.mubr.bf16.mxu0 0
        %1533 = vmatmul.mubr.bf16.gmra.mxu0 %v1058
        %v1534 = vpop.f32.mrf.mxu0
        %v1535 = vadd.f32 %v1111, %v1534
        %v1536 = vpop.f32.mrf.mxu0
        %v1537 = vpop.f32.mrf.mxu0
        %v1538 = vadd.f32 %v1111, %v1537
        %v1539 = vpop.f32.mrf.mxu0
        %1540 = vmatprep.mubr.bf16.mxu0 0
        %1541 = vmatmul.mubr.bf16.gmra.mxu0 %v1059
        %v1542 = vpop.f32.mrf.mxu0
        %v1543 = vadd.f32 %v1111, %v1542
        %v1544 = vpop.f32.mrf.mxu0
        %v1545 = vpop.f32.mrf.mxu0
        %v1546 = vadd.f32 %v1111, %v1545
        %v1547 = vpop.f32.mrf.mxu0
        %1548 = vmatprep.mubr.bf16.mxu0 0
        %1549 = vmatmul.mubr.bf16.gmra.mxu0 %v1060
        %v1550 = vpop.f32.mrf.mxu0
        %v1551 = vadd.f32 %v1111, %v1550
        %v1552 = vpop.f32.mrf.mxu0
        %v1553 = vpop.f32.mrf.mxu0
        %v1554 = vadd.f32 %v1111, %v1553
        %v1555 = vpop.f32.mrf.mxu0
        %1556 = vmatprep.mubr.bf16.mxu0 0
        %1557 = vmatmul.mubr.bf16.gmra.mxu0 %v1061
        %v1558 = vpop.f32.mrf.mxu0
        %v1559 = vadd.f32 %v1111, %v1558
        %v1560 = vpop.f32.mrf.mxu0
        %v1561 = vpop.f32.mrf.mxu0
        %v1562 = vadd.f32 %v1111, %v1561
        %v1563 = vpop.f32.mrf.mxu0
        %1564 = vmatprep.mubr.bf16.mxu0 0
        %1565 = vmatmul.mubr.bf16.gmra.mxu0 %v1062
        %v1566 = vpop.f32.mrf.mxu0
        %v1567 = vadd.f32 %v1111, %v1566
        %v1568 = vpop.f32.mrf.mxu0
        %v1569 = vpop.f32.mrf.mxu0
        %v1570 = vadd.f32 %v1111, %v1569
        %v1571 = vpop.f32.mrf.mxu0
        %1572 = vmatprep.mubr.bf16.mxu0 0
        %1573 = vmatmul.mubr.bf16.gmra.mxu0 %v1063
        %v1574 = vpop.f32.mrf.mxu0
        %v1575 = vadd.f32 %v1111, %v1574
        %v1576 = vpop.f32.mrf.mxu0
        %v1577 = vpop.f32.mrf.mxu0
        %v1578 = vadd.f32 %v1111, %v1577
        %v1579 = vpop.f32.mrf.mxu0
        %1580 = vmatprep.mubr.bf16.mxu0 0
        %1581 = vmatmul.mubr.bf16.gmra.mxu0 %v1064
        %v1582 = vpop.f32.mrf.mxu0
        %v1583 = vadd.f32 %v1111, %v1582
        %v1584 = vpop.f32.mrf.mxu0
        %v1585 = vpop.f32.mrf.mxu0
        %v1586 = vadd.f32 %v1111, %v1585
        %v1587 = vpop.f32.mrf.mxu0
        %1588 = vmatprep.mubr.bf16.mxu0 0
        %1589 = vmatmul.mubr.bf16.gmra.mxu0 %v1065
        %v1590 = vpop.f32.mrf.mxu0
        %v1591 = vadd.f32 %v1111, %v1590
        %v1592 = vpop.f32.mrf.mxu0
        %v1593 = vpop.f32.mrf.mxu0
        %v1594 = vadd.f32 %v1111, %v1593
        %v1595 = vpop.f32.mrf.mxu0
        %1596 = vdwg.mxu0
        %v1597 = vpack.c.bf16 %v1282, %v1278
        %v1598 = vpack.c.bf16 %v1284, %v1280
        %v1599 = vpack.c.bf16 %v1474, %v1471
        %v1600 = vpack.c.bf16 %v1292, %v1288
        %v1601 = vpack.c.bf16 %v1294, %v1290
        %v1602 = vpack.c.bf16 %v1482, %v1479
        %v1603 = vpack.c.bf16 %v1302, %v1298
        %v1604 = vpack.c.bf16 %v1304, %v1300
        %v1605 = vpack.c.bf16 %v1490, %v1487
        %v1606 = vpack.c.bf16 %v1312, %v1308
        %v1607 = vpack.c.bf16 %v1314, %v1310
        %v1608 = vpack.c.bf16 %v1498, %v1495
        %v1609 = vpack.c.bf16 %v1322, %v1318
        %v1610 = vpack.c.bf16 %v1324, %v1320
        %v1611 = vpack.c.bf16 %v1506, %v1503
        %v1612 = vpack.c.bf16 %v1332, %v1328
        %v1613 = vpack.c.bf16 %v1334, %v1330
        %v1614 = vpack.c.bf16 %v1514, %v1511
        %v1615 = vpack.c.bf16 %v1342, %v1338
        %v1616 = vpack.c.bf16 %v1344, %v1340
        %v1617 = vpack.c.bf16 %v1522, %v1519
        %v1618 = vpack.c.bf16 %v1352, %v1348
        %v1619 = vpack.c.bf16 %v1354, %v1350
        %v1620 = vpack.c.bf16 %v1530, %v1527
        %v1621 = vpack.c.bf16 %v1362, %v1358
        %v1622 = vpack.c.bf16 %v1364, %v1360
        %v1623 = vpack.c.bf16 %v1538, %v1535
        %v1624 = vpack.c.bf16 %v1372, %v1368
        %v1625 = vpack.c.bf16 %v1374, %v1370
        %v1626 = vpack.c.bf16 %v1546, %v1543
        %v1627 = vpack.c.bf16 %v1382, %v1378
        %v1628 = vpack.c.bf16 %v1384, %v1380
        %v1629 = vpack.c.bf16 %v1554, %v1551
        %v1630 = vpack.c.bf16 %v1392, %v1388
        %v1631 = vpack.c.bf16 %v1394, %v1390
        %v1632 = vpack.c.bf16 %v1562, %v1559
        %v1633 = vpack.c.bf16 %v1402, %v1398
        %v1634 = vpack.c.bf16 %v1404, %v1400
        %v1635 = vpack.c.bf16 %v1570, %v1567
        %v1636 = vpack.c.bf16 %v1412, %v1408
        %v1637 = vpack.c.bf16 %v1414, %v1410
        %v1638 = vpack.c.bf16 %v1578, %v1575
        %v1639 = vpack.c.bf16 %v1422, %v1418
        %v1640 = vpack.c.bf16 %v1424, %v1420
        %v1641 = vpack.c.bf16 %v1586, %v1583
        %v1642 = vpack.c.bf16 %v1432, %v1428
        %v1643 = vpack.c.bf16 %v1434, %v1430
        %v1644 = vpack.c.bf16 %v1594, %v1591
        %v1646 = vsel %vm497, %v1597, 0
        %v1649 = vsel %vm497, %v1600, 0
        %v1652 = vsel %vm497, %v1603, 0
        %v1655 = vsel %vm497, %v1606, 0
        %v1658 = vsel %vm497, %v1609, 0
        %v1661 = vsel %vm497, %v1612, 0
        %v1664 = vsel %vm497, %v1615, 0
        %v1667 = vsel %vm497, %v1618, 0
        %v1670 = vsel %vm497, %v1621, 0
        %v1673 = vsel %vm497, %v1624, 0
        %v1676 = vsel %vm497, %v1627, 0
        %v1679 = vsel %vm497, %v1630, 0
        %v1682 = vsel %vm497, %v1633, 0
        %v1685 = vsel %vm497, %v1636, 0
        %v1688 = vsel %vm497, %v1639, 0
        %v1691 = vsel %vm497, %v1642, 0
        %v1694 = vsel %vm497, %v1598, 0
        %v1697 = vsel %vm497, %v1601, 0
        %v1700 = vsel %vm497, %v1604, 0
        %v1703 = vsel %vm497, %v1607, 0
        %v1706 = vsel %vm497, %v1610, 0
        %v1709 = vsel %vm497, %v1613, 0
        %v1712 = vsel %vm497, %v1616, 0
        %v1715 = vsel %vm497, %v1619, 0
        %v1718 = vsel %vm497, %v1622, 0
        %v1721 = vsel %vm497, %v1625, 0
        %v1724 = vsel %vm497, %v1628, 0
        %v1727 = vsel %vm497, %v1631, 0
        %v1730 = vsel %vm497, %v1634, 0
        %v1733 = vsel %vm497, %v1637, 0
        %v1736 = vsel %vm497, %v1640, 0
        %v1739 = vsel %vm497, %v1643, 0
        %1741 = vmatprep.subr.bf16.mxu0 0
        %1742 = vmatpush1.bf16.xpose.msra.mxu0 %v1715
        %1743 = vmatprep.subr.bf16.mxu0 0
        %1744 = vmatpush1.bf16.xpose.msra.mxu0 %v1712
        %1745 = vmatprep.subr.bf16.mxu0 0
        %1746 = vmatpush1.bf16.xpose.msra.mxu0 %v1709
        %1747 = vmatprep.subr.bf16.mxu0 0
        %1748 = vmatpush1.bf16.xpose.msra.mxu0 %v1706
        %1749 = vmatprep.subr.bf16.mxu0 0
        %1750 = vmatpush1.bf16.xpose.msra.mxu0 %v1703
        %1751 = vmatprep.subr.bf16.mxu0 0
        %1752 = vmatpush1.bf16.xpose.msra.mxu0 %v1700
        %1753 = vmatprep.subr.bf16.mxu0 0
        %1754 = vmatpush1.bf16.xpose.msra.mxu0 %v1697
        %1755 = vmatprep.subr.bf16.mxu0 0
        %1756 = vmatpush1.bf16.xpose.msra.mxu0 %v1694
        %1757 = vmatprep.subr.bf16.mxu0 0
        %1758 = vmatpush2.bf16.xpose.msra.mxu0 %v1739
        %1759 = vmatprep.subr.bf16.mxu0 0
        %1760 = vmatpush2.bf16.xpose.msra.mxu0 %v1736
        %1761 = vmatprep.subr.bf16.mxu0 0
        %1762 = vmatpush2.bf16.xpose.msra.mxu0 %v1733
        %1763 = vmatprep.subr.bf16.mxu0 0
        %1764 = vmatpush2.bf16.xpose.msra.mxu0 %v1730
        %1765 = vmatprep.subr.bf16.mxu0 0
        %1766 = vmatpush2.bf16.xpose.msra.mxu0 %v1727
        %1767 = vmatprep.subr.bf16.mxu0 0
        %1768 = vmatpush2.bf16.xpose.msra.mxu0 %v1724
        %1769 = vmatprep.subr.bf16.mxu0 0
        %1770 = vmatpush2.bf16.xpose.msra.mxu0 %v1721
        %1771 = vmatprep.subr.bf16.mxu0 0
        %1772 = vmatpush2.bf16.xpose.msra.mxu0 %v1718
        %1773 = vmatprep.mubr.bf16.mxu0 0
        %1774 = vmatmul.mubr.bf16.gmra.mxu0 %v1646
        %v1775 = vpop.f32.mrf.mxu0
        %v1776 = vadd.f32 0.0, %v1775
        %v1777 = vpop.f32.mrf.mxu0
        %v1778 = vadd.f32 0.0, %v1777
        %v1779 = vpop.f32.mrf.mxu0
        %v1780 = vadd.f32 0.0, %v1779
        %v1781 = vpop.f32.mrf.mxu0
        %v1782 = vadd.f32 0.0, %v1781
        %1783 = vmatprep.mubr.bf16.mxu0 0
        %1784 = vmatmul.mubr.bf16.gmra.mxu0 %v1649
        %v1785 = vpop.f32.mrf.mxu0
        %v1786 = vadd.f32 0.0, %v1785
        %v1787 = vpop.f32.mrf.mxu0
        %v1788 = vadd.f32 0.0, %v1787
        %v1789 = vpop.f32.mrf.mxu0
        %v1790 = vadd.f32 0.0, %v1789
        %v1791 = vpop.f32.mrf.mxu0
        %v1792 = vadd.f32 0.0, %v1791
        %1793 = vmatprep.mubr.bf16.mxu0 0
        %1794 = vmatmul.mubr.bf16.gmra.mxu0 %v1652
        %v1795 = vpop.f32.mrf.mxu0
        %v1796 = vadd.f32 0.0, %v1795
        %v1797 = vpop.f32.mrf.mxu0
        %v1798 = vadd.f32 0.0, %v1797
        %v1799 = vpop.f32.mrf.mxu0
        %v1800 = vadd.f32 0.0, %v1799
        %v1801 = vpop.f32.mrf.mxu0
        %v1802 = vadd.f32 0.0, %v1801
        %1803 = vmatprep.mubr.bf16.mxu0 0
        %1804 = vmatmul.mubr.bf16.gmra.mxu0 %v1655
        %v1805 = vpop.f32.mrf.mxu0
        %v1806 = vadd.f32 0.0, %v1805
        %v1807 = vpop.f32.mrf.mxu0
        %v1808 = vadd.f32 0.0, %v1807
        %v1809 = vpop.f32.mrf.mxu0
        %v1810 = vadd.f32 0.0, %v1809
        %v1811 = vpop.f32.mrf.mxu0
        %v1812 = vadd.f32 0.0, %v1811
        %1813 = vmatprep.mubr.bf16.mxu0 0
        %1814 = vmatmul.mubr.bf16.gmra.mxu0 %v1658
        %v1815 = vpop.f32.mrf.mxu0
        %v1816 = vadd.f32 0.0, %v1815
        %v1817 = vpop.f32.mrf.mxu0
        %v1818 = vadd.f32 0.0, %v1817
        %v1819 = vpop.f32.mrf.mxu0
        %v1820 = vadd.f32 0.0, %v1819
        %v1821 = vpop.f32.mrf.mxu0
        %v1822 = vadd.f32 0.0, %v1821
        %1823 = vmatprep.mubr.bf16.mxu0 0
        %1824 = vmatmul.mubr.bf16.gmra.mxu0 %v1661
        %v1825 = vpop.f32.mrf.mxu0
        %v1826 = vadd.f32 0.0, %v1825
        %v1827 = vpop.f32.mrf.mxu0
        %v1828 = vadd.f32 0.0, %v1827
        %v1829 = vpop.f32.mrf.mxu0
        %v1830 = vadd.f32 0.0, %v1829
        %v1831 = vpop.f32.mrf.mxu0
        %v1832 = vadd.f32 0.0, %v1831
        %1833 = vmatprep.mubr.bf16.mxu0 0
        %1834 = vmatmul.mubr.bf16.gmra.mxu0 %v1664
        %v1835 = vpop.f32.mrf.mxu0
        %v1836 = vadd.f32 0.0, %v1835
        %v1837 = vpop.f32.mrf.mxu0
        %v1838 = vadd.f32 0.0, %v1837
        %v1839 = vpop.f32.mrf.mxu0
        %v1840 = vadd.f32 0.0, %v1839
        %v1841 = vpop.f32.mrf.mxu0
        %v1842 = vadd.f32 0.0, %v1841
        %1843 = vmatprep.mubr.bf16.mxu0 0
        %1844 = vmatmul.mubr.bf16.gmra.mxu0 %v1667
        %v1845 = vpop.f32.mrf.mxu0
        %v1846 = vadd.f32 0.0, %v1845
        %v1847 = vpop.f32.mrf.mxu0
        %v1848 = vadd.f32 0.0, %v1847
        %v1849 = vpop.f32.mrf.mxu0
        %v1850 = vadd.f32 0.0, %v1849
        %v1851 = vpop.f32.mrf.mxu0
        %v1852 = vadd.f32 0.0, %v1851
        %1853 = vmatprep.mubr.bf16.mxu0 0
        %1854 = vmatmul.mubr.bf16.gmra.mxu0 %v1670
        %v1855 = vpop.f32.mrf.mxu0
        %v1856 = vadd.f32 0.0, %v1855
        %v1857 = vpop.f32.mrf.mxu0
        %v1858 = vadd.f32 0.0, %v1857
        %v1859 = vpop.f32.mrf.mxu0
        %v1860 = vadd.f32 0.0, %v1859
        %v1861 = vpop.f32.mrf.mxu0
        %v1862 = vadd.f32 0.0, %v1861
        %1863 = vmatprep.mubr.bf16.mxu0 0
        %1864 = vmatmul.mubr.bf16.gmra.mxu0 %v1673
        %v1865 = vpop.f32.mrf.mxu0
        %v1866 = vadd.f32 0.0, %v1865
        %v1867 = vpop.f32.mrf.mxu0
        %v1868 = vadd.f32 0.0, %v1867
        %v1869 = vpop.f32.mrf.mxu0
        %v1870 = vadd.f32 0.0, %v1869
        %v1871 = vpop.f32.mrf.mxu0
        %v1872 = vadd.f32 0.0, %v1871
        %1873 = vmatprep.mubr.bf16.mxu0 0
        %1874 = vmatmul.mubr.bf16.gmra.mxu0 %v1676
        %v1875 = vpop.f32.mrf.mxu0
        %v1876 = vadd.f32 0.0, %v1875
        %v1877 = vpop.f32.mrf.mxu0
        %v1878 = vadd.f32 0.0, %v1877
        %v1879 = vpop.f32.mrf.mxu0
        %v1880 = vadd.f32 0.0, %v1879
        %v1881 = vpop.f32.mrf.mxu0
        %v1882 = vadd.f32 0.0, %v1881
        %1883 = vmatprep.mubr.bf16.mxu0 0
        %1884 = vmatmul.mubr.bf16.gmra.mxu0 %v1679
        %v1885 = vpop.f32.mrf.mxu0
        %v1886 = vadd.f32 0.0, %v1885
        %v1887 = vpop.f32.mrf.mxu0
        %v1888 = vadd.f32 0.0, %v1887
        %v1889 = vpop.f32.mrf.mxu0
        %v1890 = vadd.f32 0.0, %v1889
        %v1891 = vpop.f32.mrf.mxu0
        %v1892 = vadd.f32 0.0, %v1891
        %1893 = vmatprep.mubr.bf16.mxu0 0
        %1894 = vmatmul.mubr.bf16.gmra.mxu0 %v1682
        %v1895 = vpop.f32.mrf.mxu0
        %v1896 = vadd.f32 0.0, %v1895
        %v1897 = vpop.f32.mrf.mxu0
        %v1898 = vadd.f32 0.0, %v1897
        %v1899 = vpop.f32.mrf.mxu0
        %v1900 = vadd.f32 0.0, %v1899
        %v1901 = vpop.f32.mrf.mxu0
        %v1902 = vadd.f32 0.0, %v1901
        %1903 = vmatprep.mubr.bf16.mxu0 0
        %1904 = vmatmul.mubr.bf16.gmra.mxu0 %v1685
        %v1905 = vpop.f32.mrf.mxu0
        %v1906 = vadd.f32 0.0, %v1905
        %v1907 = vpop.f32.mrf.mxu0
        %v1908 = vadd.f32 0.0, %v1907
        %v1909 = vpop.f32.mrf.mxu0
        %v1910 = vadd.f32 0.0, %v1909
        %v1911 = vpop.f32.mrf.mxu0
        %v1912 = vadd.f32 0.0, %v1911
        %1913 = vmatprep.mubr.bf16.mxu0 0
        %1914 = vmatmul.mubr.bf16.gmra.mxu0 %v1688
        %v1915 = vpop.f32.mrf.mxu0
        %v1916 = vadd.f32 0.0, %v1915
        %v1917 = vpop.f32.mrf.mxu0
        %v1918 = vadd.f32 0.0, %v1917
        %v1919 = vpop.f32.mrf.mxu0
        %v1920 = vadd.f32 0.0, %v1919
        %v1921 = vpop.f32.mrf.mxu0
        %v1922 = vadd.f32 0.0, %v1921
        %1923 = vmatprep.mubr.bf16.mxu0 0
        %1924 = vmatmul.mubr.bf16.gmra.mxu0 %v1691
        %v1925 = vpop.f32.mrf.mxu0
        %v1926 = vadd.f32 0.0, %v1925
        %v1927 = vpop.f32.mrf.mxu0
        %v1928 = vadd.f32 0.0, %v1927
        %v1929 = vpop.f32.mrf.mxu0
        %v1930 = vadd.f32 0.0, %v1929
        %v1931 = vpop.f32.mrf.mxu0
        %v1932 = vadd.f32 0.0, %v1931
        %1933 = vdwg.mxu0
        %v1934 = vmax.f32 %v1776, %v1778
        %1935 = vmax.xlane.f32.xlu0 %v1934
        %v1936 = vpop.xlane.xlu0 %1935
        %v1937 = vmax.f32 %v1780, %v1782
        %1938 = vmax.xlane.f32.xlu0 %v1937
        %v1939 = vpop.xlane.xlu0 %1938
        %v1940 = vmax.f32 %v1786, %v1788
        %1941 = vmax.xlane.f32.xlu0 %v1940
        %v1942 = vpop.xlane.xlu0 %1941
        %v1943 = vmax.f32 %v1790, %v1792
        %1944 = vmax.xlane.f32.xlu0 %v1943
        %v1945 = vpop.xlane.xlu0 %1944
        %v1946 = vmax.f32 %v1796, %v1798
        %1947 = vmax.xlane.f32.xlu0 %v1946
        %v1948 = vpop.xlane.xlu0 %1947
        %v1949 = vmax.f32 %v1800, %v1802
        %1950 = vmax.xlane.f32.xlu0 %v1949
        %v1951 = vpop.xlane.xlu0 %1950
        %v1952 = vmax.f32 %v1806, %v1808
        %1953 = vmax.xlane.f32.xlu0 %v1952
        %v1954 = vpop.xlane.xlu0 %1953
        %v1955 = vmax.f32 %v1810, %v1812
        %1956 = vmax.xlane.f32.xlu0 %v1955
        %v1957 = vpop.xlane.xlu0 %1956
        %v1958 = vmax.f32 %v1816, %v1818
        %1959 = vmax.xlane.f32.xlu0 %v1958
        %v1960 = vpop.xlane.xlu0 %1959
        %v1961 = vmax.f32 %v1820, %v1822
        %1962 = vmax.xlane.f32.xlu0 %v1961
        %v1963 = vpop.xlane.xlu0 %1962
        %v1964 = vmax.f32 %v1826, %v1828
        %1965 = vmax.xlane.f32.xlu0 %v1964
        %v1966 = vpop.xlane.xlu0 %1965
        %v1967 = vmax.f32 %v1830, %v1832
        %1968 = vmax.xlane.f32.xlu0 %v1967
        %v1969 = vpop.xlane.xlu0 %1968
        %v1970 = vmax.f32 %v1836, %v1838
        %1971 = vmax.xlane.f32.xlu0 %v1970
        %v1972 = vpop.xlane.xlu0 %1971
        %v1973 = vmax.f32 %v1840, %v1842
        %1974 = vmax.xlane.f32.xlu0 %v1973
        %v1975 = vpop.xlane.xlu0 %1974
        %v1976 = vmax.f32 %v1846, %v1848
        %1977 = vmax.xlane.f32.xlu0 %v1976
        %v1978 = vpop.xlane.xlu0 %1977
        %v1979 = vmax.f32 %v1850, %v1852
        %1980 = vmax.xlane.f32.xlu0 %v1979
        %v1981 = vpop.xlane.xlu0 %1980
        %v1982 = vmax.f32 %v1856, %v1858
        %1983 = vmax.xlane.f32.xlu0 %v1982
        %v1984 = vpop.xlane.xlu0 %1983
        %v1985 = vmax.f32 %v1860, %v1862
        %1986 = vmax.xlane.f32.xlu0 %v1985
        %v1987 = vpop.xlane.xlu0 %1986
        %v1988 = vmax.f32 %v1866, %v1868
        %1989 = vmax.xlane.f32.xlu0 %v1988
        %v1990 = vpop.xlane.xlu0 %1989
        %v1991 = vmax.f32 %v1870, %v1872
        %1992 = vmax.xlane.f32.xlu0 %v1991
        %v1993 = vpop.xlane.xlu0 %1992
        %v1994 = vmax.f32 %v1876, %v1878
        %1995 = vmax.xlane.f32.xlu0 %v1994
        %v1996 = vpop.xlane.xlu0 %1995
        %v1997 = vmax.f32 %v1880, %v1882
        %1998 = vmax.xlane.f32.xlu0 %v1997
        %v1999 = vpop.xlane.xlu0 %1998
        %v2000 = vmax.f32 %v1886, %v1888
        %2001 = vmax.xlane.f32.xlu0 %v2000
        %v2002 = vpop.xlane.xlu0 %2001
        %v2003 = vmax.f32 %v1890, %v1892
        %2004 = vmax.xlane.f32.xlu0 %v2003
        %v2005 = vpop.xlane.xlu0 %2004
        %v2006 = vmax.f32 %v1896, %v1898
        %2007 = vmax.xlane.f32.xlu0 %v2006
        %v2008 = vpop.xlane.xlu0 %2007
        %v2009 = vmax.f32 %v1900, %v1902
        %2010 = vmax.xlane.f32.xlu0 %v2009
        %v2011 = vpop.xlane.xlu0 %2010
        %v2012 = vmax.f32 %v1906, %v1908
        %2013 = vmax.xlane.f32.xlu0 %v2012
        %v2014 = vpop.xlane.xlu0 %2013
        %v2015 = vmax.f32 %v1910, %v1912
        %2016 = vmax.xlane.f32.xlu0 %v2015
        %v2017 = vpop.xlane.xlu0 %2016
        %v2018 = vmax.f32 %v1916, %v1918
        %2019 = vmax.xlane.f32.xlu0 %v2018
        %v2020 = vpop.xlane.xlu0 %2019
        %v2021 = vmax.f32 %v1920, %v1922
        %2022 = vmax.xlane.f32.xlu0 %v2021
        %v2023 = vpop.xlane.xlu0 %2022
        %v2024 = vmax.f32 %v1926, %v1928
        %2025 = vmax.xlane.f32.xlu0 %v2024
        %v2026 = vpop.xlane.xlu0 %2025
        %v2027 = vmax.f32 %v1930, %v1932
        %2028 = vmax.xlane.f32.xlu0 %v2027
        %v2029 = vpop.xlane.xlu0 %2028
        %v2030 = vsub.f32 %v1776, %v1936
        %v2031 = vsub.f32 %v1778, %v1936
        %v2032 = vsub.f32 %v1780, %v1939
        %v2033 = vsub.f32 %v1782, %v1939
        %v2034 = vsub.f32 %v1786, %v1942
        %v2035 = vsub.f32 %v1788, %v1942
        %v2036 = vsub.f32 %v1790, %v1945
        %v2037 = vsub.f32 %v1792, %v1945
        %v2038 = vsub.f32 %v1796, %v1948
        %v2039 = vsub.f32 %v1798, %v1948
        %v2040 = vsub.f32 %v1800, %v1951
        %v2041 = vsub.f32 %v1802, %v1951
        %v2042 = vsub.f32 %v1806, %v1954
        %v2043 = vsub.f32 %v1808, %v1954
        %v2044 = vsub.f32 %v1810, %v1957
        %v2045 = vsub.f32 %v1812, %v1957
        %v2046 = vsub.f32 %v1816, %v1960
        %v2047 = vsub.f32 %v1818, %v1960
        %v2048 = vsub.f32 %v1820, %v1963
        %v2049 = vsub.f32 %v1822, %v1963
        %v2050 = vsub.f32 %v1826, %v1966
        %v2051 = vsub.f32 %v1828, %v1966
        %v2052 = vsub.f32 %v1830, %v1969
        %v2053 = vsub.f32 %v1832, %v1969
        %v2054 = vsub.f32 %v1836, %v1972
        %v2055 = vsub.f32 %v1838, %v1972
        %v2056 = vsub.f32 %v1840, %v1975
        %v2057 = vsub.f32 %v1842, %v1975
        %v2058 = vsub.f32 %v1846, %v1978
        %v2059 = vsub.f32 %v1848, %v1978
        %v2060 = vsub.f32 %v1850, %v1981
        %v2061 = vsub.f32 %v1852, %v1981
        %v2062 = vsub.f32 %v1856, %v1984
        %v2063 = vsub.f32 %v1858, %v1984
        %v2064 = vsub.f32 %v1860, %v1987
        %v2065 = vsub.f32 %v1862, %v1987
        %v2066 = vsub.f32 %v1866, %v1990
        %v2067 = vsub.f32 %v1868, %v1990
        %v2068 = vsub.f32 %v1870, %v1993
        %v2069 = vsub.f32 %v1872, %v1993
        %v2070 = vsub.f32 %v1876, %v1996
        %v2071 = vsub.f32 %v1878, %v1996
        %v2072 = vsub.f32 %v1880, %v1999
        %v2073 = vsub.f32 %v1882, %v1999
        %v2074 = vsub.f32 %v1886, %v2002
        %v2075 = vsub.f32 %v1888, %v2002
        %v2076 = vsub.f32 %v1890, %v2005
        %v2077 = vsub.f32 %v1892, %v2005
        %v2078 = vsub.f32 %v1896, %v2008
        %v2079 = vsub.f32 %v1898, %v2008
        %v2080 = vsub.f32 %v1900, %v2011
        %v2081 = vsub.f32 %v1902, %v2011
        %v2082 = vsub.f32 %v1906, %v2014
        %v2083 = vsub.f32 %v1908, %v2014
        %v2084 = vsub.f32 %v1910, %v2017
        %v2085 = vsub.f32 %v1912, %v2017
        %v2086 = vsub.f32 %v1916, %v2020
        %v2087 = vsub.f32 %v1918, %v2020
        %v2088 = vsub.f32 %v1920, %v2023
        %v2089 = vsub.f32 %v1922, %v2023
        %v2090 = vsub.f32 %v1926, %v2026
        %v2091 = vsub.f32 %v1928, %v2026
        %v2092 = vsub.f32 %v1930, %v2029
        %v2093 = vsub.f32 %v1932, %v2029
        %v2094 = vmul.f32 %v2030, 1.442695
        %v2095 = vpow.pop %v2094
        %v2096 = vmul.f32 %v2031, 1.442695
        %v2097 = vpow.pop %v2096
        %v2098 = vmul.f32 %v2032, 1.442695
        %v2099 = vpow.pop %v2098
        %v2100 = vmul.f32 %v2033, 1.442695
        %v2101 = vpow.pop %v2100
        %v2102 = vmul.f32 %v2034, 1.442695
        %v2103 = vpow.pop %v2102
        %v2104 = vmul.f32 %v2035, 1.442695
        %v2105 = vpow.pop %v2104
        %v2106 = vmul.f32 %v2036, 1.442695
        %v2107 = vpow.pop %v2106
        %v2108 = vmul.f32 %v2037, 1.442695
        %v2109 = vpow.pop %v2108
        %v2110 = vmul.f32 %v2038, 1.442695
        %v2111 = vpow.pop %v2110
        %v2112 = vmul.f32 %v2039, 1.442695
        %v2113 = vpow.pop %v2112
        %v2114 = vmul.f32 %v2040, 1.442695
        %v2115 = vpow.pop %v2114
        %v2116 = vmul.f32 %v2041, 1.442695
        %v2117 = vpow.pop %v2116
        %v2118 = vmul.f32 %v2042, 1.442695
        %v2119 = vpow.pop %v2118
        %v2120 = vmul.f32 %v2043, 1.442695
        %v2121 = vpow.pop %v2120
        %v2122 = vmul.f32 %v2044, 1.442695
        %v2123 = vpow.pop %v2122
        %v2124 = vmul.f32 %v2045, 1.442695
        %v2125 = vpow.pop %v2124
        %v2126 = vmul.f32 %v2046, 1.442695
        %v2127 = vpow.pop %v2126
        %v2128 = vmul.f32 %v2047, 1.442695
        %v2129 = vpow.pop %v2128
        %v2130 = vmul.f32 %v2048, 1.442695
        %v2131 = vpow.pop %v2130
        %v2132 = vmul.f32 %v2049, 1.442695
        %v2133 = vpow.pop %v2132
        %v2134 = vmul.f32 %v2050, 1.442695
        %v2135 = vpow.pop %v2134
        %v2136 = vmul.f32 %v2051, 1.442695
        %v2137 = vpow.pop %v2136
        %v2138 = vmul.f32 %v2052, 1.442695
        %v2139 = vpow.pop %v2138
        %v2140 = vmul.f32 %v2053, 1.442695
        %v2141 = vpow.pop %v2140
        %v2142 = vmul.f32 %v2054, 1.442695
        %v2143 = vpow.pop %v2142
        %v2144 = vmul.f32 %v2055, 1.442695
        %v2145 = vpow.pop %v2144
        %v2146 = vmul.f32 %v2056, 1.442695
        %v2147 = vpow.pop %v2146
        %v2148 = vmul.f32 %v2057, 1.442695
        %v2149 = vpow.pop %v2148
        %v2150 = vmul.f32 %v2058, 1.442695
        %v2151 = vpow.pop %v2150
        %v2152 = vmul.f32 %v2059, 1.442695
        %v2153 = vpow.pop %v2152
        %v2154 = vmul.f32 %v2060, 1.442695
        %v2155 = vpow.pop %v2154
        %v2156 = vmul.f32 %v2061, 1.442695
        %v2157 = vpow.pop %v2156
        %v2158 = vmul.f32 %v2062, 1.442695
        %v2159 = vpow.pop %v2158
        %v2160 = vmul.f32 %v2063, 1.442695
        %v2161 = vpow.pop %v2160
        %v2162 = vmul.f32 %v2064, 1.442695
        %v2163 = vpow.pop %v2162
        %v2164 = vmul.f32 %v2065, 1.442695
        %v2165 = vpow.pop %v2164
        %v2166 = vmul.f32 %v2066, 1.442695
        %v2167 = vpow.pop %v2166
        %v2168 = vmul.f32 %v2067, 1.442695
        %v2169 = vpow.pop %v2168
        %v2170 = vmul.f32 %v2068, 1.442695
        %v2171 = vpow.pop %v2170
        %v2172 = vmul.f32 %v2069, 1.442695
        %v2173 = vpow.pop %v2172
        %v2174 = vmul.f32 %v2070, 1.442695
        %v2175 = vpow.pop %v2174
        %v2176 = vmul.f32 %v2071, 1.442695
        %v2177 = vpow.pop %v2176
        %v2178 = vmul.f32 %v2072, 1.442695
        %v2179 = vpow.pop %v2178
        %v2180 = vmul.f32 %v2073, 1.442695
        %v2181 = vpow.pop %v2180
        %v2182 = vmul.f32 %v2074, 1.442695
        %v2183 = vpow.pop %v2182
        %v2184 = vmul.f32 %v2075, 1.442695
        %v2185 = vpow.pop %v2184
        %v2186 = vmul.f32 %v2076, 1.442695
        %v2187 = vpow.pop %v2186
        %v2188 = vmul.f32 %v2077, 1.442695
        %v2189 = vpow.pop %v2188
        %v2190 = vmul.f32 %v2078, 1.442695
        %v2191 = vpow.pop %v2190
        %v2192 = vmul.f32 %v2079, 1.442695
        %v2193 = vpow.pop %v2192
        %v2194 = vmul.f32 %v2080, 1.442695
        %v2195 = vpow.pop %v2194
        %v2196 = vmul.f32 %v2081, 1.442695
        %v2197 = vpow.pop %v2196
        %v2198 = vmul.f32 %v2082, 1.442695
        %v2199 = vpow.pop %v2198
        %v2200 = vmul.f32 %v2083, 1.442695
        %v2201 = vpow.pop %v2200
        %v2202 = vmul.f32 %v2084, 1.442695
        %v2203 = vpow.pop %v2202
        %v2204 = vmul.f32 %v2085, 1.442695
        %v2205 = vpow.pop %v2204
        %v2206 = vmul.f32 %v2086, 1.442695
        %v2207 = vpow.pop %v2206
        %v2208 = vmul.f32 %v2087, 1.442695
        %v2209 = vpow.pop %v2208
        %v2210 = vmul.f32 %v2088, 1.442695
        %v2211 = vpow.pop %v2210
        %v2212 = vmul.f32 %v2089, 1.442695
        %v2213 = vpow.pop %v2212
        %v2214 = vmul.f32 %v2090, 1.442695
        %v2215 = vpow.pop %v2214
        %v2216 = vmul.f32 %v2091, 1.442695
        %v2217 = vpow.pop %v2216
        %v2218 = vmul.f32 %v2092, 1.442695
        %v2219 = vpow.pop %v2218
        %v2220 = vmul.f32 %v2093, 1.442695
        %v2221 = vpow.pop %v2220
        %v2222 = vadd.f32 %v2095, %v2097
        %2223 = vadd.xlane.f32.xlu0 %v2222
        %v2224 = vpop.xlane.xlu0 %2223
        %v2225 = vadd.f32 %v2099, %v2101
        %2226 = vadd.xlane.f32.xlu0 %v2225
        %v2227 = vpop.xlane.xlu0 %2226
        %v2228 = vadd.f32 %v2103, %v2105
        %2229 = vadd.xlane.f32.xlu0 %v2228
        %v2230 = vpop.xlane.xlu0 %2229
        %v2231 = vadd.f32 %v2107, %v2109
        %2232 = vadd.xlane.f32.xlu0 %v2231
        %v2233 = vpop.xlane.xlu0 %2232
        %v2234 = vadd.f32 %v2111, %v2113
        %2235 = vadd.xlane.f32.xlu0 %v2234
        %v2236 = vpop.xlane.xlu0 %2235
        %v2237 = vadd.f32 %v2115, %v2117
        %2238 = vadd.xlane.f32.xlu0 %v2237
        %v2239 = vpop.xlane.xlu0 %2238
        %v2240 = vadd.f32 %v2119, %v2121
        %2241 = vadd.xlane.f32.xlu0 %v2240
        %v2242 = vpop.xlane.xlu0 %2241
        %v2243 = vadd.f32 %v2123, %v2125
        %2244 = vadd.xlane.f32.xlu0 %v2243
        %v2245 = vpop.xlane.xlu0 %2244
        %v2246 = vadd.f32 %v2127, %v2129
        %2247 = vadd.xlane.f32.xlu0 %v2246
        %v2248 = vpop.xlane.xlu0 %2247
        %v2249 = vadd.f32 %v2131, %v2133
        %2250 = vadd.xlane.f32.xlu0 %v2249
        %v2251 = vpop.xlane.xlu0 %2250
        %v2252 = vadd.f32 %v2135, %v2137
        %2253 = vadd.xlane.f32.xlu0 %v2252
        %v2254 = vpop.xlane.xlu0 %2253
        %v2255 = vadd.f32 %v2139, %v2141
        %2256 = vadd.xlane.f32.xlu0 %v2255
        %v2257 = vpop.xlane.xlu0 %2256
        %v2258 = vadd.f32 %v2143, %v2145
        %2259 = vadd.xlane.f32.xlu0 %v2258
        %v2260 = vpop.xlane.xlu0 %2259
        %v2261 = vadd.f32 %v2147, %v2149
        %2262 = vadd.xlane.f32.xlu0 %v2261
        %v2263 = vpop.xlane.xlu0 %2262
        %v2264 = vadd.f32 %v2151, %v2153
        %2265 = vadd.xlane.f32.xlu0 %v2264
        %v2266 = vpop.xlane.xlu0 %2265
        %v2267 = vadd.f32 %v2155, %v2157
        %2268 = vadd.xlane.f32.xlu0 %v2267
        %v2269 = vpop.xlane.xlu0 %2268
        %v2270 = vadd.f32 %v2159, %v2161
        %2271 = vadd.xlane.f32.xlu0 %v2270
        %v2272 = vpop.xlane.xlu0 %2271
        %v2273 = vadd.f32 %v2163, %v2165
        %2274 = vadd.xlane.f32.xlu0 %v2273
        %v2275 = vpop.xlane.xlu0 %2274
        %v2276 = vadd.f32 %v2167, %v2169
        %2277 = vadd.xlane.f32.xlu0 %v2276
        %v2278 = vpop.xlane.xlu0 %2277
        %v2279 = vadd.f32 %v2171, %v2173
        %2280 = vadd.xlane.f32.xlu0 %v2279
        %v2281 = vpop.xlane.xlu0 %2280
        %v2282 = vadd.f32 %v2175, %v2177
        %2283 = vadd.xlane.f32.xlu0 %v2282
        %v2284 = vpop.xlane.xlu0 %2283
        %v2285 = vadd.f32 %v2179, %v2181
        %2286 = vadd.xlane.f32.xlu0 %v2285
        %v2287 = vpop.xlane.xlu0 %2286
        %v2288 = vadd.f32 %v2183, %v2185
        %2289 = vadd.xlane.f32.xlu0 %v2288
        %v2290 = vpop.xlane.xlu0 %2289
        %v2291 = vadd.f32 %v2187, %v2189
        %2292 = vadd.xlane.f32.xlu0 %v2291
        %v2293 = vpop.xlane.xlu0 %2292
        %v2294 = vadd.f32 %v2191, %v2193
        %2295 = vadd.xlane.f32.xlu0 %v2294
        %v2296 = vpop.xlane.xlu0 %2295
        %v2297 = vadd.f32 %v2195, %v2197
        %2298 = vadd.xlane.f32.xlu0 %v2297
        %v2299 = vpop.xlane.xlu0 %2298
        %v2300 = vadd.f32 %v2199, %v2201
        %2301 = vadd.xlane.f32.xlu0 %v2300
        %v2302 = vpop.xlane.xlu0 %2301
        %v2303 = vadd.f32 %v2203, %v2205
        %2304 = vadd.xlane.f32.xlu0 %v2303
        %v2305 = vpop.xlane.xlu0 %2304
        %v2306 = vadd.f32 %v2207, %v2209
        %2307 = vadd.xlane.f32.xlu0 %v2306
        %v2308 = vpop.xlane.xlu0 %2307
        %v2309 = vadd.f32 %v2211, %v2213
        %2310 = vadd.xlane.f32.xlu0 %v2309
        %v2311 = vpop.xlane.xlu0 %2310
        %v2312 = vadd.f32 %v2215, %v2217
        %2313 = vadd.xlane.f32.xlu0 %v2312
        %v2314 = vpop.xlane.xlu0 %2313
        %v2315 = vadd.f32 %v2219, %v2221
        %2316 = vadd.xlane.f32.xlu0 %v2315
        %v2317 = vpop.xlane.xlu0 %2316
        %v2318 = vrcp.pop %v2224
        %v2319 = vrcp.pop %v2227
        %v2320 = vrcp.pop %v2230
        %v2321 = vrcp.pop %v2233
        %v2322 = vrcp.pop %v2236
        %v2323 = vrcp.pop %v2239
        %v2324 = vrcp.pop %v2242
        %v2325 = vrcp.pop %v2245
        %v2326 = vrcp.pop %v2248
        %v2327 = vrcp.pop %v2251
        %v2328 = vrcp.pop %v2254
        %v2329 = vrcp.pop %v2257
        %v2330 = vrcp.pop %v2260
        %v2331 = vrcp.pop %v2263
        %v2332 = vrcp.pop %v2266
        %v2333 = vrcp.pop %v2269
        %v2334 = vrcp.pop %v2272
        %v2335 = vrcp.pop %v2275
        %v2336 = vrcp.pop %v2278
        %v2337 = vrcp.pop %v2281
        %v2338 = vrcp.pop %v2284
        %v2339 = vrcp.pop %v2287
        %v2340 = vrcp.pop %v2290
        %v2341 = vrcp.pop %v2293
        %v2342 = vrcp.pop %v2296
        %v2343 = vrcp.pop %v2299
        %v2344 = vrcp.pop %v2302
        %v2345 = vrcp.pop %v2305
        %v2346 = vrcp.pop %v2308
        %v2347 = vrcp.pop %v2311
        %v2348 = vrcp.pop %v2314
        %v2349 = vrcp.pop %v2317
        %v2350 = vmul.f32 %v2095, %v2318
        %v2351 = vmul.f32 %v2097, %v2318
        %v2352 = vmul.f32 %v2099, %v2319
        %v2353 = vmul.f32 %v2101, %v2319
        %v2354 = vmul.f32 %v2103, %v2320
        %v2355 = vmul.f32 %v2105, %v2320
        %v2356 = vmul.f32 %v2107, %v2321
        %v2357 = vmul.f32 %v2109, %v2321
        %v2358 = vmul.f32 %v2111, %v2322
        %v2359 = vmul.f32 %v2113, %v2322
        %v2360 = vmul.f32 %v2115, %v2323
        %v2361 = vmul.f32 %v2117, %v2323
        %v2362 = vmul.f32 %v2119, %v2324
        %v2363 = vmul.f32 %v2121, %v2324
        %v2364 = vmul.f32 %v2123, %v2325
        %v2365 = vmul.f32 %v2125, %v2325
        %v2366 = vmul.f32 %v2127, %v2326
        %v2367 = vmul.f32 %v2129, %v2326
        %v2368 = vmul.f32 %v2131, %v2327
        %v2369 = vmul.f32 %v2133, %v2327
        %v2370 = vmul.f32 %v2135, %v2328
        %v2371 = vmul.f32 %v2137, %v2328
        %v2372 = vmul.f32 %v2139, %v2329
        %v2373 = vmul.f32 %v2141, %v2329
        %v2374 = vmul.f32 %v2143, %v2330
        %v2375 = vmul.f32 %v2145, %v2330
        %v2376 = vmul.f32 %v2147, %v2331
        %v2377 = vmul.f32 %v2149, %v2331
        %v2378 = vmul.f32 %v2151, %v2332
        %v2379 = vmul.f32 %v2153, %v2332
        %v2380 = vmul.f32 %v2155, %v2333
        %v2381 = vmul.f32 %v2157, %v2333
        %v2382 = vmul.f32 %v2159, %v2334
        %v2383 = vmul.f32 %v2161, %v2334
        %v2384 = vmul.f32 %v2163, %v2335
        %v2385 = vmul.f32 %v2165, %v2335
        %v2386 = vmul.f32 %v2167, %v2336
        %v2387 = vmul.f32 %v2169, %v2336
        %v2388 = vmul.f32 %v2171, %v2337
        %v2389 = vmul.f32 %v2173, %v2337
        %v2390 = vmul.f32 %v2175, %v2338
        %v2391 = vmul.f32 %v2177, %v2338
        %v2392 = vmul.f32 %v2179, %v2339
        %v2393 = vmul.f32 %v2181, %v2339
        %v2394 = vmul.f32 %v2183, %v2340
        %v2395 = vmul.f32 %v2185, %v2340
        %v2396 = vmul.f32 %v2187, %v2341
        %v2397 = vmul.f32 %v2189, %v2341
        %v2398 = vmul.f32 %v2191, %v2342
        %v2399 = vmul.f32 %v2193, %v2342
        %v2400 = vmul.f32 %v2195, %v2343
        %v2401 = vmul.f32 %v2197, %v2343
        %v2402 = vmul.f32 %v2199, %v2344
        %v2403 = vmul.f32 %v2201, %v2344
        %v2404 = vmul.f32 %v2203, %v2345
        %v2405 = vmul.f32 %v2205, %v2345
        %v2406 = vmul.f32 %v2207, %v2346
        %v2407 = vmul.f32 %v2209, %v2346
        %v2408 = vmul.f32 %v2211, %v2347
        %v2409 = vmul.f32 %v2213, %v2347
        %v2410 = vmul.f32 %v2215, %v2348
        %v2411 = vmul.f32 %v2217, %v2348
        %v2412 = vmul.f32 %v2219, %v2349
        %v2413 = vmul.f32 %v2221, %v2349
        %v2414 = vpack.c.bf16 %v2352, %v2350
        %v2415 = vpack.c.bf16 %v2353, %v2351
        %v2416 = vpack.c.bf16 %v2356, %v2354
        %v2417 = vpack.c.bf16 %v2357, %v2355
        %v2418 = vpack.c.bf16 %v2360, %v2358
        %v2419 = vpack.c.bf16 %v2361, %v2359
        %v2420 = vpack.c.bf16 %v2364, %v2362
        %v2421 = vpack.c.bf16 %v2365, %v2363
        %v2422 = vpack.c.bf16 %v2368, %v2366
        %v2423 = vpack.c.bf16 %v2369, %v2367
        %v2424 = vpack.c.bf16 %v2372, %v2370
        %v2425 = vpack.c.bf16 %v2373, %v2371
        %v2426 = vpack.c.bf16 %v2376, %v2374
        %v2427 = vpack.c.bf16 %v2377, %v2375
        %v2428 = vpack.c.bf16 %v2380, %v2378
        %v2429 = vpack.c.bf16 %v2381, %v2379
        %v2430 = vpack.c.bf16 %v2384, %v2382
        %v2431 = vpack.c.bf16 %v2385, %v2383
        %v2432 = vpack.c.bf16 %v2388, %v2386
        %v2433 = vpack.c.bf16 %v2389, %v2387
        %v2434 = vpack.c.bf16 %v2392, %v2390
        %v2435 = vpack.c.bf16 %v2393, %v2391
        %v2436 = vpack.c.bf16 %v2396, %v2394
        %v2437 = vpack.c.bf16 %v2397, %v2395
        %v2438 = vpack.c.bf16 %v2400, %v2398
        %v2439 = vpack.c.bf16 %v2401, %v2399
        %v2440 = vpack.c.bf16 %v2404, %v2402
        %v2441 = vpack.c.bf16 %v2405, %v2403
        %v2442 = vpack.c.bf16 %v2408, %v2406
        %v2443 = vpack.c.bf16 %v2409, %v2407
        %v2444 = vpack.c.bf16 %v2412, %v2410
        %v2445 = vpack.c.bf16 %v2413, %v2411
        %2446 = vmatprep.subr.bf16.mxu0 0
        %2447 = vmatpush1.bf16.msra.mxu0 %v1620
        %2448 = vmatprep.subr.bf16.mxu0 0
        %2449 = vmatpush1.bf16.msra.mxu0 %v1617
        %2450 = vmatprep.subr.bf16.mxu0 0
        %2451 = vmatpush1.bf16.msra.mxu0 %v1614
        %2452 = vmatprep.subr.bf16.mxu0 0
        %2453 = vmatpush1.bf16.msra.mxu0 %v1611
        %2454 = vmatprep.subr.bf16.mxu0 0
        %2455 = vmatpush1.bf16.msra.mxu0 %v1608
        %2456 = vmatprep.subr.bf16.mxu0 0
        %2457 = vmatpush1.bf16.msra.mxu0 %v1605
        %2458 = vmatprep.subr.bf16.mxu0 0
        %2459 = vmatpush1.bf16.msra.mxu0 %v1602
        %2460 = vmatprep.subr.bf16.mxu0 0
        %2461 = vmatpush1.bf16.msra.mxu0 %v1599
        %2462 = vmatprep.subr.bf16.mxu0 0
        %2463 = vmatpush2.bf16.msra.mxu0 %v1644
        %2464 = vmatprep.subr.bf16.mxu0 0
        %2465 = vmatpush2.bf16.msra.mxu0 %v1641
        %2466 = vmatprep.subr.bf16.mxu0 0
        %2467 = vmatpush2.bf16.msra.mxu0 %v1638
        %2468 = vmatprep.subr.bf16.mxu0 0
        %2469 = vmatpush2.bf16.msra.mxu0 %v1635
        %2470 = vmatprep.subr.bf16.mxu0 0
        %2471 = vmatpush2.bf16.msra.mxu0 %v1632
        %2472 = vmatprep.subr.bf16.mxu0 0
        %2473 = vmatpush2.bf16.msra.mxu0 %v1629
        %2474 = vmatprep.subr.bf16.mxu0 0
        %2475 = vmatpush2.bf16.msra.mxu0 %v1626
        %2476 = vmatprep.subr.bf16.mxu0 0
        %2477 = vmatpush2.bf16.msra.mxu0 %v1623
        %2478 = vmatprep.mubr.bf16.mxu0 %v2415
        %2479 = vmatmul.mubr.bf16.gmra.mxu0 %v2414
        %v2480 = vpop.f32.mrf.mxu0
        %v2481 = vadd.f32 0.0, %v2480
        %v2482 = vpop.f32.mrf.mxu0
        %v2483 = vpop.f32.mrf.mxu0
        %v2484 = vadd.f32 0.0, %v2483
        %v2485 = vpop.f32.mrf.mxu0
        %2486 = vmatprep.mubr.bf16.mxu0 %v2417
        %2487 = vmatmul.mubr.bf16.gmra.mxu0 %v2416
        %v2488 = vpop.f32.mrf.mxu0
        %v2489 = vadd.f32 0.0, %v2488
        %v2490 = vpop.f32.mrf.mxu0
        %v2491 = vpop.f32.mrf.mxu0
        %v2492 = vadd.f32 0.0, %v2491
        %v2493 = vpop.f32.mrf.mxu0
        %2494 = vmatprep.mubr.bf16.mxu0 %v2419
        %2495 = vmatmul.mubr.bf16.gmra.mxu0 %v2418
        %v2496 = vpop.f32.mrf.mxu0
        %v2497 = vadd.f32 0.0, %v2496
        %v2498 = vpop.f32.mrf.mxu0
        %v2499 = vpop.f32.mrf.mxu0
        %v2500 = vadd.f32 0.0, %v2499
        %v2501 = vpop.f32.mrf.mxu0
        %2502 = vmatprep.mubr.bf16.mxu0 %v2421
        %2503 = vmatmul.mubr.bf16.gmra.mxu0 %v2420
        %v2504 = vpop.f32.mrf.mxu0
        %v2505 = vadd.f32 0.0, %v2504
        %v2506 = vpop.f32.mrf.mxu0
        %v2507 = vpop.f32.mrf.mxu0
        %v2508 = vadd.f32 0.0, %v2507
        %v2509 = vpop.f32.mrf.mxu0
        %2510 = vmatprep.mubr.bf16.mxu0 %v2423
        %2511 = vmatmul.mubr.bf16.gmra.mxu0 %v2422
        %v2512 = vpop.f32.mrf.mxu0
        %v2513 = vadd.f32 0.0, %v2512
        %v2514 = vpop.f32.mrf.mxu0
        %v2515 = vpop.f32.mrf.mxu0
        %v2516 = vadd.f32 0.0, %v2515
        %v2517 = vpop.f32.mrf.mxu0
        %2518 = vmatprep.mubr.bf16.mxu0 %v2425
        %2519 = vmatmul.mubr.bf16.gmra.mxu0 %v2424
        %v2520 = vpop.f32.mrf.mxu0
        %v2521 = vadd.f32 0.0, %v2520
        %v2522 = vpop.f32.mrf.mxu0
        %v2523 = vpop.f32.mrf.mxu0
        %v2524 = vadd.f32 0.0, %v2523
        %v2525 = vpop.f32.mrf.mxu0
        %2526 = vmatprep.mubr.bf16.mxu0 %v2427
        %2527 = vmatmul.mubr.bf16.gmra.mxu0 %v2426
        %v2528 = vpop.f32.mrf.mxu0
        %v2529 = vadd.f32 0.0, %v2528
        %v2530 = vpop.f32.mrf.mxu0
        %v2531 = vpop.f32.mrf.mxu0
        %v2532 = vadd.f32 0.0, %v2531
        %v2533 = vpop.f32.mrf.mxu0
        %2534 = vmatprep.mubr.bf16.mxu0 %v2429
        %2535 = vmatmul.mubr.bf16.gmra.mxu0 %v2428
        %v2536 = vpop.f32.mrf.mxu0
        %v2537 = vadd.f32 0.0, %v2536
        %v2538 = vpop.f32.mrf.mxu0
        %v2539 = vpop.f32.mrf.mxu0
        %v2540 = vadd.f32 0.0, %v2539
        %v2541 = vpop.f32.mrf.mxu0
        %2542 = vmatprep.mubr.bf16.mxu0 %v2431
        %2543 = vmatmul.mubr.bf16.gmra.mxu0 %v2430
        %v2544 = vpop.f32.mrf.mxu0
        %v2545 = vadd.f32 0.0, %v2544
        %v2546 = vpop.f32.mrf.mxu0
        %v2547 = vpop.f32.mrf.mxu0
        %v2548 = vadd.f32 0.0, %v2547
        %v2549 = vpop.f32.mrf.mxu0
        %2550 = vmatprep.mubr.bf16.mxu0 %v2433
        %2551 = vmatmul.mubr.bf16.gmra.mxu0 %v2432
        %v2552 = vpop.f32.mrf.mxu0
        %v2553 = vadd.f32 0.0, %v2552
        %v2554 = vpop.f32.mrf.mxu0
        %v2555 = vpop.f32.mrf.mxu0
        %v2556 = vadd.f32 0.0, %v2555
        %v2557 = vpop.f32.mrf.mxu0
        %2558 = vmatprep.mubr.bf16.mxu0 %v2435
        %2559 = vmatmul.mubr.bf16.gmra.mxu0 %v2434
        %v2560 = vpop.f32.mrf.mxu0
        %v2561 = vadd.f32 0.0, %v2560
        %v2562 = vpop.f32.mrf.mxu0
        %v2563 = vpop.f32.mrf.mxu0
        %v2564 = vadd.f32 0.0, %v2563
        %v2565 = vpop.f32.mrf.mxu0
        %2566 = vmatprep.mubr.bf16.mxu0 %v2437
        %2567 = vmatmul.mubr.bf16.gmra.mxu0 %v2436
        %v2568 = vpop.f32.mrf.mxu0
        %v2569 = vadd.f32 0.0, %v2568
        %v2570 = vpop.f32.mrf.mxu0
        %v2571 = vpop.f32.mrf.mxu0
        %v2572 = vadd.f32 0.0, %v2571
        %v2573 = vpop.f32.mrf.mxu0
        %2574 = vmatprep.mubr.bf16.mxu0 %v2439
        %2575 = vmatmul.mubr.bf16.gmra.mxu0 %v2438
        %v2576 = vpop.f32.mrf.mxu0
        %v2577 = vadd.f32 0.0, %v2576
        %v2578 = vpop.f32.mrf.mxu0
        %v2579 = vpop.f32.mrf.mxu0
        %v2580 = vadd.f32 0.0, %v2579
        %v2581 = vpop.f32.mrf.mxu0
        %2582 = vmatprep.mubr.bf16.mxu0 %v2441
        %2583 = vmatmul.mubr.bf16.gmra.mxu0 %v2440
        %v2584 = vpop.f32.mrf.mxu0
        %v2585 = vadd.f32 0.0, %v2584
        %v2586 = vpop.f32.mrf.mxu0
        %v2587 = vpop.f32.mrf.mxu0
        %v2588 = vadd.f32 0.0, %v2587
        %v2589 = vpop.f32.mrf.mxu0
        %2590 = vmatprep.mubr.bf16.mxu0 %v2443
        %2591 = vmatmul.mubr.bf16.gmra.mxu0 %v2442
        %v2592 = vpop.f32.mrf.mxu0
        %v2593 = vadd.f32 0.0, %v2592
        %v2594 = vpop.f32.mrf.mxu0
        %v2595 = vpop.f32.mrf.mxu0
        %v2596 = vadd.f32 0.0, %v2595
        %v2597 = vpop.f32.mrf.mxu0
        %2598 = vmatprep.mubr.bf16.mxu0 %v2445
        %2599 = vmatmul.mubr.bf16.gmra.mxu0 %v2444
        %v2600 = vpop.f32.mrf.mxu0
        %v2601 = vadd.f32 0.0, %v2600
        %v2602 = vpop.f32.mrf.mxu0
        %v2603 = vpop.f32.mrf.mxu0
        %v2604 = vadd.f32 0.0, %v2603
        %v2605 = vpop.f32.mrf.mxu0
        %2606 = vdwg.mxu0
        %2623 = vrot.lane.b32.xlu0 %v1597, 96
        %v2624 = vpop.permute.xlu0 %2623
        %2625 = vrot.lane.b32.xlu0 %v1600, 96
        %v2626 = vpop.permute.xlu0 %2625
        %2627 = vrot.lane.b32.xlu0 %v1603, 96
        %v2628 = vpop.permute.xlu0 %2627
        %2629 = vrot.lane.b32.xlu0 %v1606, 96
        %v2630 = vpop.permute.xlu0 %2629
        %2631 = vrot.lane.b32.xlu0 %v1609, 96
        %v2632 = vpop.permute.xlu0 %2631
        %2633 = vrot.lane.b32.xlu0 %v1612, 96
        %v2634 = vpop.permute.xlu0 %2633
        %2635 = vrot.lane.b32.xlu0 %v1615, 96
        %v2636 = vpop.permute.xlu0 %2635
        %2637 = vrot.lane.b32.xlu0 %v1618, 96
        %v2638 = vpop.permute.xlu0 %2637
        %2639 = vrot.lane.b32.xlu0 %v1621, 96
        %v2640 = vpop.permute.xlu0 %2639
        %2641 = vrot.lane.b32.xlu0 %v1624, 96
        %v2642 = vpop.permute.xlu0 %2641
        %2643 = vrot.lane.b32.xlu0 %v1627, 96
        %v2644 = vpop.permute.xlu0 %2643
        %2645 = vrot.lane.b32.xlu0 %v1630, 96
        %v2646 = vpop.permute.xlu0 %2645
        %2647 = vrot.lane.b32.xlu0 %v1633, 96
        %v2648 = vpop.permute.xlu0 %2647
        %2649 = vrot.lane.b32.xlu0 %v1636, 96
        %v2650 = vpop.permute.xlu0 %2649
        %2651 = vrot.lane.b32.xlu0 %v1639, 96
        %v2652 = vpop.permute.xlu0 %2651
        %2653 = vrot.lane.b32.xlu0 %v1642, 96
        %v2654 = vpop.permute.xlu0 %2653
        %2671 = vrot.lane.b32.xlu0 %v1598, 96
        %v2672 = vpop.permute.xlu0 %2671
        %2673 = vrot.lane.b32.xlu0 %v1601, 96
        %v2674 = vpop.permute.xlu0 %2673
        %2675 = vrot.lane.b32.xlu0 %v1604, 96
        %v2676 = vpop.permute.xlu0 %2675
        %2677 = vrot.lane.b32.xlu0 %v1607, 96
        %v2678 = vpop.permute.xlu0 %2677
        %2679 = vrot.lane.b32.xlu0 %v1610, 96
        %v2680 = vpop.permute.xlu0 %2679
        %2681 = vrot.lane.b32.xlu0 %v1613, 96
        %v2682 = vpop.permute.xlu0 %2681
        %2683 = vrot.lane.b32.xlu0 %v1616, 96
        %v2684 = vpop.permute.xlu0 %2683
        %2685 = vrot.lane.b32.xlu0 %v1619, 96
        %v2686 = vpop.permute.xlu0 %2685
        %2687 = vrot.lane.b32.xlu0 %v1622, 96
        %v2688 = vpop.permute.xlu0 %2687
        %2689 = vrot.lane.b32.xlu0 %v1625, 96
        %v2690 = vpop.permute.xlu0 %2689
        %2691 = vrot.lane.b32.xlu0 %v1628, 96
        %v2692 = vpop.permute.xlu0 %2691
        %2693 = vrot.lane.b32.xlu0 %v1631, 96
        %v2694 = vpop.permute.xlu0 %2693
        %2695 = vrot.lane.b32.xlu0 %v1634, 96
        %v2696 = vpop.permute.xlu0 %2695
        %2697 = vrot.lane.b32.xlu0 %v1637, 96
        %v2698 = vpop.permute.xlu0 %2697
        %2699 = vrot.lane.b32.xlu0 %v1640, 96
        %v2700 = vpop.permute.xlu0 %2699
        %2701 = vrot.lane.b32.xlu0 %v1643, 96
        %v2702 = vpop.permute.xlu0 %2701
        %v2704 = vsel %vm497, %v2624, 0
        %v2707 = vsel %vm497, %v2626, 0
        %v2710 = vsel %vm497, %v2628, 0
        %v2713 = vsel %vm497, %v2630, 0
        %v2716 = vsel %vm497, %v2632, 0
        %v2719 = vsel %vm497, %v2634, 0
        %v2722 = vsel %vm497, %v2636, 0
        %v2725 = vsel %vm497, %v2638, 0
        %v2728 = vsel %vm497, %v2640, 0
        %v2731 = vsel %vm497, %v2642, 0
        %v2734 = vsel %vm497, %v2644, 0
        %v2737 = vsel %vm497, %v2646, 0
        %v2740 = vsel %vm497, %v2648, 0
        %v2743 = vsel %vm497, %v2650, 0
        %v2746 = vsel %vm497, %v2652, 0
        %v2749 = vsel %vm497, %v2654, 0
        %v2752 = vsel %vm497, %v2672, 0
        %v2755 = vsel %vm497, %v2674, 0
        %v2758 = vsel %vm497, %v2676, 0
        %v2761 = vsel %vm497, %v2678, 0
        %v2764 = vsel %vm497, %v2680, 0
        %v2767 = vsel %vm497, %v2682, 0
        %v2770 = vsel %vm497, %v2684, 0
        %v2773 = vsel %vm497, %v2686, 0
        %v2776 = vsel %vm497, %v2688, 0
        %v2779 = vsel %vm497, %v2690, 0
        %v2782 = vsel %vm497, %v2692, 0
        %v2785 = vsel %vm497, %v2694, 0
        %v2788 = vsel %vm497, %v2696, 0
        %v2791 = vsel %vm497, %v2698, 0
        %v2794 = vsel %vm497, %v2700, 0
        %v2797 = vsel %vm497, %v2702, 0
        %2799 = vmatprep.subr.bf16.mxu0 0
        %2800 = vmatpush1.bf16.xpose.msra.mxu0 %v2773
        %2801 = vmatprep.subr.bf16.mxu0 0
        %2802 = vmatpush1.bf16.xpose.msra.mxu0 %v2770
        %2803 = vmatprep.subr.bf16.mxu0 0
        %2804 = vmatpush1.bf16.xpose.msra.mxu0 %v2767
        %2805 = vmatprep.subr.bf16.mxu0 0
        %2806 = vmatpush1.bf16.xpose.msra.mxu0 %v2764
        %2807 = vmatprep.subr.bf16.mxu0 0
        %2808 = vmatpush1.bf16.xpose.msra.mxu0 %v2761
        %2809 = vmatprep.subr.bf16.mxu0 0
        %2810 = vmatpush1.bf16.xpose.msra.mxu0 %v2758
        %2811 = vmatprep.subr.bf16.mxu0 0
        %2812 = vmatpush1.bf16.xpose.msra.mxu0 %v2755
        %2813 = vmatprep.subr.bf16.mxu0 0
        %2814 = vmatpush1.bf16.xpose.msra.mxu0 %v2752
        %2815 = vmatprep.subr.bf16.mxu0 0
        %2816 = vmatpush2.bf16.xpose.msra.mxu0 %v2797
        %2817 = vmatprep.subr.bf16.mxu0 0
        %2818 = vmatpush2.bf16.xpose.msra.mxu0 %v2794
        %2819 = vmatprep.subr.bf16.mxu0 0
        %2820 = vmatpush2.bf16.xpose.msra.mxu0 %v2791
        %2821 = vmatprep.subr.bf16.mxu0 0
        %2822 = vmatpush2.bf16.xpose.msra.mxu0 %v2788
        %2823 = vmatprep.subr.bf16.mxu0 0
        %2824 = vmatpush2.bf16.xpose.msra.mxu0 %v2785
        %2825 = vmatprep.subr.bf16.mxu0 0
        %2826 = vmatpush2.bf16.xpose.msra.mxu0 %v2782
        %2827 = vmatprep.subr.bf16.mxu0 0
        %2828 = vmatpush2.bf16.xpose.msra.mxu0 %v2779
        %2829 = vmatprep.subr.bf16.mxu0 0
        %2830 = vmatpush2.bf16.xpose.msra.mxu0 %v2776
        %2831 = vmatprep.mubr.bf16.mxu0 0
        %2832 = vmatmul.mubr.bf16.gmra.mxu0 %v2704
        %v2833 = vpop.f32.mrf.mxu0
        %v2834 = vadd.f32 0.0, %v2833
        %v2835 = vpop.f32.mrf.mxu0
        %v2836 = vadd.f32 0.0, %v2835
        %v2837 = vpop.f32.mrf.mxu0
        %v2838 = vadd.f32 0.0, %v2837
        %v2839 = vpop.f32.mrf.mxu0
        %v2840 = vadd.f32 0.0, %v2839
        %2841 = vmatprep.mubr.bf16.mxu0 0
        %2842 = vmatmul.mubr.bf16.gmra.mxu0 %v2707
        %v2843 = vpop.f32.mrf.mxu0
        %v2844 = vadd.f32 0.0, %v2843
        %v2845 = vpop.f32.mrf.mxu0
        %v2846 = vadd.f32 0.0, %v2845
        %v2847 = vpop.f32.mrf.mxu0
        %v2848 = vadd.f32 0.0, %v2847
        %v2849 = vpop.f32.mrf.mxu0
        %v2850 = vadd.f32 0.0, %v2849
        %2851 = vmatprep.mubr.bf16.mxu0 0
        %2852 = vmatmul.mubr.bf16.gmra.mxu0 %v2710
        %v2853 = vpop.f32.mrf.mxu0
        %v2854 = vadd.f32 0.0, %v2853
        %v2855 = vpop.f32.mrf.mxu0
        %v2856 = vadd.f32 0.0, %v2855
        %v2857 = vpop.f32.mrf.mxu0
        %v2858 = vadd.f32 0.0, %v2857
        %v2859 = vpop.f32.mrf.mxu0
        %v2860 = vadd.f32 0.0, %v2859
        %2861 = vmatprep.mubr.bf16.mxu0 0
        %2862 = vmatmul.mubr.bf16.gmra.mxu0 %v2713
        %v2863 = vpop.f32.mrf.mxu0
        %v2864 = vadd.f32 0.0, %v2863
        %v2865 = vpop.f32.mrf.mxu0
        %v2866 = vadd.f32 0.0, %v2865
        %v2867 = vpop.f32.mrf.mxu0
        %v2868 = vadd.f32 0.0, %v2867
        %v2869 = vpop.f32.mrf.mxu0
        %v2870 = vadd.f32 0.0, %v2869
        %2871 = vmatprep.mubr.bf16.mxu0 0
        %2872 = vmatmul.mubr.bf16.gmra.mxu0 %v2716
        %v2873 = vpop.f32.mrf.mxu0
        %v2874 = vadd.f32 0.0, %v2873
        %v2875 = vpop.f32.mrf.mxu0
        %v2876 = vadd.f32 0.0, %v2875
        %v2877 = vpop.f32.mrf.mxu0
        %v2878 = vadd.f32 0.0, %v2877
        %v2879 = vpop.f32.mrf.mxu0
        %v2880 = vadd.f32 0.0, %v2879
        %2881 = vmatprep.mubr.bf16.mxu0 0
        %2882 = vmatmul.mubr.bf16.gmra.mxu0 %v2719
        %v2883 = vpop.f32.mrf.mxu0
        %v2884 = vadd.f32 0.0, %v2883
        %v2885 = vpop.f32.mrf.mxu0
        %v2886 = vadd.f32 0.0, %v2885
        %v2887 = vpop.f32.mrf.mxu0
        %v2888 = vadd.f32 0.0, %v2887
        %v2889 = vpop.f32.mrf.mxu0
        %v2890 = vadd.f32 0.0, %v2889
        %2891 = vmatprep.mubr.bf16.mxu0 0
        %2892 = vmatmul.mubr.bf16.gmra.mxu0 %v2722
        %v2893 = vpop.f32.mrf.mxu0
        %v2894 = vadd.f32 0.0, %v2893
        %v2895 = vpop.f32.mrf.mxu0
        %v2896 = vadd.f32 0.0, %v2895
        %v2897 = vpop.f32.mrf.mxu0
        %v2898 = vadd.f32 0.0, %v2897
        %v2899 = vpop.f32.mrf.mxu0
        %v2900 = vadd.f32 0.0, %v2899
        %2901 = vmatprep.mubr.bf16.mxu0 0
        %2902 = vmatmul.mubr.bf16.gmra.mxu0 %v2725
        %v2903 = vpop.f32.mrf.mxu0
        %v2904 = vadd.f32 0.0, %v2903
        %v2905 = vpop.f32.mrf.mxu0
        %v2906 = vadd.f32 0.0, %v2905
        %v2907 = vpop.f32.mrf.mxu0
        %v2908 = vadd.f32 0.0, %v2907
        %v2909 = vpop.f32.mrf.mxu0
        %v2910 = vadd.f32 0.0, %v2909
        %2911 = vmatprep.mubr.bf16.mxu0 0
        %2912 = vmatmul.mubr.bf16.gmra.mxu0 %v2728
        %v2913 = vpop.f32.mrf.mxu0
        %v2914 = vadd.f32 0.0, %v2913
        %v2915 = vpop.f32.mrf.mxu0
        %v2916 = vadd.f32 0.0, %v2915
        %v2917 = vpop.f32.mrf.mxu0
        %v2918 = vadd.f32 0.0, %v2917
        %v2919 = vpop.f32.mrf.mxu0
        %v2920 = vadd.f32 0.0, %v2919
        %2921 = vmatprep.mubr.bf16.mxu0 0
        %2922 = vmatmul.mubr.bf16.gmra.mxu0 %v2731
        %v2923 = vpop.f32.mrf.mxu0
        %v2924 = vadd.f32 0.0, %v2923
        %v2925 = vpop.f32.mrf.mxu0
        %v2926 = vadd.f32 0.0, %v2925
        %v2927 = vpop.f32.mrf.mxu0
        %v2928 = vadd.f32 0.0, %v2927
        %v2929 = vpop.f32.mrf.mxu0
        %v2930 = vadd.f32 0.0, %v2929
        %2931 = vmatprep.mubr.bf16.mxu0 0
        %2932 = vmatmul.mubr.bf16.gmra.mxu0 %v2734
        %v2933 = vpop.f32.mrf.mxu0
        %v2934 = vadd.f32 0.0, %v2933
        %v2935 = vpop.f32.mrf.mxu0
        %v2936 = vadd.f32 0.0, %v2935
        %v2937 = vpop.f32.mrf.mxu0
        %v2938 = vadd.f32 0.0, %v2937
        %v2939 = vpop.f32.mrf.mxu0
        %v2940 = vadd.f32 0.0, %v2939
        %2941 = vmatprep.mubr.bf16.mxu0 0
        %2942 = vmatmul.mubr.bf16.gmra.mxu0 %v2737
        %v2943 = vpop.f32.mrf.mxu0
        %v2944 = vadd.f32 0.0, %v2943
        %v2945 = vpop.f32.mrf.mxu0
        %v2946 = vadd.f32 0.0, %v2945
        %v2947 = vpop.f32.mrf.mxu0
        %v2948 = vadd.f32 0.0, %v2947
        %v2949 = vpop.f32.mrf.mxu0
        %v2950 = vadd.f32 0.0, %v2949
        %2951 = vmatprep.mubr.bf16.mxu0 0
        %2952 = vmatmul.mubr.bf16.gmra.mxu0 %v2740
        %v2953 = vpop.f32.mrf.mxu0
        %v2954 = vadd.f32 0.0, %v2953
        %v2955 = vpop.f32.mrf.mxu0
        %v2956 = vadd.f32 0.0, %v2955
        %v2957 = vpop.f32.mrf.mxu0
        %v2958 = vadd.f32 0.0, %v2957
        %v2959 = vpop.f32.mrf.mxu0
        %v2960 = vadd.f32 0.0, %v2959
        %2961 = vmatprep.mubr.bf16.mxu0 0
        %2962 = vmatmul.mubr.bf16.gmra.mxu0 %v2743
        %v2963 = vpop.f32.mrf.mxu0
        %v2964 = vadd.f32 0.0, %v2963
        %v2965 = vpop.f32.mrf.mxu0
        %v2966 = vadd.f32 0.0, %v2965
        %v2967 = vpop.f32.mrf.mxu0
        %v2968 = vadd.f32 0.0, %v2967
        %v2969 = vpop.f32.mrf.mxu0
        %v2970 = vadd.f32 0.0, %v2969
        %2971 = vmatprep.mubr.bf16.mxu0 0
        %2972 = vmatmul.mubr.bf16.gmra.mxu0 %v2746
        %v2973 = vpop.f32.mrf.mxu0
        %v2974 = vadd.f32 0.0, %v2973
        %v2975 = vpop.f32.mrf.mxu0
        %v2976 = vadd.f32 0.0, %v2975
        %v2977 = vpop.f32.mrf.mxu0
        %v2978 = vadd.f32 0.0, %v2977
        %v2979 = vpop.f32.mrf.mxu0
        %v2980 = vadd.f32 0.0, %v2979
        %2981 = vmatprep.mubr.bf16.mxu0 0
        %2982 = vmatmul.mubr.bf16.gmra.mxu0 %v2749
        %v2983 = vpop.f32.mrf.mxu0
        %v2984 = vadd.f32 0.0, %v2983
        %v2985 = vpop.f32.mrf.mxu0
        %v2986 = vadd.f32 0.0, %v2985
        %v2987 = vpop.f32.mrf.mxu0
        %v2988 = vadd.f32 0.0, %v2987
        %v2989 = vpop.f32.mrf.mxu0
        %v2990 = vadd.f32 0.0, %v2989
        %2991 = vdwg.mxu0
        %v2992 = vmax.f32 %v2834, %v2836
        %2993 = vmax.xlane.f32.xlu0 %v2992
        %v2994 = vpop.xlane.xlu0 %2993
        %v2995 = vmax.f32 %v2838, %v2840
        %2996 = vmax.xlane.f32.xlu0 %v2995
        %v2997 = vpop.xlane.xlu0 %2996
        %v2998 = vmax.f32 %v2844, %v2846
        %2999 = vmax.xlane.f32.xlu0 %v2998
        %v3000 = vpop.xlane.xlu0 %2999
        %v3001 = vmax.f32 %v2848, %v2850
        %3002 = vmax.xlane.f32.xlu0 %v3001
        %v3003 = vpop.xlane.xlu0 %3002
        %v3004 = vmax.f32 %v2854, %v2856
        %3005 = vmax.xlane.f32.xlu0 %v3004
        %v3006 = vpop.xlane.xlu0 %3005
        %v3007 = vmax.f32 %v2858, %v2860
        %3008 = vmax.xlane.f32.xlu0 %v3007
        %v3009 = vpop.xlane.xlu0 %3008
        %v3010 = vmax.f32 %v2864, %v2866
        %3011 = vmax.xlane.f32.xlu0 %v3010
        %v3012 = vpop.xlane.xlu0 %3011
        %v3013 = vmax.f32 %v2868, %v2870
        %3014 = vmax.xlane.f32.xlu0 %v3013
        %v3015 = vpop.xlane.xlu0 %3014
        %v3016 = vmax.f32 %v2874, %v2876
        %3017 = vmax.xlane.f32.xlu0 %v3016
        %v3018 = vpop.xlane.xlu0 %3017
        %v3019 = vmax.f32 %v2878, %v2880
        %3020 = vmax.xlane.f32.xlu0 %v3019
        %v3021 = vpop.xlane.xlu0 %3020
        %v3022 = vmax.f32 %v2884, %v2886
        %3023 = vmax.xlane.f32.xlu0 %v3022
        %v3024 = vpop.xlane.xlu0 %3023
        %v3025 = vmax.f32 %v2888, %v2890
        %3026 = vmax.xlane.f32.xlu0 %v3025
        %v3027 = vpop.xlane.xlu0 %3026
        %v3028 = vmax.f32 %v2894, %v2896
        %3029 = vmax.xlane.f32.xlu0 %v3028
        %v3030 = vpop.xlane.xlu0 %3029
        %v3031 = vmax.f32 %v2898, %v2900
        %3032 = vmax.xlane.f32.xlu0 %v3031
        %v3033 = vpop.xlane.xlu0 %3032
        %v3034 = vmax.f32 %v2904, %v2906
        %3035 = vmax.xlane.f32.xlu0 %v3034
        %v3036 = vpop.xlane.xlu0 %3035
        %v3037 = vmax.f32 %v2908, %v2910
        %3038 = vmax.xlane.f32.xlu0 %v3037
        %v3039 = vpop.xlane.xlu0 %3038
        %v3040 = vmax.f32 %v2914, %v2916
        %3041 = vmax.xlane.f32.xlu0 %v3040
        %v3042 = vpop.xlane.xlu0 %3041
        %v3043 = vmax.f32 %v2918, %v2920
        %3044 = vmax.xlane.f32.xlu0 %v3043
        %v3045 = vpop.xlane.xlu0 %3044
        %v3046 = vmax.f32 %v2924, %v2926
        %3047 = vmax.xlane.f32.xlu0 %v3046
        %v3048 = vpop.xlane.xlu0 %3047
        %v3049 = vmax.f32 %v2928, %v2930
        %3050 = vmax.xlane.f32.xlu0 %v3049
        %v3051 = vpop.xlane.xlu0 %3050
        %v3052 = vmax.f32 %v2934, %v2936
        %3053 = vmax.xlane.f32.xlu0 %v3052
        %v3054 = vpop.xlane.xlu0 %3053
        %v3055 = vmax.f32 %v2938, %v2940
        %3056 = vmax.xlane.f32.xlu0 %v3055
        %v3057 = vpop.xlane.xlu0 %3056
        %v3058 = vmax.f32 %v2944, %v2946
        %3059 = vmax.xlane.f32.xlu0 %v3058
        %v3060 = vpop.xlane.xlu0 %3059
        %v3061 = vmax.f32 %v2948, %v2950
        %3062 = vmax.xlane.f32.xlu0 %v3061
        %v3063 = vpop.xlane.xlu0 %3062
        %v3064 = vmax.f32 %v2954, %v2956
        %3065 = vmax.xlane.f32.xlu0 %v3064
        %v3066 = vpop.xlane.xlu0 %3065
        %v3067 = vmax.f32 %v2958, %v2960
        %3068 = vmax.xlane.f32.xlu0 %v3067
        %v3069 = vpop.xlane.xlu0 %3068
        %v3070 = vmax.f32 %v2964, %v2966
        %3071 = vmax.xlane.f32.xlu0 %v3070
        %v3072 = vpop.xlane.xlu0 %3071
        %v3073 = vmax.f32 %v2968, %v2970
        %3074 = vmax.xlane.f32.xlu0 %v3073
        %v3075 = vpop.xlane.xlu0 %3074
        %v3076 = vmax.f32 %v2974, %v2976
        %3077 = vmax.xlane.f32.xlu0 %v3076
        %v3078 = vpop.xlane.xlu0 %3077
        %v3079 = vmax.f32 %v2978, %v2980
        %3080 = vmax.xlane.f32.xlu0 %v3079
        %v3081 = vpop.xlane.xlu0 %3080
        %v3082 = vmax.f32 %v2984, %v2986
        %3083 = vmax.xlane.f32.xlu0 %v3082
        %v3084 = vpop.xlane.xlu0 %3083
        %v3085 = vmax.f32 %v2988, %v2990
        %3086 = vmax.xlane.f32.xlu0 %v3085
        %v3087 = vpop.xlane.xlu0 %3086
        %v3088 = vsub.f32 %v2834, %v2994
        %v3089 = vsub.f32 %v2836, %v2994
        %v3090 = vsub.f32 %v2838, %v2997
        %v3091 = vsub.f32 %v2840, %v2997
        %v3092 = vsub.f32 %v2844, %v3000
        %v3093 = vsub.f32 %v2846, %v3000
        %v3094 = vsub.f32 %v2848, %v3003
        %v3095 = vsub.f32 %v2850, %v3003
        %v3096 = vsub.f32 %v2854, %v3006
        %v3097 = vsub.f32 %v2856, %v3006
        %v3098 = vsub.f32 %v2858, %v3009
        %v3099 = vsub.f32 %v2860, %v3009
        %v3100 = vsub.f32 %v2864, %v3012
        %v3101 = vsub.f32 %v2866, %v3012
        %v3102 = vsub.f32 %v2868, %v3015
        %v3103 = vsub.f32 %v2870, %v3015
        %v3104 = vsub.f32 %v2874, %v3018
        %v3105 = vsub.f32 %v2876, %v3018
        %v3106 = vsub.f32 %v2878, %v3021
        %v3107 = vsub.f32 %v2880, %v3021
        %v3108 = vsub.f32 %v2884, %v3024
        %v3109 = vsub.f32 %v2886, %v3024
        %v3110 = vsub.f32 %v2888, %v3027
        %v3111 = vsub.f32 %v2890, %v3027
        %v3112 = vsub.f32 %v2894, %v3030
        %v3113 = vsub.f32 %v2896, %v3030
        %v3114 = vsub.f32 %v2898, %v3033
        %v3115 = vsub.f32 %v2900, %v3033
        %v3116 = vsub.f32 %v2904, %v3036
        %v3117 = vsub.f32 %v2906, %v3036
        %v3118 = vsub.f32 %v2908, %v3039
        %v3119 = vsub.f32 %v2910, %v3039
        %v3120 = vsub.f32 %v2914, %v3042
        %v3121 = vsub.f32 %v2916, %v3042
        %v3122 = vsub.f32 %v2918, %v3045
        %v3123 = vsub.f32 %v2920, %v3045
        %v3124 = vsub.f32 %v2924, %v3048
        %v3125 = vsub.f32 %v2926, %v3048
        %v3126 = vsub.f32 %v2928, %v3051
        %v3127 = vsub.f32 %v2930, %v3051
        %v3128 = vsub.f32 %v2934, %v3054
        %v3129 = vsub.f32 %v2936, %v3054
        %v3130 = vsub.f32 %v2938, %v3057
        %v3131 = vsub.f32 %v2940, %v3057
        %v3132 = vsub.f32 %v2944, %v3060
        %v3133 = vsub.f32 %v2946, %v3060
        %v3134 = vsub.f32 %v2948, %v3063
        %v3135 = vsub.f32 %v2950, %v3063
        %v3136 = vsub.f32 %v2954, %v3066
        %v3137 = vsub.f32 %v2956, %v3066
        %v3138 = vsub.f32 %v2958, %v3069
        %v3139 = vsub.f32 %v2960, %v3069
        %v3140 = vsub.f32 %v2964, %v3072
        %v3141 = vsub.f32 %v2966, %v3072
        %v3142 = vsub.f32 %v2968, %v3075
        %v3143 = vsub.f32 %v2970, %v3075
        %v3144 = vsub.f32 %v2974, %v3078
        %v3145 = vsub.f32 %v2976, %v3078
        %v3146 = vsub.f32 %v2978, %v3081
        %v3147 = vsub.f32 %v2980, %v3081
        %v3148 = vsub.f32 %v2984, %v3084
        %v3149 = vsub.f32 %v2986, %v3084
        %v3150 = vsub.f32 %v2988, %v3087
        %v3151 = vsub.f32 %v2990, %v3087
        %v3152 = vmul.f32 %v3088, 1.442695
        %v3153 = vpow.pop %v3152
        %v3154 = vmul.f32 %v3089, 1.442695
        %v3155 = vpow.pop %v3154
        %v3156 = vmul.f32 %v3090, 1.442695
        %v3157 = vpow.pop %v3156
        %v3158 = vmul.f32 %v3091, 1.442695
        %v3159 = vpow.pop %v3158
        %v3160 = vmul.f32 %v3092, 1.442695
        %v3161 = vpow.pop %v3160
        %v3162 = vmul.f32 %v3093, 1.442695
        %v3163 = vpow.pop %v3162
        %v3164 = vmul.f32 %v3094, 1.442695
        %v3165 = vpow.pop %v3164
        %v3166 = vmul.f32 %v3095, 1.442695
        %v3167 = vpow.pop %v3166
        %v3168 = vmul.f32 %v3096, 1.442695
        %v3169 = vpow.pop %v3168
        %v3170 = vmul.f32 %v3097, 1.442695
        %v3171 = vpow.pop %v3170
        %v3172 = vmul.f32 %v3098, 1.442695
        %v3173 = vpow.pop %v3172
        %v3174 = vmul.f32 %v3099, 1.442695
        %v3175 = vpow.pop %v3174
        %v3176 = vmul.f32 %v3100, 1.442695
        %v3177 = vpow.pop %v3176
        %v3178 = vmul.f32 %v3101, 1.442695
        %v3179 = vpow.pop %v3178
        %v3180 = vmul.f32 %v3102, 1.442695
        %v3181 = vpow.pop %v3180
        %v3182 = vmul.f32 %v3103, 1.442695
        %v3183 = vpow.pop %v3182
        %v3184 = vmul.f32 %v3104, 1.442695
        %v3185 = vpow.pop %v3184
        %v3186 = vmul.f32 %v3105, 1.442695
        %v3187 = vpow.pop %v3186
        %v3188 = vmul.f32 %v3106, 1.442695
        %v3189 = vpow.pop %v3188
        %v3190 = vmul.f32 %v3107, 1.442695
        %v3191 = vpow.pop %v3190
        %v3192 = vmul.f32 %v3108, 1.442695
        %v3193 = vpow.pop %v3192
        %v3194 = vmul.f32 %v3109, 1.442695
        %v3195 = vpow.pop %v3194
        %v3196 = vmul.f32 %v3110, 1.442695
        %v3197 = vpow.pop %v3196
        %v3198 = vmul.f32 %v3111, 1.442695
        %v3199 = vpow.pop %v3198
        %v3200 = vmul.f32 %v3112, 1.442695
        %v3201 = vpow.pop %v3200
        %v3202 = vmul.f32 %v3113, 1.442695
        %v3203 = vpow.pop %v3202
        %v3204 = vmul.f32 %v3114, 1.442695
        %v3205 = vpow.pop %v3204
        %v3206 = vmul.f32 %v3115, 1.442695
        %v3207 = vpow.pop %v3206
        %v3208 = vmul.f32 %v3116, 1.442695
        %v3209 = vpow.pop %v3208
        %v3210 = vmul.f32 %v3117, 1.442695
        %v3211 = vpow.pop %v3210
        %v3212 = vmul.f32 %v3118, 1.442695
        %v3213 = vpow.pop %v3212
        %v3214 = vmul.f32 %v3119, 1.442695
        %v3215 = vpow.pop %v3214
        %v3216 = vmul.f32 %v3120, 1.442695
        %v3217 = vpow.pop %v3216
        %v3218 = vmul.f32 %v3121, 1.442695
        %v3219 = vpow.pop %v3218
        %v3220 = vmul.f32 %v3122, 1.442695
        %v3221 = vpow.pop %v3220
        %v3222 = vmul.f32 %v3123, 1.442695
        %v3223 = vpow.pop %v3222
        %v3224 = vmul.f32 %v3124, 1.442695
        %v3225 = vpow.pop %v3224
        %v3226 = vmul.f32 %v3125, 1.442695
        %v3227 = vpow.pop %v3226
        %v3228 = vmul.f32 %v3126, 1.442695
        %v3229 = vpow.pop %v3228
        %v3230 = vmul.f32 %v3127, 1.442695
        %v3231 = vpow.pop %v3230
        %v3232 = vmul.f32 %v3128, 1.442695
        %v3233 = vpow.pop %v3232
        %v3234 = vmul.f32 %v3129, 1.442695
        %v3235 = vpow.pop %v3234
        %v3236 = vmul.f32 %v3130, 1.442695
        %v3237 = vpow.pop %v3236
        %v3238 = vmul.f32 %v3131, 1.442695
        %v3239 = vpow.pop %v3238
        %v3240 = vmul.f32 %v3132, 1.442695
        %v3241 = vpow.pop %v3240
        %v3242 = vmul.f32 %v3133, 1.442695
        %v3243 = vpow.pop %v3242
        %v3244 = vmul.f32 %v3134, 1.442695
        %v3245 = vpow.pop %v3244
        %v3246 = vmul.f32 %v3135, 1.442695
        %v3247 = vpow.pop %v3246
        %v3248 = vmul.f32 %v3136, 1.442695
        %v3249 = vpow.pop %v3248
        %v3250 = vmul.f32 %v3137, 1.442695
        %v3251 = vpow.pop %v3250
        %v3252 = vmul.f32 %v3138, 1.442695
        %v3253 = vpow.pop %v3252
        %v3254 = vmul.f32 %v3139, 1.442695
        %v3255 = vpow.pop %v3254
        %v3256 = vmul.f32 %v3140, 1.442695
        %v3257 = vpow.pop %v3256
        %v3258 = vmul.f32 %v3141, 1.442695
        %v3259 = vpow.pop %v3258
        %v3260 = vmul.f32 %v3142, 1.442695
        %v3261 = vpow.pop %v3260
        %v3262 = vmul.f32 %v3143, 1.442695
        %v3263 = vpow.pop %v3262
        %v3264 = vmul.f32 %v3144, 1.442695
        %v3265 = vpow.pop %v3264
        %v3266 = vmul.f32 %v3145, 1.442695
        %v3267 = vpow.pop %v3266
        %v3268 = vmul.f32 %v3146, 1.442695
        %v3269 = vpow.pop %v3268
        %v3270 = vmul.f32 %v3147, 1.442695
        %v3271 = vpow.pop %v3270
        %v3272 = vmul.f32 %v3148, 1.442695
        %v3273 = vpow.pop %v3272
        %v3274 = vmul.f32 %v3149, 1.442695
        %v3275 = vpow.pop %v3274
        %v3276 = vmul.f32 %v3150, 1.442695
        %v3277 = vpow.pop %v3276
        %v3278 = vmul.f32 %v3151, 1.442695
        %v3279 = vpow.pop %v3278
        %v3280 = vadd.f32 %v3153, %v3155
        %3281 = vadd.xlane.f32.xlu0 %v3280
        %v3282 = vpop.xlane.xlu0 %3281
        %v3283 = vadd.f32 %v3157, %v3159
        %3284 = vadd.xlane.f32.xlu0 %v3283
        %v3285 = vpop.xlane.xlu0 %3284
        %v3286 = vadd.f32 %v3161, %v3163
        %3287 = vadd.xlane.f32.xlu0 %v3286
        %v3288 = vpop.xlane.xlu0 %3287
        %v3289 = vadd.f32 %v3165, %v3167
        %3290 = vadd.xlane.f32.xlu0 %v3289
        %v3291 = vpop.xlane.xlu0 %3290
        %v3292 = vadd.f32 %v3169, %v3171
        %3293 = vadd.xlane.f32.xlu0 %v3292
        %v3294 = vpop.xlane.xlu0 %3293
        %v3295 = vadd.f32 %v3173, %v3175
        %3296 = vadd.xlane.f32.xlu0 %v3295
        %v3297 = vpop.xlane.xlu0 %3296
        %v3298 = vadd.f32 %v3177, %v3179
        %3299 = vadd.xlane.f32.xlu0 %v3298
        %v3300 = vpop.xlane.xlu0 %3299
        %v3301 = vadd.f32 %v3181, %v3183
        %3302 = vadd.xlane.f32.xlu0 %v3301
        %v3303 = vpop.xlane.xlu0 %3302
        %v3304 = vadd.f32 %v3185, %v3187
        %3305 = vadd.xlane.f32.xlu0 %v3304
        %v3306 = vpop.xlane.xlu0 %3305
        %v3307 = vadd.f32 %v3189, %v3191
        %3308 = vadd.xlane.f32.xlu0 %v3307
        %v3309 = vpop.xlane.xlu0 %3308
        %v3310 = vadd.f32 %v3193, %v3195
        %3311 = vadd.xlane.f32.xlu0 %v3310
        %v3312 = vpop.xlane.xlu0 %3311
        %v3313 = vadd.f32 %v3197, %v3199
        %3314 = vadd.xlane.f32.xlu0 %v3313
        %v3315 = vpop.xlane.xlu0 %3314
        %v3316 = vadd.f32 %v3201, %v3203
        %3317 = vadd.xlane.f32.xlu0 %v3316
        %v3318 = vpop.xlane.xlu0 %3317
        %v3319 = vadd.f32 %v3205, %v3207
        %3320 = vadd.xlane.f32.xlu0 %v3319
        %v3321 = vpop.xlane.xlu0 %3320
        %v3322 = vadd.f32 %v3209, %v3211
        %3323 = vadd.xlane.f32.xlu0 %v3322
        %v3324 = vpop.xlane.xlu0 %3323
        %v3325 = vadd.f32 %v3213, %v3215
        %3326 = vadd.xlane.f32.xlu0 %v3325
        %v3327 = vpop.xlane.xlu0 %3326
        %v3328 = vadd.f32 %v3217, %v3219
        %3329 = vadd.xlane.f32.xlu0 %v3328
        %v3330 = vpop.xlane.xlu0 %3329
        %v3331 = vadd.f32 %v3221, %v3223
        %3332 = vadd.xlane.f32.xlu0 %v3331
        %v3333 = vpop.xlane.xlu0 %3332
        %v3334 = vadd.f32 %v3225, %v3227
        %3335 = vadd.xlane.f32.xlu0 %v3334
        %v3336 = vpop.xlane.xlu0 %3335
        %v3337 = vadd.f32 %v3229, %v3231
        %3338 = vadd.xlane.f32.xlu0 %v3337
        %v3339 = vpop.xlane.xlu0 %3338
        %v3340 = vadd.f32 %v3233, %v3235
        %3341 = vadd.xlane.f32.xlu0 %v3340
        %v3342 = vpop.xlane.xlu0 %3341
        %v3343 = vadd.f32 %v3237, %v3239
        %3344 = vadd.xlane.f32.xlu0 %v3343
        %v3345 = vpop.xlane.xlu0 %3344
        %v3346 = vadd.f32 %v3241, %v3243
        %3347 = vadd.xlane.f32.xlu0 %v3346
        %v3348 = vpop.xlane.xlu0 %3347
        %v3349 = vadd.f32 %v3245, %v3247
        %3350 = vadd.xlane.f32.xlu0 %v3349
        %v3351 = vpop.xlane.xlu0 %3350
        %v3352 = vadd.f32 %v3249, %v3251
        %3353 = vadd.xlane.f32.xlu0 %v3352
        %v3354 = vpop.xlane.xlu0 %3353
        %v3355 = vadd.f32 %v3253, %v3255
        %3356 = vadd.xlane.f32.xlu0 %v3355
        %v3357 = vpop.xlane.xlu0 %3356
        %v3358 = vadd.f32 %v3257, %v3259
        %3359 = vadd.xlane.f32.xlu0 %v3358
        %v3360 = vpop.xlane.xlu0 %3359
        %v3361 = vadd.f32 %v3261, %v3263
        %3362 = vadd.xlane.f32.xlu0 %v3361
        %v3363 = vpop.xlane.xlu0 %3362
        %v3364 = vadd.f32 %v3265, %v3267
        %3365 = vadd.xlane.f32.xlu0 %v3364
        %v3366 = vpop.xlane.xlu0 %3365
        %v3367 = vadd.f32 %v3269, %v3271
        %3368 = vadd.xlane.f32.xlu0 %v3367
        %v3369 = vpop.xlane.xlu0 %3368
        %v3370 = vadd.f32 %v3273, %v3275
        %3371 = vadd.xlane.f32.xlu0 %v3370
        %v3372 = vpop.xlane.xlu0 %3371
        %v3373 = vadd.f32 %v3277, %v3279
        %3374 = vadd.xlane.f32.xlu0 %v3373
        %v3375 = vpop.xlane.xlu0 %3374
        %v3376 = vrcp.pop %v3282
        %v3377 = vrcp.pop %v3285
        %v3378 = vrcp.pop %v3288
        %v3379 = vrcp.pop %v3291
        %v3380 = vrcp.pop %v3294
        %v3381 = vrcp.pop %v3297
        %v3382 = vrcp.pop %v3300
        %v3383 = vrcp.pop %v3303
        %v3384 = vrcp.pop %v3306
        %v3385 = vrcp.pop %v3309
        %v3386 = vrcp.pop %v3312
        %v3387 = vrcp.pop %v3315
        %v3388 = vrcp.pop %v3318
        %v3389 = vrcp.pop %v3321
        %v3390 = vrcp.pop %v3324
        %v3391 = vrcp.pop %v3327
        %v3392 = vrcp.pop %v3330
        %v3393 = vrcp.pop %v3333
        %v3394 = vrcp.pop %v3336
        %v3395 = vrcp.pop %v3339
        %v3396 = vrcp.pop %v3342
        %v3397 = vrcp.pop %v3345
        %v3398 = vrcp.pop %v3348
        %v3399 = vrcp.pop %v3351
        %v3400 = vrcp.pop %v3354
        %v3401 = vrcp.pop %v3357
        %v3402 = vrcp.pop %v3360
        %v3403 = vrcp.pop %v3363
        %v3404 = vrcp.pop %v3366
        %v3405 = vrcp.pop %v3369
        %v3406 = vrcp.pop %v3372
        %v3407 = vrcp.pop %v3375
        %v3408 = vmul.f32 %v3153, %v3376
        %v3409 = vmul.f32 %v3155, %v3376
        %v3410 = vmul.f32 %v3157, %v3377
        %v3411 = vmul.f32 %v3159, %v3377
        %v3412 = vmul.f32 %v3161, %v3378
        %v3413 = vmul.f32 %v3163, %v3378
        %v3414 = vmul.f32 %v3165, %v3379
        %v3415 = vmul.f32 %v3167, %v3379
        %v3416 = vmul.f32 %v3169, %v3380
        %v3417 = vmul.f32 %v3171, %v3380
        %v3418 = vmul.f32 %v3173, %v3381
        %v3419 = vmul.f32 %v3175, %v3381
        %v3420 = vmul.f32 %v3177, %v3382
        %v3421 = vmul.f32 %v3179, %v3382
        %v3422 = vmul.f32 %v3181, %v3383
        %v3423 = vmul.f32 %v3183, %v3383
        %v3424 = vmul.f32 %v3185, %v3384
        %v3425 = vmul.f32 %v3187, %v3384
        %v3426 = vmul.f32 %v3189, %v3385
        %v3427 = vmul.f32 %v3191, %v3385
        %v3428 = vmul.f32 %v3193, %v3386
        %v3429 = vmul.f32 %v3195, %v3386
        %v3430 = vmul.f32 %v3197, %v3387
        %v3431 = vmul.f32 %v3199, %v3387
        %v3432 = vmul.f32 %v3201, %v3388
        %v3433 = vmul.f32 %v3203, %v3388
        %v3434 = vmul.f32 %v3205, %v3389
        %v3435 = vmul.f32 %v3207, %v3389
        %v3436 = vmul.f32 %v3209, %v3390
        %v3437 = vmul.f32 %v3211, %v3390
        %v3438 = vmul.f32 %v3213, %v3391
        %v3439 = vmul.f32 %v3215, %v3391
        %v3440 = vmul.f32 %v3217, %v3392
        %v3441 = vmul.f32 %v3219, %v3392
        %v3442 = vmul.f32 %v3221, %v3393
        %v3443 = vmul.f32 %v3223, %v3393
        %v3444 = vmul.f32 %v3225, %v3394
        %v3445 = vmul.f32 %v3227, %v3394
        %v3446 = vmul.f32 %v3229, %v3395
        %v3447 = vmul.f32 %v3231, %v3395
        %v3448 = vmul.f32 %v3233, %v3396
        %v3449 = vmul.f32 %v3235, %v3396
        %v3450 = vmul.f32 %v3237, %v3397
        %v3451 = vmul.f32 %v3239, %v3397
        %v3452 = vmul.f32 %v3241, %v3398
        %v3453 = vmul.f32 %v3243, %v3398
        %v3454 = vmul.f32 %v3245, %v3399
        %v3455 = vmul.f32 %v3247, %v3399
        %v3456 = vmul.f32 %v3249, %v3400
        %v3457 = vmul.f32 %v3251, %v3400
        %v3458 = vmul.f32 %v3253, %v3401
        %v3459 = vmul.f32 %v3255, %v3401
        %v3460 = vmul.f32 %v3257, %v3402
        %v3461 = vmul.f32 %v3259, %v3402
        %v3462 = vmul.f32 %v3261, %v3403
        %v3463 = vmul.f32 %v3263, %v3403
        %v3464 = vmul.f32 %v3265, %v3404
        %v3465 = vmul.f32 %v3267, %v3404
        %v3466 = vmul.f32 %v3269, %v3405
        %v3467 = vmul.f32 %v3271, %v3405
        %v3468 = vmul.f32 %v3273, %v3406
        %v3469 = vmul.f32 %v3275, %v3406
        %v3470 = vmul.f32 %v3277, %v3407
        %v3471 = vmul.f32 %v3279, %v3407
        %v3472 = vpack.c.bf16 %v3410, %v3408
        %v3473 = vpack.c.bf16 %v3411, %v3409
        %v3474 = vpack.c.bf16 %v3414, %v3412
        %v3475 = vpack.c.bf16 %v3415, %v3413
        %v3476 = vpack.c.bf16 %v3418, %v3416
        %v3477 = vpack.c.bf16 %v3419, %v3417
        %v3478 = vpack.c.bf16 %v3422, %v3420
        %v3479 = vpack.c.bf16 %v3423, %v3421
        %v3480 = vpack.c.bf16 %v3426, %v3424
        %v3481 = vpack.c.bf16 %v3427, %v3425
        %v3482 = vpack.c.bf16 %v3430, %v3428
        %v3483 = vpack.c.bf16 %v3431, %v3429
        %v3484 = vpack.c.bf16 %v3434, %v3432
        %v3485 = vpack.c.bf16 %v3435, %v3433
        %v3486 = vpack.c.bf16 %v3438, %v3436
        %v3487 = vpack.c.bf16 %v3439, %v3437
        %v3488 = vpack.c.bf16 %v3442, %v3440
        %v3489 = vpack.c.bf16 %v3443, %v3441
        %v3490 = vpack.c.bf16 %v3446, %v3444
        %v3491 = vpack.c.bf16 %v3447, %v3445
        %v3492 = vpack.c.bf16 %v3450, %v3448
        %v3493 = vpack.c.bf16 %v3451, %v3449
        %v3494 = vpack.c.bf16 %v3454, %v3452
        %v3495 = vpack.c.bf16 %v3455, %v3453
        %v3496 = vpack.c.bf16 %v3458, %v3456
        %v3497 = vpack.c.bf16 %v3459, %v3457
        %v3498 = vpack.c.bf16 %v3462, %v3460
        %v3499 = vpack.c.bf16 %v3463, %v3461
        %v3500 = vpack.c.bf16 %v3466, %v3464
        %v3501 = vpack.c.bf16 %v3467, %v3465
        %v3502 = vpack.c.bf16 %v3470, %v3468
        %v3503 = vpack.c.bf16 %v3471, %v3469
        %3520 = vrot.lane.b32.xlu0 %v1599, 96
        %v3521 = vpop.permute.xlu0 %3520
        %3522 = vrot.lane.b32.xlu0 %v1602, 96
        %v3523 = vpop.permute.xlu0 %3522
        %3524 = vrot.lane.b32.xlu0 %v1605, 96
        %v3525 = vpop.permute.xlu0 %3524
        %3526 = vrot.lane.b32.xlu0 %v1608, 96
        %v3527 = vpop.permute.xlu0 %3526
        %3528 = vrot.lane.b32.xlu0 %v1611, 96
        %v3529 = vpop.permute.xlu0 %3528
        %3530 = vrot.lane.b32.xlu0 %v1614, 96
        %v3531 = vpop.permute.xlu0 %3530
        %3532 = vrot.lane.b32.xlu0 %v1617, 96
        %v3533 = vpop.permute.xlu0 %3532
        %3534 = vrot.lane.b32.xlu0 %v1620, 96
        %v3535 = vpop.permute.xlu0 %3534
        %3536 = vrot.lane.b32.xlu0 %v1623, 96
        %v3537 = vpop.permute.xlu0 %3536
        %3538 = vrot.lane.b32.xlu0 %v1626, 96
        %v3539 = vpop.permute.xlu0 %3538
        %3540 = vrot.lane.b32.xlu0 %v1629, 96
        %v3541 = vpop.permute.xlu0 %3540
        %3542 = vrot.lane.b32.xlu0 %v1632, 96
        %v3543 = vpop.permute.xlu0 %3542
        %3544 = vrot.lane.b32.xlu0 %v1635, 96
        %v3545 = vpop.permute.xlu0 %3544
        %3546 = vrot.lane.b32.xlu0 %v1638, 96
        %v3547 = vpop.permute.xlu0 %3546
        %3548 = vrot.lane.b32.xlu0 %v1641, 96
        %v3549 = vpop.permute.xlu0 %3548
        %3550 = vrot.lane.b32.xlu0 %v1644, 96
        %v3551 = vpop.permute.xlu0 %3550
        %3568 = vmatprep.subr.bf16.mxu0 0
        %3569 = vmatpush1.bf16.msra.mxu0 %v3535
        %3570 = vmatprep.subr.bf16.mxu0 0
        %3571 = vmatpush1.bf16.msra.mxu0 %v3533
        %3572 = vmatprep.subr.bf16.mxu0 0
        %3573 = vmatpush1.bf16.msra.mxu0 %v3531
        %3574 = vmatprep.subr.bf16.mxu0 0
        %3575 = vmatpush1.bf16.msra.mxu0 %v3529
        %3576 = vmatprep.subr.bf16.mxu0 0
        %3577 = vmatpush1.bf16.msra.mxu0 %v3527
        %3578 = vmatprep.subr.bf16.mxu0 0
        %3579 = vmatpush1.bf16.msra.mxu0 %v3525
        %3580 = vmatprep.subr.bf16.mxu0 0
        %3581 = vmatpush1.bf16.msra.mxu0 %v3523
        %3582 = vmatprep.subr.bf16.mxu0 0
        %3583 = vmatpush1.bf16.msra.mxu0 %v3521
        %3584 = vmatprep.subr.bf16.mxu0 0
        %3585 = vmatpush2.bf16.msra.mxu0 %v3551
        %3586 = vmatprep.subr.bf16.mxu0 0
        %3587 = vmatpush2.bf16.msra.mxu0 %v3549
        %3588 = vmatprep.subr.bf16.mxu0 0
        %3589 = vmatpush2.bf16.msra.mxu0 %v3547
        %3590 = vmatprep.subr.bf16.mxu0 0
        %3591 = vmatpush2.bf16.msra.mxu0 %v3545
        %3592 = vmatprep.subr.bf16.mxu0 0
        %3593 = vmatpush2.bf16.msra.mxu0 %v3543
        %3594 = vmatprep.subr.bf16.mxu0 0
        %3595 = vmatpush2.bf16.msra.mxu0 %v3541
        %3596 = vmatprep.subr.bf16.mxu0 0
        %3597 = vmatpush2.bf16.msra.mxu0 %v3539
        %3598 = vmatprep.subr.bf16.mxu0 0
        %3599 = vmatpush2.bf16.msra.mxu0 %v3537
        %3600 = vmatprep.mubr.bf16.mxu0 %v3473
        %3601 = vmatmul.mubr.bf16.gmra.mxu0 %v3472
        %v3602 = vpop.f32.mrf.mxu0
        %v3603 = vadd.f32 0.0, %v3602
        %v3604 = vpop.f32.mrf.mxu0
        %v3605 = vpop.f32.mrf.mxu0
        %v3606 = vadd.f32 0.0, %v3605
        %v3607 = vpop.f32.mrf.mxu0
        %3608 = vmatprep.mubr.bf16.mxu0 %v3475
        %3609 = vmatmul.mubr.bf16.gmra.mxu0 %v3474
        %v3610 = vpop.f32.mrf.mxu0
        %v3611 = vadd.f32 0.0, %v3610
        %v3612 = vpop.f32.mrf.mxu0
        %v3613 = vpop.f32.mrf.mxu0
        %v3614 = vadd.f32 0.0, %v3613
        %v3615 = vpop.f32.mrf.mxu0
        %3616 = vmatprep.mubr.bf16.mxu0 %v3477
        %3617 = vmatmul.mubr.bf16.gmra.mxu0 %v3476
        %v3618 = vpop.f32.mrf.mxu0
        %v3619 = vadd.f32 0.0, %v3618
        %v3620 = vpop.f32.mrf.mxu0
        %v3621 = vpop.f32.mrf.mxu0
        %v3622 = vadd.f32 0.0, %v3621
        %v3623 = vpop.f32.mrf.mxu0
        %3624 = vmatprep.mubr.bf16.mxu0 %v3479
        %3625 = vmatmul.mubr.bf16.gmra.mxu0 %v3478
        %v3626 = vpop.f32.mrf.mxu0
        %v3627 = vadd.f32 0.0, %v3626
        %v3628 = vpop.f32.mrf.mxu0
        %v3629 = vpop.f32.mrf.mxu0
        %v3630 = vadd.f32 0.0, %v3629
        %v3631 = vpop.f32.mrf.mxu0
        %3632 = vmatprep.mubr.bf16.mxu0 %v3481
        %3633 = vmatmul.mubr.bf16.gmra.mxu0 %v3480
        %v3634 = vpop.f32.mrf.mxu0
        %v3635 = vadd.f32 0.0, %v3634
        %v3636 = vpop.f32.mrf.mxu0
        %v3637 = vpop.f32.mrf.mxu0
        %v3638 = vadd.f32 0.0, %v3637
        %v3639 = vpop.f32.mrf.mxu0
        %3640 = vmatprep.mubr.bf16.mxu0 %v3483
        %3641 = vmatmul.mubr.bf16.gmra.mxu0 %v3482
        %v3642 = vpop.f32.mrf.mxu0
        %v3643 = vadd.f32 0.0, %v3642
        %v3644 = vpop.f32.mrf.mxu0
        %v3645 = vpop.f32.mrf.mxu0
        %v3646 = vadd.f32 0.0, %v3645
        %v3647 = vpop.f32.mrf.mxu0
        %3648 = vmatprep.mubr.bf16.mxu0 %v3485
        %3649 = vmatmul.mubr.bf16.gmra.mxu0 %v3484
        %v3650 = vpop.f32.mrf.mxu0
        %v3651 = vadd.f32 0.0, %v3650
        %v3652 = vpop.f32.mrf.mxu0
        %v3653 = vpop.f32.mrf.mxu0
        %v3654 = vadd.f32 0.0, %v3653
        %v3655 = vpop.f32.mrf.mxu0
        %3656 = vmatprep.mubr.bf16.mxu0 %v3487
        %3657 = vmatmul.mubr.bf16.gmra.mxu0 %v3486
        %v3658 = vpop.f32.mrf.mxu0
        %v3659 = vadd.f32 0.0, %v3658
        %v3660 = vpop.f32.mrf.mxu0
        %v3661 = vpop.f32.mrf.mxu0
        %v3662 = vadd.f32 0.0, %v3661
        %v3663 = vpop.f32.mrf.mxu0
        %3664 = vmatprep.mubr.bf16.mxu0 %v3489
        %3665 = vmatmul.mubr.bf16.gmra.mxu0 %v3488
        %v3666 = vpop.f32.mrf.mxu0
        %v3667 = vadd.f32 0.0, %v3666
        %v3668 = vpop.f32.mrf.mxu0
        %v3669 = vpop.f32.mrf.mxu0
        %v3670 = vadd.f32 0.0, %v3669
        %v3671 = vpop.f32.mrf.mxu0
        %3672 = vmatprep.mubr.bf16.mxu0 %v3491
        %3673 = vmatmul.mubr.bf16.gmra.mxu0 %v3490
        %v3674 = vpop.f32.mrf.mxu0
        %v3675 = vadd.f32 0.0, %v3674
        %v3676 = vpop.f32.mrf.mxu0
        %v3677 = vpop.f32.mrf.mxu0
        %v3678 = vadd.f32 0.0, %v3677
        %v3679 = vpop.f32.mrf.mxu0
        %3680 = vmatprep.mubr.bf16.mxu0 %v3493
        %3681 = vmatmul.mubr.bf16.gmra.mxu0 %v3492
        %v3682 = vpop.f32.mrf.mxu0
        %v3683 = vadd.f32 0.0, %v3682
        %v3684 = vpop.f32.mrf.mxu0
        %v3685 = vpop.f32.mrf.mxu0
        %v3686 = vadd.f32 0.0, %v3685
        %v3687 = vpop.f32.mrf.mxu0
        %3688 = vmatprep.mubr.bf16.mxu0 %v3495
        %3689 = vmatmul.mubr.bf16.gmra.mxu0 %v3494
        %v3690 = vpop.f32.mrf.mxu0
        %v3691 = vadd.f32 0.0, %v3690
        %v3692 = vpop.f32.mrf.mxu0
        %v3693 = vpop.f32.mrf.mxu0
        %v3694 = vadd.f32 0.0, %v3693
        %v3695 = vpop.f32.mrf.mxu0
        %3696 = vmatprep.mubr.bf16.mxu0 %v3497
        %3697 = vmatmul.mubr.bf16.gmra.mxu0 %v3496
        %v3698 = vpop.f32.mrf.mxu0
        %v3699 = vadd.f32 0.0, %v3698
        %v3700 = vpop.f32.mrf.mxu0
        %v3701 = vpop.f32.mrf.mxu0
        %v3702 = vadd.f32 0.0, %v3701
        %v3703 = vpop.f32.mrf.mxu0
        %3704 = vmatprep.mubr.bf16.mxu0 %v3499
        %3705 = vmatmul.mubr.bf16.gmra.mxu0 %v3498
        %v3706 = vpop.f32.mrf.mxu0
        %v3707 = vadd.f32 0.0, %v3706
        %v3708 = vpop.f32.mrf.mxu0
        %v3709 = vpop.f32.mrf.mxu0
        %v3710 = vadd.f32 0.0, %v3709
        %v3711 = vpop.f32.mrf.mxu0
        %3712 = vmatprep.mubr.bf16.mxu0 %v3501
        %3713 = vmatmul.mubr.bf16.gmra.mxu0 %v3500
        %v3714 = vpop.f32.mrf.mxu0
        %v3715 = vadd.f32 0.0, %v3714
        %v3716 = vpop.f32.mrf.mxu0
        %v3717 = vpop.f32.mrf.mxu0
        %v3718 = vadd.f32 0.0, %v3717
        %v3719 = vpop.f32.mrf.mxu0
        %3720 = vmatprep.mubr.bf16.mxu0 %v3503
        %3721 = vmatmul.mubr.bf16.gmra.mxu0 %v3502
        %v3722 = vpop.f32.mrf.mxu0
        %v3723 = vadd.f32 0.0, %v3722
        %v3724 = vpop.f32.mrf.mxu0
        %v3725 = vpop.f32.mrf.mxu0
        %v3726 = vadd.f32 0.0, %v3725
        %v3727 = vpop.f32.mrf.mxu0
        %3728 = vdwg.mxu0
        %3729 = vrot.lane.b32.xlu0 %v1597, 64
        %v3730 = vpop.permute.xlu0 %3729
        %3731 = vrot.lane.b32.xlu0 %v1600, 64
        %v3732 = vpop.permute.xlu0 %3731
        %3733 = vrot.lane.b32.xlu0 %v1603, 64
        %v3734 = vpop.permute.xlu0 %3733
        %3735 = vrot.lane.b32.xlu0 %v1606, 64
        %v3736 = vpop.permute.xlu0 %3735
        %3737 = vrot.lane.b32.xlu0 %v1609, 64
        %v3738 = vpop.permute.xlu0 %3737
        %3739 = vrot.lane.b32.xlu0 %v1612, 64
        %v3740 = vpop.permute.xlu0 %3739
        %3741 = vrot.lane.b32.xlu0 %v1615, 64
        %v3742 = vpop.permute.xlu0 %3741
        %3743 = vrot.lane.b32.xlu0 %v1618, 64
        %v3744 = vpop.permute.xlu0 %3743
        %3745 = vrot.lane.b32.xlu0 %v1621, 64
        %v3746 = vpop.permute.xlu0 %3745
        %3747 = vrot.lane.b32.xlu0 %v1624, 64
        %v3748 = vpop.permute.xlu0 %3747
        %3749 = vrot.lane.b32.xlu0 %v1627, 64
        %v3750 = vpop.permute.xlu0 %3749
        %3751 = vrot.lane.b32.xlu0 %v1630, 64
        %v3752 = vpop.permute.xlu0 %3751
        %3753 = vrot.lane.b32.xlu0 %v1633, 64
        %v3754 = vpop.permute.xlu0 %3753
        %3755 = vrot.lane.b32.xlu0 %v1636, 64
        %v3756 = vpop.permute.xlu0 %3755
        %3757 = vrot.lane.b32.xlu0 %v1639, 64
        %v3758 = vpop.permute.xlu0 %3757
        %3759 = vrot.lane.b32.xlu0 %v1642, 64
        %v3760 = vpop.permute.xlu0 %3759
        %3761 = vrot.lane.b32.xlu0 %v1598, 64
        %v3762 = vpop.permute.xlu0 %3761
        %3763 = vrot.lane.b32.xlu0 %v1601, 64
        %v3764 = vpop.permute.xlu0 %3763
        %3765 = vrot.lane.b32.xlu0 %v1604, 64
        %v3766 = vpop.permute.xlu0 %3765
        %3767 = vrot.lane.b32.xlu0 %v1607, 64
        %v3768 = vpop.permute.xlu0 %3767
        %3769 = vrot.lane.b32.xlu0 %v1610, 64
        %v3770 = vpop.permute.xlu0 %3769
        %3771 = vrot.lane.b32.xlu0 %v1613, 64
        %v3772 = vpop.permute.xlu0 %3771
        %3773 = vrot.lane.b32.xlu0 %v1616, 64
        %v3774 = vpop.permute.xlu0 %3773
        %3775 = vrot.lane.b32.xlu0 %v1619, 64
        %v3776 = vpop.permute.xlu0 %3775
        %3777 = vrot.lane.b32.xlu0 %v1622, 64
        %v3778 = vpop.permute.xlu0 %3777
        %3779 = vrot.lane.b32.xlu0 %v1625, 64
        %v3780 = vpop.permute.xlu0 %3779
        %3781 = vrot.lane.b32.xlu0 %v1628, 64
        %v3782 = vpop.permute.xlu0 %3781
        %3783 = vrot.lane.b32.xlu0 %v1631, 64
        %v3784 = vpop.permute.xlu0 %3783
        %3785 = vrot.lane.b32.xlu0 %v1634, 64
        %v3786 = vpop.permute.xlu0 %3785
        %3787 = vrot.lane.b32.xlu0 %v1637, 64
        %v3788 = vpop.permute.xlu0 %3787
        %3789 = vrot.lane.b32.xlu0 %v1640, 64
        %v3790 = vpop.permute.xlu0 %3789
        %3791 = vrot.lane.b32.xlu0 %v1643, 64
        %v3792 = vpop.permute.xlu0 %3791
        %v3794 = vsel %vm497, %v3730, 0
        %v3797 = vsel %vm497, %v3732, 0
        %v3800 = vsel %vm497, %v3734, 0
        %v3803 = vsel %vm497, %v3736, 0
        %v3806 = vsel %vm497, %v3738, 0
        %v3809 = vsel %vm497, %v3740, 0
        %v3812 = vsel %vm497, %v3742, 0
        %v3815 = vsel %vm497, %v3744, 0
        %v3818 = vsel %vm497, %v3746, 0
        %v3821 = vsel %vm497, %v3748, 0
        %v3824 = vsel %vm497, %v3750, 0
        %v3827 = vsel %vm497, %v3752, 0
        %v3830 = vsel %vm497, %v3754, 0
        %v3833 = vsel %vm497, %v3756, 0
        %v3836 = vsel %vm497, %v3758, 0
        %v3839 = vsel %vm497, %v3760, 0
        %v3842 = vsel %vm497, %v3762, 0
        %v3845 = vsel %vm497, %v3764, 0
        %v3848 = vsel %vm497, %v3766, 0
        %v3851 = vsel %vm497, %v3768, 0
        %v3854 = vsel %vm497, %v3770, 0
        %v3857 = vsel %vm497, %v3772, 0
        %v3860 = vsel %vm497, %v3774, 0
        %v3863 = vsel %vm497, %v3776, 0
        %v3866 = vsel %vm497, %v3778, 0
        %v3869 = vsel %vm497, %v3780, 0
        %v3872 = vsel %vm497, %v3782, 0
        %v3875 = vsel %vm497, %v3784, 0
        %v3878 = vsel %vm497, %v3786, 0
        %v3881 = vsel %vm497, %v3788, 0
        %v3884 = vsel %vm497, %v3790, 0
        %v3887 = vsel %vm497, %v3792, 0
        %3889 = vmatprep.subr.bf16.mxu0 0
        %3890 = vmatpush1.bf16.xpose.msra.mxu0 %v3863
        %3891 = vmatprep.subr.bf16.mxu0 0
        %3892 = vmatpush1.bf16.xpose.msra.mxu0 %v3860
        %3893 = vmatprep.subr.bf16.mxu0 0
        %3894 = vmatpush1.bf16.xpose.msra.mxu0 %v3857
        %3895 = vmatprep.subr.bf16.mxu0 0
        %3896 = vmatpush1.bf16.xpose.msra.mxu0 %v3854
        %3897 = vmatprep.subr.bf16.mxu0 0
        %3898 = vmatpush1.bf16.xpose.msra.mxu0 %v3851
        %3899 = vmatprep.subr.bf16.mxu0 0
        %3900 = vmatpush1.bf16.xpose.msra.mxu0 %v3848
        %3901 = vmatprep.subr.bf16.mxu0 0
        %3902 = vmatpush1.bf16.xpose.msra.mxu0 %v3845
        %3903 = vmatprep.subr.bf16.mxu0 0
        %3904 = vmatpush1.bf16.xpose.msra.mxu0 %v3842
        %3905 = vmatprep.subr.bf16.mxu0 0
        %3906 = vmatpush2.bf16.xpose.msra.mxu0 %v3887
        %3907 = vmatprep.subr.bf16.mxu0 0
        %3908 = vmatpush2.bf16.xpose.msra.mxu0 %v3884
        %3909 = vmatprep.subr.bf16.mxu0 0
        %3910 = vmatpush2.bf16.xpose.msra.mxu0 %v3881
        %3911 = vmatprep.subr.bf16.mxu0 0
        %3912 = vmatpush2.bf16.xpose.msra.mxu0 %v3878
        %3913 = vmatprep.subr.bf16.mxu0 0
        %3914 = vmatpush2.bf16.xpose.msra.mxu0 %v3875
        %3915 = vmatprep.subr.bf16.mxu0 0
        %3916 = vmatpush2.bf16.xpose.msra.mxu0 %v3872
        %3917 = vmatprep.subr.bf16.mxu0 0
        %3918 = vmatpush2.bf16.xpose.msra.mxu0 %v3869
        %3919 = vmatprep.subr.bf16.mxu0 0
        %3920 = vmatpush2.bf16.xpose.msra.mxu0 %v3866
        %3921 = vmatprep.mubr.bf16.mxu0 0
        %3922 = vmatmul.mubr.bf16.gmra.mxu0 %v3794
        %v3923 = vpop.f32.mrf.mxu0
        %v3924 = vadd.f32 0.0, %v3923
        %v3925 = vpop.f32.mrf.mxu0
        %v3926 = vadd.f32 0.0, %v3925
        %v3927 = vpop.f32.mrf.mxu0
        %v3928 = vadd.f32 0.0, %v3927
        %v3929 = vpop.f32.mrf.mxu0
        %v3930 = vadd.f32 0.0, %v3929
        %3931 = vmatprep.mubr.bf16.mxu0 0
        %3932 = vmatmul.mubr.bf16.gmra.mxu0 %v3797
        %v3933 = vpop.f32.mrf.mxu0
        %v3934 = vadd.f32 0.0, %v3933
        %v3935 = vpop.f32.mrf.mxu0
        %v3936 = vadd.f32 0.0, %v3935
        %v3937 = vpop.f32.mrf.mxu0
        %v3938 = vadd.f32 0.0, %v3937
        %v3939 = vpop.f32.mrf.mxu0
        %v3940 = vadd.f32 0.0, %v3939
        %3941 = vmatprep.mubr.bf16.mxu0 0
        %3942 = vmatmul.mubr.bf16.gmra.mxu0 %v3800
        %v3943 = vpop.f32.mrf.mxu0
        %v3944 = vadd.f32 0.0, %v3943
        %v3945 = vpop.f32.mrf.mxu0
        %v3946 = vadd.f32 0.0, %v3945
        %v3947 = vpop.f32.mrf.mxu0
        %v3948 = vadd.f32 0.0, %v3947
        %v3949 = vpop.f32.mrf.mxu0
        %v3950 = vadd.f32 0.0, %v3949
        %3951 = vmatprep.mubr.bf16.mxu0 0
        %3952 = vmatmul.mubr.bf16.gmra.mxu0 %v3803
        %v3953 = vpop.f32.mrf.mxu0
        %v3954 = vadd.f32 0.0, %v3953
        %v3955 = vpop.f32.mrf.mxu0
        %v3956 = vadd.f32 0.0, %v3955
        %v3957 = vpop.f32.mrf.mxu0
        %v3958 = vadd.f32 0.0, %v3957
        %v3959 = vpop.f32.mrf.mxu0
        %v3960 = vadd.f32 0.0, %v3959
        %3961 = vmatprep.mubr.bf16.mxu0 0
        %3962 = vmatmul.mubr.bf16.gmra.mxu0 %v3806
        %v3963 = vpop.f32.mrf.mxu0
        %v3964 = vadd.f32 0.0, %v3963
        %v3965 = vpop.f32.mrf.mxu0
        %v3966 = vadd.f32 0.0, %v3965
        %v3967 = vpop.f32.mrf.mxu0
        %v3968 = vadd.f32 0.0, %v3967
        %v3969 = vpop.f32.mrf.mxu0
        %v3970 = vadd.f32 0.0, %v3969
        %3971 = vmatprep.mubr.bf16.mxu0 0
        %3972 = vmatmul.mubr.bf16.gmra.mxu0 %v3809
        %v3973 = vpop.f32.mrf.mxu0
        %v3974 = vadd.f32 0.0, %v3973
        %v3975 = vpop.f32.mrf.mxu0
        %v3976 = vadd.f32 0.0, %v3975
        %v3977 = vpop.f32.mrf.mxu0
        %v3978 = vadd.f32 0.0, %v3977
        %v3979 = vpop.f32.mrf.mxu0
        %v3980 = vadd.f32 0.0, %v3979
        %3981 = vmatprep.mubr.bf16.mxu0 0
        %3982 = vmatmul.mubr.bf16.gmra.mxu0 %v3812
        %v3983 = vpop.f32.mrf.mxu0
        %v3984 = vadd.f32 0.0, %v3983
        %v3985 = vpop.f32.mrf.mxu0
        %v3986 = vadd.f32 0.0, %v3985
        %v3987 = vpop.f32.mrf.mxu0
        %v3988 = vadd.f32 0.0, %v3987
        %v3989 = vpop.f32.mrf.mxu0
        %v3990 = vadd.f32 0.0, %v3989
        %3991 = vmatprep.mubr.bf16.mxu0 0
        %3992 = vmatmul.mubr.bf16.gmra.mxu0 %v3815
        %v3993 = vpop.f32.mrf.mxu0
        %v3994 = vadd.f32 0.0, %v3993
        %v3995 = vpop.f32.mrf.mxu0
        %v3996 = vadd.f32 0.0, %v3995
        %v3997 = vpop.f32.mrf.mxu0
        %v3998 = vadd.f32 0.0, %v3997
        %v3999 = vpop.f32.mrf.mxu0
        %v4000 = vadd.f32 0.0, %v3999
        %4001 = vmatprep.mubr.bf16.mxu0 0
        %4002 = vmatmul.mubr.bf16.gmra.mxu0 %v3818
        %v4003 = vpop.f32.mrf.mxu0
        %v4004 = vadd.f32 0.0, %v4003
        %v4005 = vpop.f32.mrf.mxu0
        %v4006 = vadd.f32 0.0, %v4005
        %v4007 = vpop.f32.mrf.mxu0
        %v4008 = vadd.f32 0.0, %v4007
        %v4009 = vpop.f32.mrf.mxu0
        %v4010 = vadd.f32 0.0, %v4009
        %4011 = vmatprep.mubr.bf16.mxu0 0
        %4012 = vmatmul.mubr.bf16.gmra.mxu0 %v3821
        %v4013 = vpop.f32.mrf.mxu0
        %v4014 = vadd.f32 0.0, %v4013
        %v4015 = vpop.f32.mrf.mxu0
        %v4016 = vadd.f32 0.0, %v4015
        %v4017 = vpop.f32.mrf.mxu0
        %v4018 = vadd.f32 0.0, %v4017
        %v4019 = vpop.f32.mrf.mxu0
        %v4020 = vadd.f32 0.0, %v4019
        %4021 = vmatprep.mubr.bf16.mxu0 0
        %4022 = vmatmul.mubr.bf16.gmra.mxu0 %v3824
        %v4023 = vpop.f32.mrf.mxu0
        %v4024 = vadd.f32 0.0, %v4023
        %v4025 = vpop.f32.mrf.mxu0
        %v4026 = vadd.f32 0.0, %v4025
        %v4027 = vpop.f32.mrf.mxu0
        %v4028 = vadd.f32 0.0, %v4027
        %v4029 = vpop.f32.mrf.mxu0
        %v4030 = vadd.f32 0.0, %v4029
        %4031 = vmatprep.mubr.bf16.mxu0 0
        %4032 = vmatmul.mubr.bf16.gmra.mxu0 %v3827
        %v4033 = vpop.f32.mrf.mxu0
        %v4034 = vadd.f32 0.0, %v4033
        %v4035 = vpop.f32.mrf.mxu0
        %v4036 = vadd.f32 0.0, %v4035
        %v4037 = vpop.f32.mrf.mxu0
        %v4038 = vadd.f32 0.0, %v4037
        %v4039 = vpop.f32.mrf.mxu0
        %v4040 = vadd.f32 0.0, %v4039
        %4041 = vmatprep.mubr.bf16.mxu0 0
        %4042 = vmatmul.mubr.bf16.gmra.mxu0 %v3830
        %v4043 = vpop.f32.mrf.mxu0
        %v4044 = vadd.f32 0.0, %v4043
        %v4045 = vpop.f32.mrf.mxu0
        %v4046 = vadd.f32 0.0, %v4045
        %v4047 = vpop.f32.mrf.mxu0
        %v4048 = vadd.f32 0.0, %v4047
        %v4049 = vpop.f32.mrf.mxu0
        %v4050 = vadd.f32 0.0, %v4049
        %4051 = vmatprep.mubr.bf16.mxu0 0
        %4052 = vmatmul.mubr.bf16.gmra.mxu0 %v3833
        %v4053 = vpop.f32.mrf.mxu0
        %v4054 = vadd.f32 0.0, %v4053
        %v4055 = vpop.f32.mrf.mxu0
        %v4056 = vadd.f32 0.0, %v4055
        %v4057 = vpop.f32.mrf.mxu0
        %v4058 = vadd.f32 0.0, %v4057
        %v4059 = vpop.f32.mrf.mxu0
        %v4060 = vadd.f32 0.0, %v4059
        %4061 = vmatprep.mubr.bf16.mxu0 0
        %4062 = vmatmul.mubr.bf16.gmra.mxu0 %v3836
        %v4063 = vpop.f32.mrf.mxu0
        %v4064 = vadd.f32 0.0, %v4063
        %v4065 = vpop.f32.mrf.mxu0
        %v4066 = vadd.f32 0.0, %v4065
        %v4067 = vpop.f32.mrf.mxu0
        %v4068 = vadd.f32 0.0, %v4067
        %v4069 = vpop.f32.mrf.mxu0
        %v4070 = vadd.f32 0.0, %v4069
        %4071 = vmatprep.mubr.bf16.mxu0 0
        %4072 = vmatmul.mubr.bf16.gmra.mxu0 %v3839
        %v4073 = vpop.f32.mrf.mxu0
        %v4074 = vadd.f32 0.0, %v4073
        %v4075 = vpop.f32.mrf.mxu0
        %v4076 = vadd.f32 0.0, %v4075
        %v4077 = vpop.f32.mrf.mxu0
        %v4078 = vadd.f32 0.0, %v4077
        %v4079 = vpop.f32.mrf.mxu0
        %v4080 = vadd.f32 0.0, %v4079
        %4081 = vdwg.mxu0
        %v4082 = vmax.f32 %v3924, %v3926
        %4083 = vmax.xlane.f32.xlu0 %v4082
        %v4084 = vpop.xlane.xlu0 %4083
        %v4085 = vmax.f32 %v3928, %v3930
        %4086 = vmax.xlane.f32.xlu0 %v4085
        %v4087 = vpop.xlane.xlu0 %4086
        %v4088 = vmax.f32 %v3934, %v3936
        %4089 = vmax.xlane.f32.xlu0 %v4088
        %v4090 = vpop.xlane.xlu0 %4089
        %v4091 = vmax.f32 %v3938, %v3940
        %4092 = vmax.xlane.f32.xlu0 %v4091
        %v4093 = vpop.xlane.xlu0 %4092
        %v4094 = vmax.f32 %v3944, %v3946
        %4095 = vmax.xlane.f32.xlu0 %v4094
        %v4096 = vpop.xlane.xlu0 %4095
        %v4097 = vmax.f32 %v3948, %v3950
        %4098 = vmax.xlane.f32.xlu0 %v4097
        %v4099 = vpop.xlane.xlu0 %4098
        %v4100 = vmax.f32 %v3954, %v3956
        %4101 = vmax.xlane.f32.xlu0 %v4100
        %v4102 = vpop.xlane.xlu0 %4101
        %v4103 = vmax.f32 %v3958, %v3960
        %4104 = vmax.xlane.f32.xlu0 %v4103
        %v4105 = vpop.xlane.xlu0 %4104
        %v4106 = vmax.f32 %v3964, %v3966
        %4107 = vmax.xlane.f32.xlu0 %v4106
        %v4108 = vpop.xlane.xlu0 %4107
        %v4109 = vmax.f32 %v3968, %v3970
        %4110 = vmax.xlane.f32.xlu0 %v4109
        %v4111 = vpop.xlane.xlu0 %4110
        %v4112 = vmax.f32 %v3974, %v3976
        %4113 = vmax.xlane.f32.xlu0 %v4112
        %v4114 = vpop.xlane.xlu0 %4113
        %v4115 = vmax.f32 %v3978, %v3980
        %4116 = vmax.xlane.f32.xlu0 %v4115
        %v4117 = vpop.xlane.xlu0 %4116
        %v4118 = vmax.f32 %v3984, %v3986
        %4119 = vmax.xlane.f32.xlu0 %v4118
        %v4120 = vpop.xlane.xlu0 %4119
        %v4121 = vmax.f32 %v3988, %v3990
        %4122 = vmax.xlane.f32.xlu0 %v4121
        %v4123 = vpop.xlane.xlu0 %4122
        %v4124 = vmax.f32 %v3994, %v3996
        %4125 = vmax.xlane.f32.xlu0 %v4124
        %v4126 = vpop.xlane.xlu0 %4125
        %v4127 = vmax.f32 %v3998, %v4000
        %4128 = vmax.xlane.f32.xlu0 %v4127
        %v4129 = vpop.xlane.xlu0 %4128
        %v4130 = vmax.f32 %v4004, %v4006
        %4131 = vmax.xlane.f32.xlu0 %v4130
        %v4132 = vpop.xlane.xlu0 %4131
        %v4133 = vmax.f32 %v4008, %v4010
        %4134 = vmax.xlane.f32.xlu0 %v4133
        %v4135 = vpop.xlane.xlu0 %4134
        %v4136 = vmax.f32 %v4014, %v4016
        %4137 = vmax.xlane.f32.xlu0 %v4136
        %v4138 = vpop.xlane.xlu0 %4137
        %v4139 = vmax.f32 %v4018, %v4020
        %4140 = vmax.xlane.f32.xlu0 %v4139
        %v4141 = vpop.xlane.xlu0 %4140
        %v4142 = vmax.f32 %v4024, %v4026
        %4143 = vmax.xlane.f32.xlu0 %v4142
        %v4144 = vpop.xlane.xlu0 %4143
        %v4145 = vmax.f32 %v4028, %v4030
        %4146 = vmax.xlane.f32.xlu0 %v4145
        %v4147 = vpop.xlane.xlu0 %4146
        %v4148 = vmax.f32 %v4034, %v4036
        %4149 = vmax.xlane.f32.xlu0 %v4148
        %v4150 = vpop.xlane.xlu0 %4149
        %v4151 = vmax.f32 %v4038, %v4040
        %4152 = vmax.xlane.f32.xlu0 %v4151
        %v4153 = vpop.xlane.xlu0 %4152
        %v4154 = vmax.f32 %v4044, %v4046
        %4155 = vmax.xlane.f32.xlu0 %v4154
        %v4156 = vpop.xlane.xlu0 %4155
        %v4157 = vmax.f32 %v4048, %v4050
        %4158 = vmax.xlane.f32.xlu0 %v4157
        %v4159 = vpop.xlane.xlu0 %4158
        %v4160 = vmax.f32 %v4054, %v4056
        %4161 = vmax.xlane.f32.xlu0 %v4160
        %v4162 = vpop.xlane.xlu0 %4161
        %v4163 = vmax.f32 %v4058, %v4060
        %4164 = vmax.xlane.f32.xlu0 %v4163
        %v4165 = vpop.xlane.xlu0 %4164
        %v4166 = vmax.f32 %v4064, %v4066
        %4167 = vmax.xlane.f32.xlu0 %v4166
        %v4168 = vpop.xlane.xlu0 %4167
        %v4169 = vmax.f32 %v4068, %v4070
        %4170 = vmax.xlane.f32.xlu0 %v4169
        %v4171 = vpop.xlane.xlu0 %4170
        %v4172 = vmax.f32 %v4074, %v4076
        %4173 = vmax.xlane.f32.xlu0 %v4172
        %v4174 = vpop.xlane.xlu0 %4173
        %v4175 = vmax.f32 %v4078, %v4080
        %4176 = vmax.xlane.f32.xlu0 %v4175
        %v4177 = vpop.xlane.xlu0 %4176
        %v4178 = vsub.f32 %v3924, %v4084
        %v4179 = vsub.f32 %v3926, %v4084
        %v4180 = vsub.f32 %v3928, %v4087
        %v4181 = vsub.f32 %v3930, %v4087
        %v4182 = vsub.f32 %v3934, %v4090
        %v4183 = vsub.f32 %v3936, %v4090
        %v4184 = vsub.f32 %v3938, %v4093
        %v4185 = vsub.f32 %v3940, %v4093
        %v4186 = vsub.f32 %v3944, %v4096
        %v4187 = vsub.f32 %v3946, %v4096
        %v4188 = vsub.f32 %v3948, %v4099
        %v4189 = vsub.f32 %v3950, %v4099
        %v4190 = vsub.f32 %v3954, %v4102
        %v4191 = vsub.f32 %v3956, %v4102
        %v4192 = vsub.f32 %v3958, %v4105
        %v4193 = vsub.f32 %v3960, %v4105
        %v4194 = vsub.f32 %v3964, %v4108
        %v4195 = vsub.f32 %v3966, %v4108
        %v4196 = vsub.f32 %v3968, %v4111
        %v4197 = vsub.f32 %v3970, %v4111
        %v4198 = vsub.f32 %v3974, %v4114
        %v4199 = vsub.f32 %v3976, %v4114
        %v4200 = vsub.f32 %v3978, %v4117
        %v4201 = vsub.f32 %v3980, %v4117
        %v4202 = vsub.f32 %v3984, %v4120
        %v4203 = vsub.f32 %v3986, %v4120
        %v4204 = vsub.f32 %v3988, %v4123
        %v4205 = vsub.f32 %v3990, %v4123
        %v4206 = vsub.f32 %v3994, %v4126
        %v4207 = vsub.f32 %v3996, %v4126
        %v4208 = vsub.f32 %v3998, %v4129
        %v4209 = vsub.f32 %v4000, %v4129
        %v4210 = vsub.f32 %v4004, %v4132
        %v4211 = vsub.f32 %v4006, %v4132
        %v4212 = vsub.f32 %v4008, %v4135
        %v4213 = vsub.f32 %v4010, %v4135
        %v4214 = vsub.f32 %v4014, %v4138
        %v4215 = vsub.f32 %v4016, %v4138
        %v4216 = vsub.f32 %v4018, %v4141
        %v4217 = vsub.f32 %v4020, %v4141
        %v4218 = vsub.f32 %v4024, %v4144
        %v4219 = vsub.f32 %v4026, %v4144
        %v4220 = vsub.f32 %v4028, %v4147
        %v4221 = vsub.f32 %v4030, %v4147
        %v4222 = vsub.f32 %v4034, %v4150
        %v4223 = vsub.f32 %v4036, %v4150
        %v4224 = vsub.f32 %v4038, %v4153
        %v4225 = vsub.f32 %v4040, %v4153
        %v4226 = vsub.f32 %v4044, %v4156
        %v4227 = vsub.f32 %v4046, %v4156
        %v4228 = vsub.f32 %v4048, %v4159
        %v4229 = vsub.f32 %v4050, %v4159
        %v4230 = vsub.f32 %v4054, %v4162
        %v4231 = vsub.f32 %v4056, %v4162
        %v4232 = vsub.f32 %v4058, %v4165
        %v4233 = vsub.f32 %v4060, %v4165
        %v4234 = vsub.f32 %v4064, %v4168
        %v4235 = vsub.f32 %v4066, %v4168
        %v4236 = vsub.f32 %v4068, %v4171
        %v4237 = vsub.f32 %v4070, %v4171
        %v4238 = vsub.f32 %v4074, %v4174
        %v4239 = vsub.f32 %v4076, %v4174
        %v4240 = vsub.f32 %v4078, %v4177
        %v4241 = vsub.f32 %v4080, %v4177
        %v4242 = vmul.f32 %v4178, 1.442695
        %v4243 = vpow.pop %v4242
        %v4244 = vmul.f32 %v4179, 1.442695
        %v4245 = vpow.pop %v4244
        %v4246 = vmul.f32 %v4180, 1.442695
        %v4247 = vpow.pop %v4246
        %v4248 = vmul.f32 %v4181, 1.442695
        %v4249 = vpow.pop %v4248
        %v4250 = vmul.f32 %v4182, 1.442695
        %v4251 = vpow.pop %v4250
        %v4252 = vmul.f32 %v4183, 1.442695
        %v4253 = vpow.pop %v4252
        %v4254 = vmul.f32 %v4184, 1.442695
        %v4255 = vpow.pop %v4254
        %v4256 = vmul.f32 %v4185, 1.442695
        %v4257 = vpow.pop %v4256
        %v4258 = vmul.f32 %v4186, 1.442695
        %v4259 = vpow.pop %v4258
        %v4260 = vmul.f32 %v4187, 1.442695
        %v4261 = vpow.pop %v4260
        %v4262 = vmul.f32 %v4188, 1.442695
        %v4263 = vpow.pop %v4262
        %v4264 = vmul.f32 %v4189, 1.442695
        %v4265 = vpow.pop %v4264
        %v4266 = vmul.f32 %v4190, 1.442695
        %v4267 = vpow.pop %v4266
        %v4268 = vmul.f32 %v4191, 1.442695
        %v4269 = vpow.pop %v4268
        %v4270 = vmul.f32 %v4192, 1.442695
        %v4271 = vpow.pop %v4270
        %v4272 = vmul.f32 %v4193, 1.442695
        %v4273 = vpow.pop %v4272
        %v4274 = vmul.f32 %v4194, 1.442695
        %v4275 = vpow.pop %v4274
        %v4276 = vmul.f32 %v4195, 1.442695
        %v4277 = vpow.pop %v4276
        %v4278 = vmul.f32 %v4196, 1.442695
        %v4279 = vpow.pop %v4278
        %v4280 = vmul.f32 %v4197, 1.442695
        %v4281 = vpow.pop %v4280
        %v4282 = vmul.f32 %v4198, 1.442695
        %v4283 = vpow.pop %v4282
        %v4284 = vmul.f32 %v4199, 1.442695
        %v4285 = vpow.pop %v4284
        %v4286 = vmul.f32 %v4200, 1.442695
        %v4287 = vpow.pop %v4286
        %v4288 = vmul.f32 %v4201, 1.442695
        %v4289 = vpow.pop %v4288
        %v4290 = vmul.f32 %v4202, 1.442695
        %v4291 = vpow.pop %v4290
        %v4292 = vmul.f32 %v4203, 1.442695
        %v4293 = vpow.pop %v4292
        %v4294 = vmul.f32 %v4204, 1.442695
        %v4295 = vpow.pop %v4294
        %v4296 = vmul.f32 %v4205, 1.442695
        %v4297 = vpow.pop %v4296
        %v4298 = vmul.f32 %v4206, 1.442695
        %v4299 = vpow.pop %v4298
        %v4300 = vmul.f32 %v4207, 1.442695
        %v4301 = vpow.pop %v4300
        %v4302 = vmul.f32 %v4208, 1.442695
        %v4303 = vpow.pop %v4302
        %v4304 = vmul.f32 %v4209, 1.442695
        %v4305 = vpow.pop %v4304
        %v4306 = vmul.f32 %v4210, 1.442695
        %v4307 = vpow.pop %v4306
        %v4308 = vmul.f32 %v4211, 1.442695
        %v4309 = vpow.pop %v4308
        %v4310 = vmul.f32 %v4212, 1.442695
        %v4311 = vpow.pop %v4310
        %v4312 = vmul.f32 %v4213, 1.442695
        %v4313 = vpow.pop %v4312
        %v4314 = vmul.f32 %v4214, 1.442695
        %v4315 = vpow.pop %v4314
        %v4316 = vmul.f32 %v4215, 1.442695
        %v4317 = vpow.pop %v4316
        %v4318 = vmul.f32 %v4216, 1.442695
        %v4319 = vpow.pop %v4318
        %v4320 = vmul.f32 %v4217, 1.442695
        %v4321 = vpow.pop %v4320
        %v4322 = vmul.f32 %v4218, 1.442695
        %v4323 = vpow.pop %v4322
        %v4324 = vmul.f32 %v4219, 1.442695
        %v4325 = vpow.pop %v4324
        %v4326 = vmul.f32 %v4220, 1.442695
        %v4327 = vpow.pop %v4326
        %v4328 = vmul.f32 %v4221, 1.442695
        %v4329 = vpow.pop %v4328
        %v4330 = vmul.f32 %v4222, 1.442695
        %v4331 = vpow.pop %v4330
        %v4332 = vmul.f32 %v4223, 1.442695
        %v4333 = vpow.pop %v4332
        %v4334 = vmul.f32 %v4224, 1.442695
        %v4335 = vpow.pop %v4334
        %v4336 = vmul.f32 %v4225, 1.442695
        %v4337 = vpow.pop %v4336
        %v4338 = vmul.f32 %v4226, 1.442695
        %v4339 = vpow.pop %v4338
        %v4340 = vmul.f32 %v4227, 1.442695
        %v4341 = vpow.pop %v4340
        %v4342 = vmul.f32 %v4228, 1.442695
        %v4343 = vpow.pop %v4342
        %v4344 = vmul.f32 %v4229, 1.442695
        %v4345 = vpow.pop %v4344
        %v4346 = vmul.f32 %v4230, 1.442695
        %v4347 = vpow.pop %v4346
        %v4348 = vmul.f32 %v4231, 1.442695
        %v4349 = vpow.pop %v4348
        %v4350 = vmul.f32 %v4232, 1.442695
        %v4351 = vpow.pop %v4350
        %v4352 = vmul.f32 %v4233, 1.442695
        %v4353 = vpow.pop %v4352
        %v4354 = vmul.f32 %v4234, 1.442695
        %v4355 = vpow.pop %v4354
        %v4356 = vmul.f32 %v4235, 1.442695
        %v4357 = vpow.pop %v4356
        %v4358 = vmul.f32 %v4236, 1.442695
        %v4359 = vpow.pop %v4358
        %v4360 = vmul.f32 %v4237, 1.442695
        %v4361 = vpow.pop %v4360
        %v4362 = vmul.f32 %v4238, 1.442695
        %v4363 = vpow.pop %v4362
        %v4364 = vmul.f32 %v4239, 1.442695
        %v4365 = vpow.pop %v4364
        %v4366 = vmul.f32 %v4240, 1.442695
        %v4367 = vpow.pop %v4366
        %v4368 = vmul.f32 %v4241, 1.442695
        %v4369 = vpow.pop %v4368
        %v4370 = vadd.f32 %v4243, %v4245
        %4371 = vadd.xlane.f32.xlu0 %v4370
        %v4372 = vpop.xlane.xlu0 %4371
        %v4373 = vadd.f32 %v4247, %v4249
        %4374 = vadd.xlane.f32.xlu0 %v4373
        %v4375 = vpop.xlane.xlu0 %4374
        %v4376 = vadd.f32 %v4251, %v4253
        %4377 = vadd.xlane.f32.xlu0 %v4376
        %v4378 = vpop.xlane.xlu0 %4377
        %v4379 = vadd.f32 %v4255, %v4257
        %4380 = vadd.xlane.f32.xlu0 %v4379
        %v4381 = vpop.xlane.xlu0 %4380
        %v4382 = vadd.f32 %v4259, %v4261
        %4383 = vadd.xlane.f32.xlu0 %v4382
        %v4384 = vpop.xlane.xlu0 %4383
        %v4385 = vadd.f32 %v4263, %v4265
        %4386 = vadd.xlane.f32.xlu0 %v4385
        %v4387 = vpop.xlane.xlu0 %4386
        %v4388 = vadd.f32 %v4267, %v4269
        %4389 = vadd.xlane.f32.xlu0 %v4388
        %v4390 = vpop.xlane.xlu0 %4389
        %v4391 = vadd.f32 %v4271, %v4273
        %4392 = vadd.xlane.f32.xlu0 %v4391
        %v4393 = vpop.xlane.xlu0 %4392
        %v4394 = vadd.f32 %v4275, %v4277
        %4395 = vadd.xlane.f32.xlu0 %v4394
        %v4396 = vpop.xlane.xlu0 %4395
        %v4397 = vadd.f32 %v4279, %v4281
        %4398 = vadd.xlane.f32.xlu0 %v4397
        %v4399 = vpop.xlane.xlu0 %4398
        %v4400 = vadd.f32 %v4283, %v4285
        %4401 = vadd.xlane.f32.xlu0 %v4400
        %v4402 = vpop.xlane.xlu0 %4401
        %v4403 = vadd.f32 %v4287, %v4289
        %4404 = vadd.xlane.f32.xlu0 %v4403
        %v4405 = vpop.xlane.xlu0 %4404
        %v4406 = vadd.f32 %v4291, %v4293
        %4407 = vadd.xlane.f32.xlu0 %v4406
        %v4408 = vpop.xlane.xlu0 %4407
        %v4409 = vadd.f32 %v4295, %v4297
        %4410 = vadd.xlane.f32.xlu0 %v4409
        %v4411 = vpop.xlane.xlu0 %4410
        %v4412 = vadd.f32 %v4299, %v4301
        %4413 = vadd.xlane.f32.xlu0 %v4412
        %v4414 = vpop.xlane.xlu0 %4413
        %v4415 = vadd.f32 %v4303, %v4305
        %4416 = vadd.xlane.f32.xlu0 %v4415
        %v4417 = vpop.xlane.xlu0 %4416
        %v4418 = vadd.f32 %v4307, %v4309
        %4419 = vadd.xlane.f32.xlu0 %v4418
        %v4420 = vpop.xlane.xlu0 %4419
        %v4421 = vadd.f32 %v4311, %v4313
        %4422 = vadd.xlane.f32.xlu0 %v4421
        %v4423 = vpop.xlane.xlu0 %4422
        %v4424 = vadd.f32 %v4315, %v4317
        %4425 = vadd.xlane.f32.xlu0 %v4424
        %v4426 = vpop.xlane.xlu0 %4425
        %v4427 = vadd.f32 %v4319, %v4321
        %4428 = vadd.xlane.f32.xlu0 %v4427
        %v4429 = vpop.xlane.xlu0 %4428
        %v4430 = vadd.f32 %v4323, %v4325
        %4431 = vadd.xlane.f32.xlu0 %v4430
        %v4432 = vpop.xlane.xlu0 %4431
        %v4433 = vadd.f32 %v4327, %v4329
        %4434 = vadd.xlane.f32.xlu0 %v4433
        %v4435 = vpop.xlane.xlu0 %4434
        %v4436 = vadd.f32 %v4331, %v4333
        %4437 = vadd.xlane.f32.xlu0 %v4436
        %v4438 = vpop.xlane.xlu0 %4437
        %v4439 = vadd.f32 %v4335, %v4337
        %4440 = vadd.xlane.f32.xlu0 %v4439
        %v4441 = vpop.xlane.xlu0 %4440
        %v4442 = vadd.f32 %v4339, %v4341
        %4443 = vadd.xlane.f32.xlu0 %v4442
        %v4444 = vpop.xlane.xlu0 %4443
        %v4445 = vadd.f32 %v4343, %v4345
        %4446 = vadd.xlane.f32.xlu0 %v4445
        %v4447 = vpop.xlane.xlu0 %4446
        %v4448 = vadd.f32 %v4347, %v4349
        %4449 = vadd.xlane.f32.xlu0 %v4448
        %v4450 = vpop.xlane.xlu0 %4449
        %v4451 = vadd.f32 %v4351, %v4353
        %4452 = vadd.xlane.f32.xlu0 %v4451
        %v4453 = vpop.xlane.xlu0 %4452
        %v4454 = vadd.f32 %v4355, %v4357
        %4455 = vadd.xlane.f32.xlu0 %v4454
        %v4456 = vpop.xlane.xlu0 %4455
        %v4457 = vadd.f32 %v4359, %v4361
        %4458 = vadd.xlane.f32.xlu0 %v4457
        %v4459 = vpop.xlane.xlu0 %4458
        %v4460 = vadd.f32 %v4363, %v4365
        %4461 = vadd.xlane.f32.xlu0 %v4460
        %v4462 = vpop.xlane.xlu0 %4461
        %v4463 = vadd.f32 %v4367, %v4369
        %4464 = vadd.xlane.f32.xlu0 %v4463
        %v4465 = vpop.xlane.xlu0 %4464
        %v4466 = vrcp.pop %v4372
        %v4467 = vrcp.pop %v4375
        %v4468 = vrcp.pop %v4378
        %v4469 = vrcp.pop %v4381
        %v4470 = vrcp.pop %v4384
        %v4471 = vrcp.pop %v4387
        %v4472 = vrcp.pop %v4390
        %v4473 = vrcp.pop %v4393
        %v4474 = vrcp.pop %v4396
        %v4475 = vrcp.pop %v4399
        %v4476 = vrcp.pop %v4402
        %v4477 = vrcp.pop %v4405
        %v4478 = vrcp.pop %v4408
        %v4479 = vrcp.pop %v4411
        %v4480 = vrcp.pop %v4414
        %v4481 = vrcp.pop %v4417
        %v4482 = vrcp.pop %v4420
        %v4483 = vrcp.pop %v4423
        %v4484 = vrcp.pop %v4426
        %v4485 = vrcp.pop %v4429
        %v4486 = vrcp.pop %v4432
        %v4487 = vrcp.pop %v4435
        %v4488 = vrcp.pop %v4438
        %v4489 = vrcp.pop %v4441
        %v4490 = vrcp.pop %v4444
        %v4491 = vrcp.pop %v4447
        %v4492 = vrcp.pop %v4450
        %v4493 = vrcp.pop %v4453
        %v4494 = vrcp.pop %v4456
        %v4495 = vrcp.pop %v4459
        %v4496 = vrcp.pop %v4462
        %v4497 = vrcp.pop %v4465
        %v4498 = vmul.f32 %v4243, %v4466
        %v4499 = vmul.f32 %v4245, %v4466
        %v4500 = vmul.f32 %v4247, %v4467
        %v4501 = vmul.f32 %v4249, %v4467
        %v4502 = vmul.f32 %v4251, %v4468
        %v4503 = vmul.f32 %v4253, %v4468
        %v4504 = vmul.f32 %v4255, %v4469
        %v4505 = vmul.f32 %v4257, %v4469
        %v4506 = vmul.f32 %v4259, %v4470
        %v4507 = vmul.f32 %v4261, %v4470
        %v4508 = vmul.f32 %v4263, %v4471
        %v4509 = vmul.f32 %v4265, %v4471
        %v4510 = vmul.f32 %v4267, %v4472
        %v4511 = vmul.f32 %v4269, %v4472
        %v4512 = vmul.f32 %v4271, %v4473
        %v4513 = vmul.f32 %v4273, %v4473
        %v4514 = vmul.f32 %v4275, %v4474
        %v4515 = vmul.f32 %v4277, %v4474
        %v4516 = vmul.f32 %v4279, %v4475
        %v4517 = vmul.f32 %v4281, %v4475
        %v4518 = vmul.f32 %v4283, %v4476
        %v4519 = vmul.f32 %v4285, %v4476
        %v4520 = vmul.f32 %v4287, %v4477
        %v4521 = vmul.f32 %v4289, %v4477
        %v4522 = vmul.f32 %v4291, %v4478
        %v4523 = vmul.f32 %v4293, %v4478
        %v4524 = vmul.f32 %v4295, %v4479
        %v4525 = vmul.f32 %v4297, %v4479
        %v4526 = vmul.f32 %v4299, %v4480
        %v4527 = vmul.f32 %v4301, %v4480
        %v4528 = vmul.f32 %v4303, %v4481
        %v4529 = vmul.f32 %v4305, %v4481
        %v4530 = vmul.f32 %v4307, %v4482
        %v4531 = vmul.f32 %v4309, %v4482
        %v4532 = vmul.f32 %v4311, %v4483
        %v4533 = vmul.f32 %v4313, %v4483
        %v4534 = vmul.f32 %v4315, %v4484
        %v4535 = vmul.f32 %v4317, %v4484
        %v4536 = vmul.f32 %v4319, %v4485
        %v4537 = vmul.f32 %v4321, %v4485
        %v4538 = vmul.f32 %v4323, %v4486
        %v4539 = vmul.f32 %v4325, %v4486
        %v4540 = vmul.f32 %v4327, %v4487
        %v4541 = vmul.f32 %v4329, %v4487
        %v4542 = vmul.f32 %v4331, %v4488
        %v4543 = vmul.f32 %v4333, %v4488
        %v4544 = vmul.f32 %v4335, %v4489
        %v4545 = vmul.f32 %v4337, %v4489
        %v4546 = vmul.f32 %v4339, %v4490
        %v4547 = vmul.f32 %v4341, %v4490
        %v4548 = vmul.f32 %v4343, %v4491
        %v4549 = vmul.f32 %v4345, %v4491
        %v4550 = vmul.f32 %v4347, %v4492
        %v4551 = vmul.f32 %v4349, %v4492
        %v4552 = vmul.f32 %v4351, %v4493
        %v4553 = vmul.f32 %v4353, %v4493
        %v4554 = vmul.f32 %v4355, %v4494
        %v4555 = vmul.f32 %v4357, %v4494
        %v4556 = vmul.f32 %v4359, %v4495
        %v4557 = vmul.f32 %v4361, %v4495
        %v4558 = vmul.f32 %v4363, %v4496
        %v4559 = vmul.f32 %v4365, %v4496
        %v4560 = vmul.f32 %v4367, %v4497
        %v4561 = vmul.f32 %v4369, %v4497
        %v4562 = vpack.c.bf16 %v4500, %v4498
        %v4563 = vpack.c.bf16 %v4501, %v4499
        %v4564 = vpack.c.bf16 %v4504, %v4502
        %v4565 = vpack.c.bf16 %v4505, %v4503
        %v4566 = vpack.c.bf16 %v4508, %v4506
        %v4567 = vpack.c.bf16 %v4509, %v4507
        %v4568 = vpack.c.bf16 %v4512, %v4510
        %v4569 = vpack.c.bf16 %v4513, %v4511
        %v4570 = vpack.c.bf16 %v4516, %v4514
        %v4571 = vpack.c.bf16 %v4517, %v4515
        %v4572 = vpack.c.bf16 %v4520, %v4518
        %v4573 = vpack.c.bf16 %v4521, %v4519
        %v4574 = vpack.c.bf16 %v4524, %v4522
        %v4575 = vpack.c.bf16 %v4525, %v4523
        %v4576 = vpack.c.bf16 %v4528, %v4526
        %v4577 = vpack.c.bf16 %v4529, %v4527
        %v4578 = vpack.c.bf16 %v4532, %v4530
        %v4579 = vpack.c.bf16 %v4533, %v4531
        %v4580 = vpack.c.bf16 %v4536, %v4534
        %v4581 = vpack.c.bf16 %v4537, %v4535
        %v4582 = vpack.c.bf16 %v4540, %v4538
        %v4583 = vpack.c.bf16 %v4541, %v4539
        %v4584 = vpack.c.bf16 %v4544, %v4542
        %v4585 = vpack.c.bf16 %v4545, %v4543
        %v4586 = vpack.c.bf16 %v4548, %v4546
        %v4587 = vpack.c.bf16 %v4549, %v4547
        %v4588 = vpack.c.bf16 %v4552, %v4550
        %v4589 = vpack.c.bf16 %v4553, %v4551
        %v4590 = vpack.c.bf16 %v4556, %v4554
        %v4591 = vpack.c.bf16 %v4557, %v4555
        %v4592 = vpack.c.bf16 %v4560, %v4558
        %v4593 = vpack.c.bf16 %v4561, %v4559
        %4594 = vrot.lane.b32.xlu0 %v1599, 64
        %v4595 = vpop.permute.xlu0 %4594
        %4596 = vrot.lane.b32.xlu0 %v1602, 64
        %v4597 = vpop.permute.xlu0 %4596
        %4598 = vrot.lane.b32.xlu0 %v1605, 64
        %v4599 = vpop.permute.xlu0 %4598
        %4600 = vrot.lane.b32.xlu0 %v1608, 64
        %v4601 = vpop.permute.xlu0 %4600
        %4602 = vrot.lane.b32.xlu0 %v1611, 64
        %v4603 = vpop.permute.xlu0 %4602
        %4604 = vrot.lane.b32.xlu0 %v1614, 64
        %v4605 = vpop.permute.xlu0 %4604
        %4606 = vrot.lane.b32.xlu0 %v1617, 64
        %v4607 = vpop.permute.xlu0 %4606
        %4608 = vrot.lane.b32.xlu0 %v1620, 64
        %v4609 = vpop.permute.xlu0 %4608
        %4610 = vrot.lane.b32.xlu0 %v1623, 64
        %v4611 = vpop.permute.xlu0 %4610
        %4612 = vrot.lane.b32.xlu0 %v1626, 64
        %v4613 = vpop.permute.xlu0 %4612
        %4614 = vrot.lane.b32.xlu0 %v1629, 64
        %v4615 = vpop.permute.xlu0 %4614
        %4616 = vrot.lane.b32.xlu0 %v1632, 64
        %v4617 = vpop.permute.xlu0 %4616
        %4618 = vrot.lane.b32.xlu0 %v1635, 64
        %v4619 = vpop.permute.xlu0 %4618
        %4620 = vrot.lane.b32.xlu0 %v1638, 64
        %v4621 = vpop.permute.xlu0 %4620
        %4622 = vrot.lane.b32.xlu0 %v1641, 64
        %v4623 = vpop.permute.xlu0 %4622
        %4624 = vrot.lane.b32.xlu0 %v1644, 64
        %v4625 = vpop.permute.xlu0 %4624
        %4642 = vmatprep.subr.bf16.mxu0 0
        %4643 = vmatpush1.bf16.msra.mxu0 %v4609
        %4644 = vmatprep.subr.bf16.mxu0 0
        %4645 = vmatpush1.bf16.msra.mxu0 %v4607
        %4646 = vmatprep.subr.bf16.mxu0 0
        %4647 = vmatpush1.bf16.msra.mxu0 %v4605
        %4648 = vmatprep.subr.bf16.mxu0 0
        %4649 = vmatpush1.bf16.msra.mxu0 %v4603
        %4650 = vmatprep.subr.bf16.mxu0 0
        %4651 = vmatpush1.bf16.msra.mxu0 %v4601
        %4652 = vmatprep.subr.bf16.mxu0 0
        %4653 = vmatpush1.bf16.msra.mxu0 %v4599
        %4654 = vmatprep.subr.bf16.mxu0 0
        %4655 = vmatpush1.bf16.msra.mxu0 %v4597
        %4656 = vmatprep.subr.bf16.mxu0 0
        %4657 = vmatpush1.bf16.msra.mxu0 %v4595
        %4658 = vmatprep.subr.bf16.mxu0 0
        %4659 = vmatpush2.bf16.msra.mxu0 %v4625
        %4660 = vmatprep.subr.bf16.mxu0 0
        %4661 = vmatpush2.bf16.msra.mxu0 %v4623
        %4662 = vmatprep.subr.bf16.mxu0 0
        %4663 = vmatpush2.bf16.msra.mxu0 %v4621
        %4664 = vmatprep.subr.bf16.mxu0 0
        %4665 = vmatpush2.bf16.msra.mxu0 %v4619
        %4666 = vmatprep.subr.bf16.mxu0 0
        %4667 = vmatpush2.bf16.msra.mxu0 %v4617
        %4668 = vmatprep.subr.bf16.mxu0 0
        %4669 = vmatpush2.bf16.msra.mxu0 %v4615
        %4670 = vmatprep.subr.bf16.mxu0 0
        %4671 = vmatpush2.bf16.msra.mxu0 %v4613
        %4672 = vmatprep.subr.bf16.mxu0 0
        %4673 = vmatpush2.bf16.msra.mxu0 %v4611
        %4674 = vmatprep.mubr.bf16.mxu0 %v4563
        %4675 = vmatmul.mubr.bf16.gmra.mxu0 %v4562
        %v4676 = vpop.f32.mrf.mxu0
        %v4677 = vadd.f32 0.0, %v4676
        %v4678 = vpop.f32.mrf.mxu0
        %v4679 = vpop.f32.mrf.mxu0
        %v4680 = vadd.f32 0.0, %v4679
        %v4681 = vpop.f32.mrf.mxu0
        %4682 = vmatprep.mubr.bf16.mxu0 %v4565
        %4683 = vmatmul.mubr.bf16.gmra.mxu0 %v4564
        %v4684 = vpop.f32.mrf.mxu0
        %v4685 = vadd.f32 0.0, %v4684
        %v4686 = vpop.f32.mrf.mxu0
        %v4687 = vpop.f32.mrf.mxu0
        %v4688 = vadd.f32 0.0, %v4687
        %v4689 = vpop.f32.mrf.mxu0
        %4690 = vmatprep.mubr.bf16.mxu0 %v4567
        %4691 = vmatmul.mubr.bf16.gmra.mxu0 %v4566
        %v4692 = vpop.f32.mrf.mxu0
        %v4693 = vadd.f32 0.0, %v4692
        %v4694 = vpop.f32.mrf.mxu0
        %v4695 = vpop.f32.mrf.mxu0
        %v4696 = vadd.f32 0.0, %v4695
        %v4697 = vpop.f32.mrf.mxu0
        %4698 = vmatprep.mubr.bf16.mxu0 %v4569
        %4699 = vmatmul.mubr.bf16.gmra.mxu0 %v4568
        %v4700 = vpop.f32.mrf.mxu0
        %v4701 = vadd.f32 0.0, %v4700
        %v4702 = vpop.f32.mrf.mxu0
        %v4703 = vpop.f32.mrf.mxu0
        %v4704 = vadd.f32 0.0, %v4703
        %v4705 = vpop.f32.mrf.mxu0
        %4706 = vmatprep.mubr.bf16.mxu0 %v4571
        %4707 = vmatmul.mubr.bf16.gmra.mxu0 %v4570
        %v4708 = vpop.f32.mrf.mxu0
        %v4709 = vadd.f32 0.0, %v4708
        %v4710 = vpop.f32.mrf.mxu0
        %v4711 = vpop.f32.mrf.mxu0
        %v4712 = vadd.f32 0.0, %v4711
        %v4713 = vpop.f32.mrf.mxu0
        %4714 = vmatprep.mubr.bf16.mxu0 %v4573
        %4715 = vmatmul.mubr.bf16.gmra.mxu0 %v4572
        %v4716 = vpop.f32.mrf.mxu0
        %v4717 = vadd.f32 0.0, %v4716
        %v4718 = vpop.f32.mrf.mxu0
        %v4719 = vpop.f32.mrf.mxu0
        %v4720 = vadd.f32 0.0, %v4719
        %v4721 = vpop.f32.mrf.mxu0
        %4722 = vmatprep.mubr.bf16.mxu0 %v4575
        %4723 = vmatmul.mubr.bf16.gmra.mxu0 %v4574
        %v4724 = vpop.f32.mrf.mxu0
        %v4725 = vadd.f32 0.0, %v4724
        %v4726 = vpop.f32.mrf.mxu0
        %v4727 = vpop.f32.mrf.mxu0
        %v4728 = vadd.f32 0.0, %v4727
        %v4729 = vpop.f32.mrf.mxu0
        %4730 = vmatprep.mubr.bf16.mxu0 %v4577
        %4731 = vmatmul.mubr.bf16.gmra.mxu0 %v4576
        %v4732 = vpop.f32.mrf.mxu0
        %v4733 = vadd.f32 0.0, %v4732
        %v4734 = vpop.f32.mrf.mxu0
        %v4735 = vpop.f32.mrf.mxu0
        %v4736 = vadd.f32 0.0, %v4735
        %v4737 = vpop.f32.mrf.mxu0
        %4738 = vmatprep.mubr.bf16.mxu0 %v4579
        %4739 = vmatmul.mubr.bf16.gmra.mxu0 %v4578
        %v4740 = vpop.f32.mrf.mxu0
        %v4741 = vadd.f32 0.0, %v4740
        %v4742 = vpop.f32.mrf.mxu0
        %v4743 = vpop.f32.mrf.mxu0
        %v4744 = vadd.f32 0.0, %v4743
        %v4745 = vpop.f32.mrf.mxu0
        %4746 = vmatprep.mubr.bf16.mxu0 %v4581
        %4747 = vmatmul.mubr.bf16.gmra.mxu0 %v4580
        %v4748 = vpop.f32.mrf.mxu0
        %v4749 = vadd.f32 0.0, %v4748
        %v4750 = vpop.f32.mrf.mxu0
        %v4751 = vpop.f32.mrf.mxu0
        %v4752 = vadd.f32 0.0, %v4751
        %v4753 = vpop.f32.mrf.mxu0
        %4754 = vmatprep.mubr.bf16.mxu0 %v4583
        %4755 = vmatmul.mubr.bf16.gmra.mxu0 %v4582
        %v4756 = vpop.f32.mrf.mxu0
        %v4757 = vadd.f32 0.0, %v4756
        %v4758 = vpop.f32.mrf.mxu0
        %v4759 = vpop.f32.mrf.mxu0
        %v4760 = vadd.f32 0.0, %v4759
        %v4761 = vpop.f32.mrf.mxu0
        %4762 = vmatprep.mubr.bf16.mxu0 %v4585
        %4763 = vmatmul.mubr.bf16.gmra.mxu0 %v4584
        %v4764 = vpop.f32.mrf.mxu0
        %v4765 = vadd.f32 0.0, %v4764
        %v4766 = vpop.f32.mrf.mxu0
        %v4767 = vpop.f32.mrf.mxu0
        %v4768 = vadd.f32 0.0, %v4767
        %v4769 = vpop.f32.mrf.mxu0
        %4770 = vmatprep.mubr.bf16.mxu0 %v4587
        %4771 = vmatmul.mubr.bf16.gmra.mxu0 %v4586
        %v4772 = vpop.f32.mrf.mxu0
        %v4773 = vadd.f32 0.0, %v4772
        %v4774 = vpop.f32.mrf.mxu0
        %v4775 = vpop.f32.mrf.mxu0
        %v4776 = vadd.f32 0.0, %v4775
        %v4777 = vpop.f32.mrf.mxu0
        %4778 = vmatprep.mubr.bf16.mxu0 %v4589
        %4779 = vmatmul.mubr.bf16.gmra.mxu0 %v4588
        %v4780 = vpop.f32.mrf.mxu0
        %v4781 = vadd.f32 0.0, %v4780
        %v4782 = vpop.f32.mrf.mxu0
        %v4783 = vpop.f32.mrf.mxu0
        %v4784 = vadd.f32 0.0, %v4783
        %v4785 = vpop.f32.mrf.mxu0
        %4786 = vmatprep.mubr.bf16.mxu0 %v4591
        %4787 = vmatmul.mubr.bf16.gmra.mxu0 %v4590
        %v4788 = vpop.f32.mrf.mxu0
        %v4789 = vadd.f32 0.0, %v4788
        %v4790 = vpop.f32.mrf.mxu0
        %v4791 = vpop.f32.mrf.mxu0
        %v4792 = vadd.f32 0.0, %v4791
        %v4793 = vpop.f32.mrf.mxu0
        %4794 = vmatprep.mubr.bf16.mxu0 %v4593
        %4795 = vmatmul.mubr.bf16.gmra.mxu0 %v4592
        %v4796 = vpop.f32.mrf.mxu0
        %v4797 = vadd.f32 0.0, %v4796
        %v4798 = vpop.f32.mrf.mxu0
        %v4799 = vpop.f32.mrf.mxu0
        %v4800 = vadd.f32 0.0, %v4799
        %v4801 = vpop.f32.mrf.mxu0
        %4802 = vdwg.mxu0
        %4803 = vrot.lane.b32.xlu0 %v1597, 32
        %v4804 = vpop.permute.xlu0 %4803
        %4805 = vrot.lane.b32.xlu0 %v1600, 32
        %v4806 = vpop.permute.xlu0 %4805
        %4807 = vrot.lane.b32.xlu0 %v1603, 32
        %v4808 = vpop.permute.xlu0 %4807
        %4809 = vrot.lane.b32.xlu0 %v1606, 32
        %v4810 = vpop.permute.xlu0 %4809
        %4811 = vrot.lane.b32.xlu0 %v1609, 32
        %v4812 = vpop.permute.xlu0 %4811
        %4813 = vrot.lane.b32.xlu0 %v1612, 32
        %v4814 = vpop.permute.xlu0 %4813
        %4815 = vrot.lane.b32.xlu0 %v1615, 32
        %v4816 = vpop.permute.xlu0 %4815
        %4817 = vrot.lane.b32.xlu0 %v1618, 32
        %v4818 = vpop.permute.xlu0 %4817
        %4819 = vrot.lane.b32.xlu0 %v1621, 32
        %v4820 = vpop.permute.xlu0 %4819
        %4821 = vrot.lane.b32.xlu0 %v1624, 32
        %v4822 = vpop.permute.xlu0 %4821
        %4823 = vrot.lane.b32.xlu0 %v1627, 32
        %v4824 = vpop.permute.xlu0 %4823
        %4825 = vrot.lane.b32.xlu0 %v1630, 32
        %v4826 = vpop.permute.xlu0 %4825
        %4827 = vrot.lane.b32.xlu0 %v1633, 32
        %v4828 = vpop.permute.xlu0 %4827
        %4829 = vrot.lane.b32.xlu0 %v1636, 32
        %v4830 = vpop.permute.xlu0 %4829
        %4831 = vrot.lane.b32.xlu0 %v1639, 32
        %v4832 = vpop.permute.xlu0 %4831
        %4833 = vrot.lane.b32.xlu0 %v1642, 32
        %v4834 = vpop.permute.xlu0 %4833
        %4835 = vrot.lane.b32.xlu0 %v1598, 32
        %v4836 = vpop.permute.xlu0 %4835
        %4837 = vrot.lane.b32.xlu0 %v1601, 32
        %v4838 = vpop.permute.xlu0 %4837
        %4839 = vrot.lane.b32.xlu0 %v1604, 32
        %v4840 = vpop.permute.xlu0 %4839
        %4841 = vrot.lane.b32.xlu0 %v1607, 32
        %v4842 = vpop.permute.xlu0 %4841
        %4843 = vrot.lane.b32.xlu0 %v1610, 32
        %v4844 = vpop.permute.xlu0 %4843
        %4845 = vrot.lane.b32.xlu0 %v1613, 32
        %v4846 = vpop.permute.xlu0 %4845
        %4847 = vrot.lane.b32.xlu0 %v1616, 32
        %v4848 = vpop.permute.xlu0 %4847
        %4849 = vrot.lane.b32.xlu0 %v1619, 32
        %v4850 = vpop.permute.xlu0 %4849
        %4851 = vrot.lane.b32.xlu0 %v1622, 32
        %v4852 = vpop.permute.xlu0 %4851
        %4853 = vrot.lane.b32.xlu0 %v1625, 32
        %v4854 = vpop.permute.xlu0 %4853
        %4855 = vrot.lane.b32.xlu0 %v1628, 32
        %v4856 = vpop.permute.xlu0 %4855
        %4857 = vrot.lane.b32.xlu0 %v1631, 32
        %v4858 = vpop.permute.xlu0 %4857
        %4859 = vrot.lane.b32.xlu0 %v1634, 32
        %v4860 = vpop.permute.xlu0 %4859
        %4861 = vrot.lane.b32.xlu0 %v1637, 32
        %v4862 = vpop.permute.xlu0 %4861
        %4863 = vrot.lane.b32.xlu0 %v1640, 32
        %v4864 = vpop.permute.xlu0 %4863
        %4865 = vrot.lane.b32.xlu0 %v1643, 32
        %v4866 = vpop.permute.xlu0 %4865
        %v4868 = vsel %vm497, %v4804, 0
        %v4871 = vsel %vm497, %v4806, 0
        %v4874 = vsel %vm497, %v4808, 0
        %v4877 = vsel %vm497, %v4810, 0
        %v4880 = vsel %vm497, %v4812, 0
        %v4883 = vsel %vm497, %v4814, 0
        %v4886 = vsel %vm497, %v4816, 0
        %v4889 = vsel %vm497, %v4818, 0
        %v4892 = vsel %vm497, %v4820, 0
        %v4895 = vsel %vm497, %v4822, 0
        %v4898 = vsel %vm497, %v4824, 0
        %v4901 = vsel %vm497, %v4826, 0
        %v4904 = vsel %vm497, %v4828, 0
        %v4907 = vsel %vm497, %v4830, 0
        %v4910 = vsel %vm497, %v4832, 0
        %v4913 = vsel %vm497, %v4834, 0
        %v4916 = vsel %vm497, %v4836, 0
        %v4919 = vsel %vm497, %v4838, 0
        %v4922 = vsel %vm497, %v4840, 0
        %v4925 = vsel %vm497, %v4842, 0
        %v4928 = vsel %vm497, %v4844, 0
        %v4931 = vsel %vm497, %v4846, 0
        %v4934 = vsel %vm497, %v4848, 0
        %v4937 = vsel %vm497, %v4850, 0
        %v4940 = vsel %vm497, %v4852, 0
        %v4943 = vsel %vm497, %v4854, 0
        %v4946 = vsel %vm497, %v4856, 0
        %v4949 = vsel %vm497, %v4858, 0
        %v4952 = vsel %vm497, %v4860, 0
        %v4955 = vsel %vm497, %v4862, 0
        %v4958 = vsel %vm497, %v4864, 0
        %v4961 = vsel %vm497, %v4866, 0
        %4963 = vmatprep.subr.bf16.mxu0 0
        %4964 = vmatpush1.bf16.xpose.msra.mxu0 %v4937
        %4965 = vmatprep.subr.bf16.mxu0 0
        %4966 = vmatpush1.bf16.xpose.msra.mxu0 %v4934
        %4967 = vmatprep.subr.bf16.mxu0 0
        %4968 = vmatpush1.bf16.xpose.msra.mxu0 %v4931
        %4969 = vmatprep.subr.bf16.mxu0 0
        %4970 = vmatpush1.bf16.xpose.msra.mxu0 %v4928
        %4971 = vmatprep.subr.bf16.mxu0 0
        %4972 = vmatpush1.bf16.xpose.msra.mxu0 %v4925
        %4973 = vmatprep.subr.bf16.mxu0 0
        %4974 = vmatpush1.bf16.xpose.msra.mxu0 %v4922
        %4975 = vmatprep.subr.bf16.mxu0 0
        %4976 = vmatpush1.bf16.xpose.msra.mxu0 %v4919
        %4977 = vmatprep.subr.bf16.mxu0 0
        %4978 = vmatpush1.bf16.xpose.msra.mxu0 %v4916
        %4979 = vmatprep.subr.bf16.mxu0 0
        %4980 = vmatpush2.bf16.xpose.msra.mxu0 %v4961
        %4981 = vmatprep.subr.bf16.mxu0 0
        %4982 = vmatpush2.bf16.xpose.msra.mxu0 %v4958
        %4983 = vmatprep.subr.bf16.mxu0 0
        %4984 = vmatpush2.bf16.xpose.msra.mxu0 %v4955
        %4985 = vmatprep.subr.bf16.mxu0 0
        %4986 = vmatpush2.bf16.xpose.msra.mxu0 %v4952
        %4987 = vmatprep.subr.bf16.mxu0 0
        %4988 = vmatpush2.bf16.xpose.msra.mxu0 %v4949
        %4989 = vmatprep.subr.bf16.mxu0 0
        %4990 = vmatpush2.bf16.xpose.msra.mxu0 %v4946
        %4991 = vmatprep.subr.bf16.mxu0 0
        %4992 = vmatpush2.bf16.xpose.msra.mxu0 %v4943
        %4993 = vmatprep.subr.bf16.mxu0 0
        %4994 = vmatpush2.bf16.xpose.msra.mxu0 %v4940
        %4995 = vmatprep.mubr.bf16.mxu0 0
        %4996 = vmatmul.mubr.bf16.gmra.mxu0 %v4868
        %v4997 = vpop.f32.mrf.mxu0
        %v4998 = vadd.f32 0.0, %v4997
        %v4999 = vpop.f32.mrf.mxu0
        %v5000 = vadd.f32 0.0, %v4999
        %v5001 = vpop.f32.mrf.mxu0
        %v5002 = vadd.f32 0.0, %v5001
        %v5003 = vpop.f32.mrf.mxu0
        %v5004 = vadd.f32 0.0, %v5003
        %5005 = vmatprep.mubr.bf16.mxu0 0
        %5006 = vmatmul.mubr.bf16.gmra.mxu0 %v4871
        %v5007 = vpop.f32.mrf.mxu0
        %v5008 = vadd.f32 0.0, %v5007
        %v5009 = vpop.f32.mrf.mxu0
        %v5010 = vadd.f32 0.0, %v5009
        %v5011 = vpop.f32.mrf.mxu0
        %v5012 = vadd.f32 0.0, %v5011
        %v5013 = vpop.f32.mrf.mxu0
        %v5014 = vadd.f32 0.0, %v5013
        %5015 = vmatprep.mubr.bf16.mxu0 0
        %5016 = vmatmul.mubr.bf16.gmra.mxu0 %v4874
        %v5017 = vpop.f32.mrf.mxu0
        %v5018 = vadd.f32 0.0, %v5017
        %v5019 = vpop.f32.mrf.mxu0
        %v5020 = vadd.f32 0.0, %v5019
        %v5021 = vpop.f32.mrf.mxu0
        %v5022 = vadd.f32 0.0, %v5021
        %v5023 = vpop.f32.mrf.mxu0
        %v5024 = vadd.f32 0.0, %v5023
        %5025 = vmatprep.mubr.bf16.mxu0 0
        %5026 = vmatmul.mubr.bf16.gmra.mxu0 %v4877
        %v5027 = vpop.f32.mrf.mxu0
        %v5028 = vadd.f32 0.0, %v5027
        %v5029 = vpop.f32.mrf.mxu0
        %v5030 = vadd.f32 0.0, %v5029
        %v5031 = vpop.f32.mrf.mxu0
        %v5032 = vadd.f32 0.0, %v5031
        %v5033 = vpop.f32.mrf.mxu0
        %v5034 = vadd.f32 0.0, %v5033
        %5035 = vmatprep.mubr.bf16.mxu0 0
        %5036 = vmatmul.mubr.bf16.gmra.mxu0 %v4880
        %v5037 = vpop.f32.mrf.mxu0
        %v5038 = vadd.f32 0.0, %v5037
        %v5039 = vpop.f32.mrf.mxu0
        %v5040 = vadd.f32 0.0, %v5039
        %v5041 = vpop.f32.mrf.mxu0
        %v5042 = vadd.f32 0.0, %v5041
        %v5043 = vpop.f32.mrf.mxu0
        %v5044 = vadd.f32 0.0, %v5043
        %5045 = vmatprep.mubr.bf16.mxu0 0
        %5046 = vmatmul.mubr.bf16.gmra.mxu0 %v4883
        %v5047 = vpop.f32.mrf.mxu0
        %v5048 = vadd.f32 0.0, %v5047
        %v5049 = vpop.f32.mrf.mxu0
        %v5050 = vadd.f32 0.0, %v5049
        %v5051 = vpop.f32.mrf.mxu0
        %v5052 = vadd.f32 0.0, %v5051
        %v5053 = vpop.f32.mrf.mxu0
        %v5054 = vadd.f32 0.0, %v5053
        %5055 = vmatprep.mubr.bf16.mxu0 0
        %5056 = vmatmul.mubr.bf16.gmra.mxu0 %v4886
        %v5057 = vpop.f32.mrf.mxu0
        %v5058 = vadd.f32 0.0, %v5057
        %v5059 = vpop.f32.mrf.mxu0
        %v5060 = vadd.f32 0.0, %v5059
        %v5061 = vpop.f32.mrf.mxu0
        %v5062 = vadd.f32 0.0, %v5061
        %v5063 = vpop.f32.mrf.mxu0
        %v5064 = vadd.f32 0.0, %v5063
        %5065 = vmatprep.mubr.bf16.mxu0 0
        %5066 = vmatmul.mubr.bf16.gmra.mxu0 %v4889
        %v5067 = vpop.f32.mrf.mxu0
        %v5068 = vadd.f32 0.0, %v5067
        %v5069 = vpop.f32.mrf.mxu0
        %v5070 = vadd.f32 0.0, %v5069
        %v5071 = vpop.f32.mrf.mxu0
        %v5072 = vadd.f32 0.0, %v5071
        %v5073 = vpop.f32.mrf.mxu0
        %v5074 = vadd.f32 0.0, %v5073
        %5075 = vmatprep.mubr.bf16.mxu0 0
        %5076 = vmatmul.mubr.bf16.gmra.mxu0 %v4892
        %v5077 = vpop.f32.mrf.mxu0
        %v5078 = vadd.f32 0.0, %v5077
        %v5079 = vpop.f32.mrf.mxu0
        %v5080 = vadd.f32 0.0, %v5079
        %v5081 = vpop.f32.mrf.mxu0
        %v5082 = vadd.f32 0.0, %v5081
        %v5083 = vpop.f32.mrf.mxu0
        %v5084 = vadd.f32 0.0, %v5083
        %5085 = vmatprep.mubr.bf16.mxu0 0
        %5086 = vmatmul.mubr.bf16.gmra.mxu0 %v4895
        %v5087 = vpop.f32.mrf.mxu0
        %v5088 = vadd.f32 0.0, %v5087
        %v5089 = vpop.f32.mrf.mxu0
        %v5090 = vadd.f32 0.0, %v5089
        %v5091 = vpop.f32.mrf.mxu0
        %v5092 = vadd.f32 0.0, %v5091
        %v5093 = vpop.f32.mrf.mxu0
        %v5094 = vadd.f32 0.0, %v5093
        %5095 = vmatprep.mubr.bf16.mxu0 0
        %5096 = vmatmul.mubr.bf16.gmra.mxu0 %v4898
        %v5097 = vpop.f32.mrf.mxu0
        %v5098 = vadd.f32 0.0, %v5097
        %v5099 = vpop.f32.mrf.mxu0
        %v5100 = vadd.f32 0.0, %v5099
        %v5101 = vpop.f32.mrf.mxu0
        %v5102 = vadd.f32 0.0, %v5101
        %v5103 = vpop.f32.mrf.mxu0
        %v5104 = vadd.f32 0.0, %v5103
        %5105 = vmatprep.mubr.bf16.mxu0 0
        %5106 = vmatmul.mubr.bf16.gmra.mxu0 %v4901
        %v5107 = vpop.f32.mrf.mxu0
        %v5108 = vadd.f32 0.0, %v5107
        %v5109 = vpop.f32.mrf.mxu0
        %v5110 = vadd.f32 0.0, %v5109
        %v5111 = vpop.f32.mrf.mxu0
        %v5112 = vadd.f32 0.0, %v5111
        %v5113 = vpop.f32.mrf.mxu0
        %v5114 = vadd.f32 0.0, %v5113
        %5115 = vmatprep.mubr.bf16.mxu0 0
        %5116 = vmatmul.mubr.bf16.gmra.mxu0 %v4904
        %v5117 = vpop.f32.mrf.mxu0
        %v5118 = vadd.f32 0.0, %v5117
        %v5119 = vpop.f32.mrf.mxu0
        %v5120 = vadd.f32 0.0, %v5119
        %v5121 = vpop.f32.mrf.mxu0
        %v5122 = vadd.f32 0.0, %v5121
        %v5123 = vpop.f32.mrf.mxu0
        %v5124 = vadd.f32 0.0, %v5123
        %5125 = vmatprep.mubr.bf16.mxu0 0
        %5126 = vmatmul.mubr.bf16.gmra.mxu0 %v4907
        %v5127 = vpop.f32.mrf.mxu0
        %v5128 = vadd.f32 0.0, %v5127
        %v5129 = vpop.f32.mrf.mxu0
        %v5130 = vadd.f32 0.0, %v5129
        %v5131 = vpop.f32.mrf.mxu0
        %v5132 = vadd.f32 0.0, %v5131
        %v5133 = vpop.f32.mrf.mxu0
        %v5134 = vadd.f32 0.0, %v5133
        %5135 = vmatprep.mubr.bf16.mxu0 0
        %5136 = vmatmul.mubr.bf16.gmra.mxu0 %v4910
        %v5137 = vpop.f32.mrf.mxu0
        %v5138 = vadd.f32 0.0, %v5137
        %v5139 = vpop.f32.mrf.mxu0
        %v5140 = vadd.f32 0.0, %v5139
        %v5141 = vpop.f32.mrf.mxu0
        %v5142 = vadd.f32 0.0, %v5141
        %v5143 = vpop.f32.mrf.mxu0
        %v5144 = vadd.f32 0.0, %v5143
        %5145 = vmatprep.mubr.bf16.mxu0 0
        %5146 = vmatmul.mubr.bf16.gmra.mxu0 %v4913
        %v5147 = vpop.f32.mrf.mxu0
        %v5148 = vadd.f32 0.0, %v5147
        %v5149 = vpop.f32.mrf.mxu0
        %v5150 = vadd.f32 0.0, %v5149
        %v5151 = vpop.f32.mrf.mxu0
        %v5152 = vadd.f32 0.0, %v5151
        %v5153 = vpop.f32.mrf.mxu0
        %v5154 = vadd.f32 0.0, %v5153
        %5155 = vdwg.mxu0
        %v5156 = vmax.f32 %v4998, %v5000
        %5157 = vmax.xlane.f32.xlu0 %v5156
        %v5158 = vpop.xlane.xlu0 %5157
        %v5159 = vmax.f32 %v5002, %v5004
        %5160 = vmax.xlane.f32.xlu0 %v5159
        %v5161 = vpop.xlane.xlu0 %5160
        %v5162 = vmax.f32 %v5008, %v5010
        %5163 = vmax.xlane.f32.xlu0 %v5162
        %v5164 = vpop.xlane.xlu0 %5163
        %v5165 = vmax.f32 %v5012, %v5014
        %5166 = vmax.xlane.f32.xlu0 %v5165
        %v5167 = vpop.xlane.xlu0 %5166
        %v5168 = vmax.f32 %v5018, %v5020
        %5169 = vmax.xlane.f32.xlu0 %v5168
        %v5170 = vpop.xlane.xlu0 %5169
        %v5171 = vmax.f32 %v5022, %v5024
        %5172 = vmax.xlane.f32.xlu0 %v5171
        %v5173 = vpop.xlane.xlu0 %5172
        %v5174 = vmax.f32 %v5028, %v5030
        %5175 = vmax.xlane.f32.xlu0 %v5174
        %v5176 = vpop.xlane.xlu0 %5175
        %v5177 = vmax.f32 %v5032, %v5034
        %5178 = vmax.xlane.f32.xlu0 %v5177
        %v5179 = vpop.xlane.xlu0 %5178
        %v5180 = vmax.f32 %v5038, %v5040
        %5181 = vmax.xlane.f32.xlu0 %v5180
        %v5182 = vpop.xlane.xlu0 %5181
        %v5183 = vmax.f32 %v5042, %v5044
        %5184 = vmax.xlane.f32.xlu0 %v5183
        %v5185 = vpop.xlane.xlu0 %5184
        %v5186 = vmax.f32 %v5048, %v5050
        %5187 = vmax.xlane.f32.xlu0 %v5186
        %v5188 = vpop.xlane.xlu0 %5187
        %v5189 = vmax.f32 %v5052, %v5054
        %5190 = vmax.xlane.f32.xlu0 %v5189
        %v5191 = vpop.xlane.xlu0 %5190
        %v5192 = vmax.f32 %v5058, %v5060
        %5193 = vmax.xlane.f32.xlu0 %v5192
        %v5194 = vpop.xlane.xlu0 %5193
        %v5195 = vmax.f32 %v5062, %v5064
        %5196 = vmax.xlane.f32.xlu0 %v5195
        %v5197 = vpop.xlane.xlu0 %5196
        %v5198 = vmax.f32 %v5068, %v5070
        %5199 = vmax.xlane.f32.xlu0 %v5198
        %v5200 = vpop.xlane.xlu0 %5199
        %v5201 = vmax.f32 %v5072, %v5074
        %5202 = vmax.xlane.f32.xlu0 %v5201
        %v5203 = vpop.xlane.xlu0 %5202
        %v5204 = vmax.f32 %v5078, %v5080
        %5205 = vmax.xlane.f32.xlu0 %v5204
        %v5206 = vpop.xlane.xlu0 %5205
        %v5207 = vmax.f32 %v5082, %v5084
        %5208 = vmax.xlane.f32.xlu0 %v5207
        %v5209 = vpop.xlane.xlu0 %5208
        %v5210 = vmax.f32 %v5088, %v5090
        %5211 = vmax.xlane.f32.xlu0 %v5210
        %v5212 = vpop.xlane.xlu0 %5211
        %v5213 = vmax.f32 %v5092, %v5094
        %5214 = vmax.xlane.f32.xlu0 %v5213
        %v5215 = vpop.xlane.xlu0 %5214
        %v5216 = vmax.f32 %v5098, %v5100
        %5217 = vmax.xlane.f32.xlu0 %v5216
        %v5218 = vpop.xlane.xlu0 %5217
        %v5219 = vmax.f32 %v5102, %v5104
        %5220 = vmax.xlane.f32.xlu0 %v5219
        %v5221 = vpop.xlane.xlu0 %5220
        %v5222 = vmax.f32 %v5108, %v5110
        %5223 = vmax.xlane.f32.xlu0 %v5222
        %v5224 = vpop.xlane.xlu0 %5223
        %v5225 = vmax.f32 %v5112, %v5114
        %5226 = vmax.xlane.f32.xlu0 %v5225
        %v5227 = vpop.xlane.xlu0 %5226
        %v5228 = vmax.f32 %v5118, %v5120
        %5229 = vmax.xlane.f32.xlu0 %v5228
        %v5230 = vpop.xlane.xlu0 %5229
        %v5231 = vmax.f32 %v5122, %v5124
        %5232 = vmax.xlane.f32.xlu0 %v5231
        %v5233 = vpop.xlane.xlu0 %5232
        %v5234 = vmax.f32 %v5128, %v5130
        %5235 = vmax.xlane.f32.xlu0 %v5234
        %v5236 = vpop.xlane.xlu0 %5235
        %v5237 = vmax.f32 %v5132, %v5134
        %5238 = vmax.xlane.f32.xlu0 %v5237
        %v5239 = vpop.xlane.xlu0 %5238
        %v5240 = vmax.f32 %v5138, %v5140
        %5241 = vmax.xlane.f32.xlu0 %v5240
        %v5242 = vpop.xlane.xlu0 %5241
        %v5243 = vmax.f32 %v5142, %v5144
        %5244 = vmax.xlane.f32.xlu0 %v5243
        %v5245 = vpop.xlane.xlu0 %5244
        %v5246 = vmax.f32 %v5148, %v5150
        %5247 = vmax.xlane.f32.xlu0 %v5246
        %v5248 = vpop.xlane.xlu0 %5247
        %v5249 = vmax.f32 %v5152, %v5154
        %5250 = vmax.xlane.f32.xlu0 %v5249
        %v5251 = vpop.xlane.xlu0 %5250
        %v5252 = vsub.f32 %v4998, %v5158
        %v5253 = vsub.f32 %v5000, %v5158
        %v5254 = vsub.f32 %v5002, %v5161
        %v5255 = vsub.f32 %v5004, %v5161
        %v5256 = vsub.f32 %v5008, %v5164
        %v5257 = vsub.f32 %v5010, %v5164
        %v5258 = vsub.f32 %v5012, %v5167
        %v5259 = vsub.f32 %v5014, %v5167
        %v5260 = vsub.f32 %v5018, %v5170
        %v5261 = vsub.f32 %v5020, %v5170
        %v5262 = vsub.f32 %v5022, %v5173
        %v5263 = vsub.f32 %v5024, %v5173
        %v5264 = vsub.f32 %v5028, %v5176
        %v5265 = vsub.f32 %v5030, %v5176
        %v5266 = vsub.f32 %v5032, %v5179
        %v5267 = vsub.f32 %v5034, %v5179
        %v5268 = vsub.f32 %v5038, %v5182
        %v5269 = vsub.f32 %v5040, %v5182
        %v5270 = vsub.f32 %v5042, %v5185
        %v5271 = vsub.f32 %v5044, %v5185
        %v5272 = vsub.f32 %v5048, %v5188
        %v5273 = vsub.f32 %v5050, %v5188
        %v5274 = vsub.f32 %v5052, %v5191
        %v5275 = vsub.f32 %v5054, %v5191
        %v5276 = vsub.f32 %v5058, %v5194
        %v5277 = vsub.f32 %v5060, %v5194
        %v5278 = vsub.f32 %v5062, %v5197
        %v5279 = vsub.f32 %v5064, %v5197
        %v5280 = vsub.f32 %v5068, %v5200
        %v5281 = vsub.f32 %v5070, %v5200
        %v5282 = vsub.f32 %v5072, %v5203
        %v5283 = vsub.f32 %v5074, %v5203
        %v5284 = vsub.f32 %v5078, %v5206
        %v5285 = vsub.f32 %v5080, %v5206
        %v5286 = vsub.f32 %v5082, %v5209
        %v5287 = vsub.f32 %v5084, %v5209
        %v5288 = vsub.f32 %v5088, %v5212
        %v5289 = vsub.f32 %v5090, %v5212
        %v5290 = vsub.f32 %v5092, %v5215
        %v5291 = vsub.f32 %v5094, %v5215
        %v5292 = vsub.f32 %v5098, %v5218
        %v5293 = vsub.f32 %v5100, %v5218
        %v5294 = vsub.f32 %v5102, %v5221
        %v5295 = vsub.f32 %v5104, %v5221
        %v5296 = vsub.f32 %v5108, %v5224
        %v5297 = vsub.f32 %v5110, %v5224
        %v5298 = vsub.f32 %v5112, %v5227
        %v5299 = vsub.f32 %v5114, %v5227
        %v5300 = vsub.f32 %v5118, %v5230
        %v5301 = vsub.f32 %v5120, %v5230
        %v5302 = vsub.f32 %v5122, %v5233
        %v5303 = vsub.f32 %v5124, %v5233
        %v5304 = vsub.f32 %v5128, %v5236
        %v5305 = vsub.f32 %v5130, %v5236
        %v5306 = vsub.f32 %v5132, %v5239
        %v5307 = vsub.f32 %v5134, %v5239
        %v5308 = vsub.f32 %v5138, %v5242
        %v5309 = vsub.f32 %v5140, %v5242
        %v5310 = vsub.f32 %v5142, %v5245
        %v5311 = vsub.f32 %v5144, %v5245
        %v5312 = vsub.f32 %v5148, %v5248
        %v5313 = vsub.f32 %v5150, %v5248
        %v5314 = vsub.f32 %v5152, %v5251
        %v5315 = vsub.f32 %v5154, %v5251
        %v5316 = vmul.f32 %v5252, 1.442695
        %v5317 = vpow.pop %v5316
        %v5318 = vmul.f32 %v5253, 1.442695
        %v5319 = vpow.pop %v5318
        %v5320 = vmul.f32 %v5254, 1.442695
        %v5321 = vpow.pop %v5320
        %v5322 = vmul.f32 %v5255, 1.442695
        %v5323 = vpow.pop %v5322
        %v5324 = vmul.f32 %v5256, 1.442695
        %v5325 = vpow.pop %v5324
        %v5326 = vmul.f32 %v5257, 1.442695
        %v5327 = vpow.pop %v5326
        %v5328 = vmul.f32 %v5258, 1.442695
        %v5329 = vpow.pop %v5328
        %v5330 = vmul.f32 %v5259, 1.442695
        %v5331 = vpow.pop %v5330
        %v5332 = vmul.f32 %v5260, 1.442695
        %v5333 = vpow.pop %v5332
        %v5334 = vmul.f32 %v5261, 1.442695
        %v5335 = vpow.pop %v5334
        %v5336 = vmul.f32 %v5262, 1.442695
        %v5337 = vpow.pop %v5336
        %v5338 = vmul.f32 %v5263, 1.442695
        %v5339 = vpow.pop %v5338
        %v5340 = vmul.f32 %v5264, 1.442695
        %v5341 = vpow.pop %v5340
        %v5342 = vmul.f32 %v5265, 1.442695
        %v5343 = vpow.pop %v5342
        %v5344 = vmul.f32 %v5266, 1.442695
        %v5345 = vpow.pop %v5344
        %v5346 = vmul.f32 %v5267, 1.442695
        %v5347 = vpow.pop %v5346
        %v5348 = vmul.f32 %v5268, 1.442695
        %v5349 = vpow.pop %v5348
        %v5350 = vmul.f32 %v5269, 1.442695
        %v5351 = vpow.pop %v5350
        %v5352 = vmul.f32 %v5270, 1.442695
        %v5353 = vpow.pop %v5352
        %v5354 = vmul.f32 %v5271, 1.442695
        %v5355 = vpow.pop %v5354
        %v5356 = vmul.f32 %v5272, 1.442695
        %v5357 = vpow.pop %v5356
        %v5358 = vmul.f32 %v5273, 1.442695
        %v5359 = vpow.pop %v5358
        %v5360 = vmul.f32 %v5274, 1.442695
        %v5361 = vpow.pop %v5360
        %v5362 = vmul.f32 %v5275, 1.442695
        %v5363 = vpow.pop %v5362
        %v5364 = vmul.f32 %v5276, 1.442695
        %v5365 = vpow.pop %v5364
        %v5366 = vmul.f32 %v5277, 1.442695
        %v5367 = vpow.pop %v5366
        %v5368 = vmul.f32 %v5278, 1.442695
        %v5369 = vpow.pop %v5368
        %v5370 = vmul.f32 %v5279, 1.442695
        %v5371 = vpow.pop %v5370
        %v5372 = vmul.f32 %v5280, 1.442695
        %v5373 = vpow.pop %v5372
        %v5374 = vmul.f32 %v5281, 1.442695
        %v5375 = vpow.pop %v5374
        %v5376 = vmul.f32 %v5282, 1.442695
        %v5377 = vpow.pop %v5376
        %v5378 = vmul.f32 %v5283, 1.442695
        %v5379 = vpow.pop %v5378
        %v5380 = vmul.f32 %v5284, 1.442695
        %v5381 = vpow.pop %v5380
        %v5382 = vmul.f32 %v5285, 1.442695
        %v5383 = vpow.pop %v5382
        %v5384 = vmul.f32 %v5286, 1.442695
        %v5385 = vpow.pop %v5384
        %v5386 = vmul.f32 %v5287, 1.442695
        %v5387 = vpow.pop %v5386
        %v5388 = vmul.f32 %v5288, 1.442695
        %v5389 = vpow.pop %v5388
        %v5390 = vmul.f32 %v5289, 1.442695
        %v5391 = vpow.pop %v5390
        %v5392 = vmul.f32 %v5290, 1.442695
        %v5393 = vpow.pop %v5392
        %v5394 = vmul.f32 %v5291, 1.442695
        %v5395 = vpow.pop %v5394
        %v5396 = vmul.f32 %v5292, 1.442695
        %v5397 = vpow.pop %v5396
        %v5398 = vmul.f32 %v5293, 1.442695
        %v5399 = vpow.pop %v5398
        %v5400 = vmul.f32 %v5294, 1.442695
        %v5401 = vpow.pop %v5400
        %v5402 = vmul.f32 %v5295, 1.442695
        %v5403 = vpow.pop %v5402
        %v5404 = vmul.f32 %v5296, 1.442695
        %v5405 = vpow.pop %v5404
        %v5406 = vmul.f32 %v5297, 1.442695
        %v5407 = vpow.pop %v5406
        %v5408 = vmul.f32 %v5298, 1.442695
        %v5409 = vpow.pop %v5408
        %v5410 = vmul.f32 %v5299, 1.442695
        %v5411 = vpow.pop %v5410
        %v5412 = vmul.f32 %v5300, 1.442695
        %v5413 = vpow.pop %v5412
        %v5414 = vmul.f32 %v5301, 1.442695
        %v5415 = vpow.pop %v5414
        %v5416 = vmul.f32 %v5302, 1.442695
        %v5417 = vpow.pop %v5416
        %v5418 = vmul.f32 %v5303, 1.442695
        %v5419 = vpow.pop %v5418
        %v5420 = vmul.f32 %v5304, 1.442695
        %v5421 = vpow.pop %v5420
        %v5422 = vmul.f32 %v5305, 1.442695
        %v5423 = vpow.pop %v5422
        %v5424 = vmul.f32 %v5306, 1.442695
        %v5425 = vpow.pop %v5424
        %v5426 = vmul.f32 %v5307, 1.442695
        %v5427 = vpow.pop %v5426
        %v5428 = vmul.f32 %v5308, 1.442695
        %v5429 = vpow.pop %v5428
        %v5430 = vmul.f32 %v5309, 1.442695
        %v5431 = vpow.pop %v5430
        %v5432 = vmul.f32 %v5310, 1.442695
        %v5433 = vpow.pop %v5432
        %v5434 = vmul.f32 %v5311, 1.442695
        %v5435 = vpow.pop %v5434
        %v5436 = vmul.f32 %v5312, 1.442695
        %v5437 = vpow.pop %v5436
        %v5438 = vmul.f32 %v5313, 1.442695
        %v5439 = vpow.pop %v5438
        %v5440 = vmul.f32 %v5314, 1.442695
        %v5441 = vpow.pop %v5440
        %v5442 = vmul.f32 %v5315, 1.442695
        %v5443 = vpow.pop %v5442
        %v5444 = vadd.f32 %v5317, %v5319
        %5445 = vadd.xlane.f32.xlu0 %v5444
        %v5446 = vpop.xlane.xlu0 %5445
        %v5447 = vadd.f32 %v5321, %v5323
        %5448 = vadd.xlane.f32.xlu0 %v5447
        %v5449 = vpop.xlane.xlu0 %5448
        %v5450 = vadd.f32 %v5325, %v5327
        %5451 = vadd.xlane.f32.xlu0 %v5450
        %v5452 = vpop.xlane.xlu0 %5451
        %v5453 = vadd.f32 %v5329, %v5331
        %5454 = vadd.xlane.f32.xlu0 %v5453
        %v5455 = vpop.xlane.xlu0 %5454
        %v5456 = vadd.f32 %v5333, %v5335
        %5457 = vadd.xlane.f32.xlu0 %v5456
        %v5458 = vpop.xlane.xlu0 %5457
        %v5459 = vadd.f32 %v5337, %v5339
        %5460 = vadd.xlane.f32.xlu0 %v5459
        %v5461 = vpop.xlane.xlu0 %5460
        %v5462 = vadd.f32 %v5341, %v5343
        %5463 = vadd.xlane.f32.xlu0 %v5462
        %v5464 = vpop.xlane.xlu0 %5463
        %v5465 = vadd.f32 %v5345, %v5347
        %5466 = vadd.xlane.f32.xlu0 %v5465
        %v5467 = vpop.xlane.xlu0 %5466
        %v5468 = vadd.f32 %v5349, %v5351
        %5469 = vadd.xlane.f32.xlu0 %v5468
        %v5470 = vpop.xlane.xlu0 %5469
        %v5471 = vadd.f32 %v5353, %v5355
        %5472 = vadd.xlane.f32.xlu0 %v5471
        %v5473 = vpop.xlane.xlu0 %5472
        %v5474 = vadd.f32 %v5357, %v5359
        %5475 = vadd.xlane.f32.xlu0 %v5474
        %v5476 = vpop.xlane.xlu0 %5475
        %v5477 = vadd.f32 %v5361, %v5363
        %5478 = vadd.xlane.f32.xlu0 %v5477
        %v5479 = vpop.xlane.xlu0 %5478
        %v5480 = vadd.f32 %v5365, %v5367
        %5481 = vadd.xlane.f32.xlu0 %v5480
        %v5482 = vpop.xlane.xlu0 %5481
        %v5483 = vadd.f32 %v5369, %v5371
        %5484 = vadd.xlane.f32.xlu0 %v5483
        %v5485 = vpop.xlane.xlu0 %5484
        %v5486 = vadd.f32 %v5373, %v5375
        %5487 = vadd.xlane.f32.xlu0 %v5486
        %v5488 = vpop.xlane.xlu0 %5487
        %v5489 = vadd.f32 %v5377, %v5379
        %5490 = vadd.xlane.f32.xlu0 %v5489
        %v5491 = vpop.xlane.xlu0 %5490
        %v5492 = vadd.f32 %v5381, %v5383
        %5493 = vadd.xlane.f32.xlu0 %v5492
        %v5494 = vpop.xlane.xlu0 %5493
        %v5495 = vadd.f32 %v5385, %v5387
        %5496 = vadd.xlane.f32.xlu0 %v5495
        %v5497 = vpop.xlane.xlu0 %5496
        %v5498 = vadd.f32 %v5389, %v5391
        %5499 = vadd.xlane.f32.xlu0 %v5498
        %v5500 = vpop.xlane.xlu0 %5499
        %v5501 = vadd.f32 %v5393, %v5395
        %5502 = vadd.xlane.f32.xlu0 %v5501
        %v5503 = vpop.xlane.xlu0 %5502
        %v5504 = vadd.f32 %v5397, %v5399
        %5505 = vadd.xlane.f32.xlu0 %v5504
        %v5506 = vpop.xlane.xlu0 %5505
        %v5507 = vadd.f32 %v5401, %v5403
        %5508 = vadd.xlane.f32.xlu0 %v5507
        %v5509 = vpop.xlane.xlu0 %5508
        %v5510 = vadd.f32 %v5405, %v5407
        %5511 = vadd.xlane.f32.xlu0 %v5510
        %v5512 = vpop.xlane.xlu0 %5511
        %v5513 = vadd.f32 %v5409, %v5411
        %5514 = vadd.xlane.f32.xlu0 %v5513
        %v5515 = vpop.xlane.xlu0 %5514
        %v5516 = vadd.f32 %v5413, %v5415
        %5517 = vadd.xlane.f32.xlu0 %v5516
        %v5518 = vpop.xlane.xlu0 %5517
        %v5519 = vadd.f32 %v5417, %v5419
        %5520 = vadd.xlane.f32.xlu0 %v5519
        %v5521 = vpop.xlane.xlu0 %5520
        %v5522 = vadd.f32 %v5421, %v5423
        %5523 = vadd.xlane.f32.xlu0 %v5522
        %v5524 = vpop.xlane.xlu0 %5523
        %v5525 = vadd.f32 %v5425, %v5427
        %5526 = vadd.xlane.f32.xlu0 %v5525
        %v5527 = vpop.xlane.xlu0 %5526
        %v5528 = vadd.f32 %v5429, %v5431
        %5529 = vadd.xlane.f32.xlu0 %v5528
        %v5530 = vpop.xlane.xlu0 %5529
        %v5531 = vadd.f32 %v5433, %v5435
        %5532 = vadd.xlane.f32.xlu0 %v5531
        %v5533 = vpop.xlane.xlu0 %5532
        %v5534 = vadd.f32 %v5437, %v5439
        %5535 = vadd.xlane.f32.xlu0 %v5534
        %v5536 = vpop.xlane.xlu0 %5535
        %v5537 = vadd.f32 %v5441, %v5443
        %5538 = vadd.xlane.f32.xlu0 %v5537
        %v5539 = vpop.xlane.xlu0 %5538
        %v5540 = vrcp.pop %v5446
        %v5541 = vrcp.pop %v5449
        %v5542 = vrcp.pop %v5452
        %v5543 = vrcp.pop %v5455
        %v5544 = vrcp.pop %v5458
        %v5545 = vrcp.pop %v5461
        %v5546 = vrcp.pop %v5464
        %v5547 = vrcp.pop %v5467
        %v5548 = vrcp.pop %v5470
        %v5549 = vrcp.pop %v5473
        %v5550 = vrcp.pop %v5476
        %v5551 = vrcp.pop %v5479
        %v5552 = vrcp.pop %v5482
        %v5553 = vrcp.pop %v5485
        %v5554 = vrcp.pop %v5488
        %v5555 = vrcp.pop %v5491
        %v5556 = vrcp.pop %v5494
        %v5557 = vrcp.pop %v5497
        %v5558 = vrcp.pop %v5500
        %v5559 = vrcp.pop %v5503
        %v5560 = vrcp.pop %v5506
        %v5561 = vrcp.pop %v5509
        %v5562 = vrcp.pop %v5512
        %v5563 = vrcp.pop %v5515
        %v5564 = vrcp.pop %v5518
        %v5565 = vrcp.pop %v5521
        %v5566 = vrcp.pop %v5524
        %v5567 = vrcp.pop %v5527
        %v5568 = vrcp.pop %v5530
        %v5569 = vrcp.pop %v5533
        %v5570 = vrcp.pop %v5536
        %v5571 = vrcp.pop %v5539
        %v5572 = vmul.f32 %v5317, %v5540
        %v5573 = vmul.f32 %v5319, %v5540
        %v5574 = vmul.f32 %v5321, %v5541
        %v5575 = vmul.f32 %v5323, %v5541
        %v5576 = vmul.f32 %v5325, %v5542
        %v5577 = vmul.f32 %v5327, %v5542
        %v5578 = vmul.f32 %v5329, %v5543
        %v5579 = vmul.f32 %v5331, %v5543
        %v5580 = vmul.f32 %v5333, %v5544
        %v5581 = vmul.f32 %v5335, %v5544
        %v5582 = vmul.f32 %v5337, %v5545
        %v5583 = vmul.f32 %v5339, %v5545
        %v5584 = vmul.f32 %v5341, %v5546
        %v5585 = vmul.f32 %v5343, %v5546
        %v5586 = vmul.f32 %v5345, %v5547
        %v5587 = vmul.f32 %v5347, %v5547
        %v5588 = vmul.f32 %v5349, %v5548
        %v5589 = vmul.f32 %v5351, %v5548
        %v5590 = vmul.f32 %v5353, %v5549
        %v5591 = vmul.f32 %v5355, %v5549
        %v5592 = vmul.f32 %v5357, %v5550
        %v5593 = vmul.f32 %v5359, %v5550
        %v5594 = vmul.f32 %v5361, %v5551
        %v5595 = vmul.f32 %v5363, %v5551
        %v5596 = vmul.f32 %v5365, %v5552
        %v5597 = vmul.f32 %v5367, %v5552
        %v5598 = vmul.f32 %v5369, %v5553
        %v5599 = vmul.f32 %v5371, %v5553
        %v5600 = vmul.f32 %v5373, %v5554
        %v5601 = vmul.f32 %v5375, %v5554
        %v5602 = vmul.f32 %v5377, %v5555
        %v5603 = vmul.f32 %v5379, %v5555
        %v5604 = vmul.f32 %v5381, %v5556
        %v5605 = vmul.f32 %v5383, %v5556
        %v5606 = vmul.f32 %v5385, %v5557
        %v5607 = vmul.f32 %v5387, %v5557
        %v5608 = vmul.f32 %v5389, %v5558
        %v5609 = vmul.f32 %v5391, %v5558
        %v5610 = vmul.f32 %v5393, %v5559
        %v5611 = vmul.f32 %v5395, %v5559
        %v5612 = vmul.f32 %v5397, %v5560
        %v5613 = vmul.f32 %v5399, %v5560
        %v5614 = vmul.f32 %v5401, %v5561
        %v5615 = vmul.f32 %v5403, %v5561
        %v5616 = vmul.f32 %v5405, %v5562
        %v5617 = vmul.f32 %v5407, %v5562
        %v5618 = vmul.f32 %v5409, %v5563
        %v5619 = vmul.f32 %v5411, %v5563
        %v5620 = vmul.f32 %v5413, %v5564
        %v5621 = vmul.f32 %v5415, %v5564
        %v5622 = vmul.f32 %v5417, %v5565
        %v5623 = vmul.f32 %v5419, %v5565
        %v5624 = vmul.f32 %v5421, %v5566
        %v5625 = vmul.f32 %v5423, %v5566
        %v5626 = vmul.f32 %v5425, %v5567
        %v5627 = vmul.f32 %v5427, %v5567
        %v5628 = vmul.f32 %v5429, %v5568
        %v5629 = vmul.f32 %v5431, %v5568
        %v5630 = vmul.f32 %v5433, %v5569
        %v5631 = vmul.f32 %v5435, %v5569
        %v5632 = vmul.f32 %v5437, %v5570
        %v5633 = vmul.f32 %v5439, %v5570
        %v5634 = vmul.f32 %v5441, %v5571
        %v5635 = vmul.f32 %v5443, %v5571
        %v5636 = vpack.c.bf16 %v5574, %v5572
        %v5637 = vpack.c.bf16 %v5575, %v5573
        %v5638 = vpack.c.bf16 %v5578, %v5576
        %v5639 = vpack.c.bf16 %v5579, %v5577
        %v5640 = vpack.c.bf16 %v5582, %v5580
        %v5641 = vpack.c.bf16 %v5583, %v5581
        %v5642 = vpack.c.bf16 %v5586, %v5584
        %v5643 = vpack.c.bf16 %v5587, %v5585
        %v5644 = vpack.c.bf16 %v5590, %v5588
        %v5645 = vpack.c.bf16 %v5591, %v5589
        %v5646 = vpack.c.bf16 %v5594, %v5592
        %v5647 = vpack.c.bf16 %v5595, %v5593
        %v5648 = vpack.c.bf16 %v5598, %v5596
        %v5649 = vpack.c.bf16 %v5599, %v5597
        %v5650 = vpack.c.bf16 %v5602, %v5600
        %v5651 = vpack.c.bf16 %v5603, %v5601
        %v5652 = vpack.c.bf16 %v5606, %v5604
        %v5653 = vpack.c.bf16 %v5607, %v5605
        %v5654 = vpack.c.bf16 %v5610, %v5608
        %v5655 = vpack.c.bf16 %v5611, %v5609
        %v5656 = vpack.c.bf16 %v5614, %v5612
        %v5657 = vpack.c.bf16 %v5615, %v5613
        %v5658 = vpack.c.bf16 %v5618, %v5616
        %v5659 = vpack.c.bf16 %v5619, %v5617
        %v5660 = vpack.c.bf16 %v5622, %v5620
        %v5661 = vpack.c.bf16 %v5623, %v5621
        %v5662 = vpack.c.bf16 %v5626, %v5624
        %v5663 = vpack.c.bf16 %v5627, %v5625
        %v5664 = vpack.c.bf16 %v5630, %v5628
        %v5665 = vpack.c.bf16 %v5631, %v5629
        %v5666 = vpack.c.bf16 %v5634, %v5632
        %v5667 = vpack.c.bf16 %v5635, %v5633
        %5668 = vrot.lane.b32.xlu0 %v1599, 32
        %v5669 = vpop.permute.xlu0 %5668
        %5670 = vrot.lane.b32.xlu0 %v1602, 32
        %v5671 = vpop.permute.xlu0 %5670
        %5672 = vrot.lane.b32.xlu0 %v1605, 32
        %v5673 = vpop.permute.xlu0 %5672
        %5674 = vrot.lane.b32.xlu0 %v1608, 32
        %v5675 = vpop.permute.xlu0 %5674
        %5676 = vrot.lane.b32.xlu0 %v1611, 32
        %v5677 = vpop.permute.xlu0 %5676
        %5678 = vrot.lane.b32.xlu0 %v1614, 32
        %v5679 = vpop.permute.xlu0 %5678
        %5680 = vrot.lane.b32.xlu0 %v1617, 32
        %v5681 = vpop.permute.xlu0 %5680
        %5682 = vrot.lane.b32.xlu0 %v1620, 32
        %v5683 = vpop.permute.xlu0 %5682
        %5684 = vrot.lane.b32.xlu0 %v1623, 32
        %v5685 = vpop.permute.xlu0 %5684
        %5686 = vrot.lane.b32.xlu0 %v1626, 32
        %v5687 = vpop.permute.xlu0 %5686
        %5688 = vrot.lane.b32.xlu0 %v1629, 32
        %v5689 = vpop.permute.xlu0 %5688
        %5690 = vrot.lane.b32.xlu0 %v1632, 32
        %v5691 = vpop.permute.xlu0 %5690
        %5692 = vrot.lane.b32.xlu0 %v1635, 32
        %v5693 = vpop.permute.xlu0 %5692
        %5694 = vrot.lane.b32.xlu0 %v1638, 32
        %v5695 = vpop.permute.xlu0 %5694
        %5696 = vrot.lane.b32.xlu0 %v1641, 32
        %v5697 = vpop.permute.xlu0 %5696
        %5698 = vrot.lane.b32.xlu0 %v1644, 32
        %v5699 = vpop.permute.xlu0 %5698
        %5716 = vmatprep.subr.bf16.mxu0 0
        %5717 = vmatpush1.bf16.msra.mxu0 %v5683
        %5718 = vmatprep.subr.bf16.mxu0 0
        %5719 = vmatpush1.bf16.msra.mxu0 %v5681
        %5720 = vmatprep.subr.bf16.mxu0 0
        %5721 = vmatpush1.bf16.msra.mxu0 %v5679
        %5722 = vmatprep.subr.bf16.mxu0 0
        %5723 = vmatpush1.bf16.msra.mxu0 %v5677
        %5724 = vmatprep.subr.bf16.mxu0 0
        %5725 = vmatpush1.bf16.msra.mxu0 %v5675
        %5726 = vmatprep.subr.bf16.mxu0 0
        %5727 = vmatpush1.bf16.msra.mxu0 %v5673
        %5728 = vmatprep.subr.bf16.mxu0 0
        %5729 = vmatpush1.bf16.msra.mxu0 %v5671
        %5730 = vmatprep.subr.bf16.mxu0 0
        %5731 = vmatpush1.bf16.msra.mxu0 %v5669
        %5732 = vmatprep.subr.bf16.mxu0 0
        %5733 = vmatpush2.bf16.msra.mxu0 %v5699
        %5734 = vmatprep.subr.bf16.mxu0 0
        %5735 = vmatpush2.bf16.msra.mxu0 %v5697
        %5736 = vmatprep.subr.bf16.mxu0 0
        %5737 = vmatpush2.bf16.msra.mxu0 %v5695
        %5738 = vmatprep.subr.bf16.mxu0 0
        %5739 = vmatpush2.bf16.msra.mxu0 %v5693
        %5740 = vmatprep.subr.bf16.mxu0 0
        %5741 = vmatpush2.bf16.msra.mxu0 %v5691
        %5742 = vmatprep.subr.bf16.mxu0 0
        %5743 = vmatpush2.bf16.msra.mxu0 %v5689
        %5744 = vmatprep.subr.bf16.mxu0 0
        %5745 = vmatpush2.bf16.msra.mxu0 %v5687
        %5746 = vmatprep.subr.bf16.mxu0 0
        %5747 = vmatpush2.bf16.msra.mxu0 %v5685
        %5748 = vmatprep.mubr.bf16.mxu0 %v5637
        %5749 = vmatmul.mubr.bf16.gmra.mxu0 %v5636
        %v5750 = vpop.f32.mrf.mxu0
        %v5751 = vadd.f32 0.0, %v5750
        %v5752 = vpop.f32.mrf.mxu0
        %v5753 = vpop.f32.mrf.mxu0
        %v5754 = vadd.f32 0.0, %v5753
        %v5755 = vpop.f32.mrf.mxu0
        %5756 = vmatprep.mubr.bf16.mxu0 %v5639
        %5757 = vmatmul.mubr.bf16.gmra.mxu0 %v5638
        %v5758 = vpop.f32.mrf.mxu0
        %v5759 = vadd.f32 0.0, %v5758
        %v5760 = vpop.f32.mrf.mxu0
        %v5761 = vpop.f32.mrf.mxu0
        %v5762 = vadd.f32 0.0, %v5761
        %v5763 = vpop.f32.mrf.mxu0
        %5764 = vmatprep.mubr.bf16.mxu0 %v5641
        %5765 = vmatmul.mubr.bf16.gmra.mxu0 %v5640
        %v5766 = vpop.f32.mrf.mxu0
        %v5767 = vadd.f32 0.0, %v5766
        %v5768 = vpop.f32.mrf.mxu0
        %v5769 = vpop.f32.mrf.mxu0
        %v5770 = vadd.f32 0.0, %v5769
        %v5771 = vpop.f32.mrf.mxu0
        %5772 = vmatprep.mubr.bf16.mxu0 %v5643
        %5773 = vmatmul.mubr.bf16.gmra.mxu0 %v5642
        %v5774 = vpop.f32.mrf.mxu0
        %v5775 = vadd.f32 0.0, %v5774
        %v5776 = vpop.f32.mrf.mxu0
        %v5777 = vpop.f32.mrf.mxu0
        %v5778 = vadd.f32 0.0, %v5777
        %v5779 = vpop.f32.mrf.mxu0
        %5780 = vmatprep.mubr.bf16.mxu0 %v5645
        %5781 = vmatmul.mubr.bf16.gmra.mxu0 %v5644
        %v5782 = vpop.f32.mrf.mxu0
        %v5783 = vadd.f32 0.0, %v5782
        %v5784 = vpop.f32.mrf.mxu0
        %v5785 = vpop.f32.mrf.mxu0
        %v5786 = vadd.f32 0.0, %v5785
        %v5787 = vpop.f32.mrf.mxu0
        %5788 = vmatprep.mubr.bf16.mxu0 %v5647
        %5789 = vmatmul.mubr.bf16.gmra.mxu0 %v5646
        %v5790 = vpop.f32.mrf.mxu0
        %v5791 = vadd.f32 0.0, %v5790
        %v5792 = vpop.f32.mrf.mxu0
        %v5793 = vpop.f32.mrf.mxu0
        %v5794 = vadd.f32 0.0, %v5793
        %v5795 = vpop.f32.mrf.mxu0
        %5796 = vmatprep.mubr.bf16.mxu0 %v5649
        %5797 = vmatmul.mubr.bf16.gmra.mxu0 %v5648
        %v5798 = vpop.f32.mrf.mxu0
        %v5799 = vadd.f32 0.0, %v5798
        %v5800 = vpop.f32.mrf.mxu0
        %v5801 = vpop.f32.mrf.mxu0
        %v5802 = vadd.f32 0.0, %v5801
        %v5803 = vpop.f32.mrf.mxu0
        %5804 = vmatprep.mubr.bf16.mxu0 %v5651
        %5805 = vmatmul.mubr.bf16.gmra.mxu0 %v5650
        %v5806 = vpop.f32.mrf.mxu0
        %v5807 = vadd.f32 0.0, %v5806
        %v5808 = vpop.f32.mrf.mxu0
        %v5809 = vpop.f32.mrf.mxu0
        %v5810 = vadd.f32 0.0, %v5809
        %v5811 = vpop.f32.mrf.mxu0
        %5812 = vmatprep.mubr.bf16.mxu0 %v5653
        %5813 = vmatmul.mubr.bf16.gmra.mxu0 %v5652
        %v5814 = vpop.f32.mrf.mxu0
        %v5815 = vadd.f32 0.0, %v5814
        %v5816 = vpop.f32.mrf.mxu0
        %v5817 = vpop.f32.mrf.mxu0
        %v5818 = vadd.f32 0.0, %v5817
        %v5819 = vpop.f32.mrf.mxu0
        %5820 = vmatprep.mubr.bf16.mxu0 %v5655
        %5821 = vmatmul.mubr.bf16.gmra.mxu0 %v5654
        %v5822 = vpop.f32.mrf.mxu0
        %v5823 = vadd.f32 0.0, %v5822
        %v5824 = vpop.f32.mrf.mxu0
        %v5825 = vpop.f32.mrf.mxu0
        %v5826 = vadd.f32 0.0, %v5825
        %v5827 = vpop.f32.mrf.mxu0
        %5828 = vmatprep.mubr.bf16.mxu0 %v5657
        %5829 = vmatmul.mubr.bf16.gmra.mxu0 %v5656
        %v5830 = vpop.f32.mrf.mxu0
        %v5831 = vadd.f32 0.0, %v5830
        %v5832 = vpop.f32.mrf.mxu0
        %v5833 = vpop.f32.mrf.mxu0
        %v5834 = vadd.f32 0.0, %v5833
        %v5835 = vpop.f32.mrf.mxu0
        %5836 = vmatprep.mubr.bf16.mxu0 %v5659
        %5837 = vmatmul.mubr.bf16.gmra.mxu0 %v5658
        %v5838 = vpop.f32.mrf.mxu0
        %v5839 = vadd.f32 0.0, %v5838
        %v5840 = vpop.f32.mrf.mxu0
        %v5841 = vpop.f32.mrf.mxu0
        %v5842 = vadd.f32 0.0, %v5841
        %v5843 = vpop.f32.mrf.mxu0
        %5844 = vmatprep.mubr.bf16.mxu0 %v5661
        %5845 = vmatmul.mubr.bf16.gmra.mxu0 %v5660
        %v5846 = vpop.f32.mrf.mxu0
        %v5847 = vadd.f32 0.0, %v5846
        %v5848 = vpop.f32.mrf.mxu0
        %v5849 = vpop.f32.mrf.mxu0
        %v5850 = vadd.f32 0.0, %v5849
        %v5851 = vpop.f32.mrf.mxu0
        %5852 = vmatprep.mubr.bf16.mxu0 %v5663
        %5853 = vmatmul.mubr.bf16.gmra.mxu0 %v5662
        %v5854 = vpop.f32.mrf.mxu0
        %v5855 = vadd.f32 0.0, %v5854
        %v5856 = vpop.f32.mrf.mxu0
        %v5857 = vpop.f32.mrf.mxu0
        %v5858 = vadd.f32 0.0, %v5857
        %v5859 = vpop.f32.mrf.mxu0
        %5860 = vmatprep.mubr.bf16.mxu0 %v5665
        %5861 = vmatmul.mubr.bf16.gmra.mxu0 %v5664
        %v5862 = vpop.f32.mrf.mxu0
        %v5863 = vadd.f32 0.0, %v5862
        %v5864 = vpop.f32.mrf.mxu0
        %v5865 = vpop.f32.mrf.mxu0
        %v5866 = vadd.f32 0.0, %v5865
        %v5867 = vpop.f32.mrf.mxu0
        %5868 = vmatprep.mubr.bf16.mxu0 %v5667
        %5869 = vmatmul.mubr.bf16.gmra.mxu0 %v5666
        %v5870 = vpop.f32.mrf.mxu0
        %v5871 = vadd.f32 0.0, %v5870
        %v5872 = vpop.f32.mrf.mxu0
        %v5873 = vpop.f32.mrf.mxu0
        %v5874 = vadd.f32 0.0, %v5873
        %v5875 = vpop.f32.mrf.mxu0
        %5876 = vdwg.mxu0
        %5909 = vrot.lane.b32.xlu0 %v3603, 32
        %v5910 = vpop.permute.xlu0 %5909
        %5911 = vrot.lane.b32.xlu0 %v3606, 32
        %v5912 = vpop.permute.xlu0 %5911
        %5913 = vrot.lane.b32.xlu0 %v3611, 32
        %v5914 = vpop.permute.xlu0 %5913
        %5915 = vrot.lane.b32.xlu0 %v3614, 32
        %v5916 = vpop.permute.xlu0 %5915
        %5917 = vrot.lane.b32.xlu0 %v3619, 32
        %v5918 = vpop.permute.xlu0 %5917
        %5919 = vrot.lane.b32.xlu0 %v3622, 32
        %v5920 = vpop.permute.xlu0 %5919
        %5921 = vrot.lane.b32.xlu0 %v3627, 32
        %v5922 = vpop.permute.xlu0 %5921
        %5923 = vrot.lane.b32.xlu0 %v3630, 32
        %v5924 = vpop.permute.xlu0 %5923
        %5925 = vrot.lane.b32.xlu0 %v3635, 32
        %v5926 = vpop.permute.xlu0 %5925
        %5927 = vrot.lane.b32.xlu0 %v3638, 32
        %v5928 = vpop.permute.xlu0 %5927
        %5929 = vrot.lane.b32.xlu0 %v3643, 32
        %v5930 = vpop.permute.xlu0 %5929
        %5931 = vrot.lane.b32.xlu0 %v3646, 32
        %v5932 = vpop.permute.xlu0 %5931
        %5933 = vrot.lane.b32.xlu0 %v3651, 32
        %v5934 = vpop.permute.xlu0 %5933
        %5935 = vrot.lane.b32.xlu0 %v3654, 32
        %v5936 = vpop.permute.xlu0 %5935
        %5937 = vrot.lane.b32.xlu0 %v3659, 32
        %v5938 = vpop.permute.xlu0 %5937
        %5939 = vrot.lane.b32.xlu0 %v3662, 32
        %v5940 = vpop.permute.xlu0 %5939
        %5941 = vrot.lane.b32.xlu0 %v3667, 32
        %v5942 = vpop.permute.xlu0 %5941
        %5943 = vrot.lane.b32.xlu0 %v3670, 32
        %v5944 = vpop.permute.xlu0 %5943
        %5945 = vrot.lane.b32.xlu0 %v3675, 32
        %v5946 = vpop.permute.xlu0 %5945
        %5947 = vrot.lane.b32.xlu0 %v3678, 32
        %v5948 = vpop.permute.xlu0 %5947
        %5949 = vrot.lane.b32.xlu0 %v3683, 32
        %v5950 = vpop.permute.xlu0 %5949
        %5951 = vrot.lane.b32.xlu0 %v3686, 32
        %v5952 = vpop.permute.xlu0 %5951
        %5953 = vrot.lane.b32.xlu0 %v3691, 32
        %v5954 = vpop.permute.xlu0 %5953
        %5955 = vrot.lane.b32.xlu0 %v3694, 32
        %v5956 = vpop.permute.xlu0 %5955
        %5957 = vrot.lane.b32.xlu0 %v3699, 32
        %v5958 = vpop.permute.xlu0 %5957
        %5959 = vrot.lane.b32.xlu0 %v3702, 32
        %v5960 = vpop.permute.xlu0 %5959
        %5961 = vrot.lane.b32.xlu0 %v3707, 32
        %v5962 = vpop.permute.xlu0 %5961
        %5963 = vrot.lane.b32.xlu0 %v3710, 32
        %v5964 = vpop.permute.xlu0 %5963
        %5965 = vrot.lane.b32.xlu0 %v3715, 32
        %v5966 = vpop.permute.xlu0 %5965
        %5967 = vrot.lane.b32.xlu0 %v3718, 32
        %v5968 = vpop.permute.xlu0 %5967
        %5969 = vrot.lane.b32.xlu0 %v3723, 32
        %v5970 = vpop.permute.xlu0 %5969
        %5971 = vrot.lane.b32.xlu0 %v3726, 32
        %v5972 = vpop.permute.xlu0 %5971
        %6037 = vrot.lane.b32.xlu0 %v4677, 64
        %v6038 = vpop.permute.xlu0 %6037
        %6039 = vrot.lane.b32.xlu0 %v4680, 64
        %v6040 = vpop.permute.xlu0 %6039
        %6041 = vrot.lane.b32.xlu0 %v4685, 64
        %v6042 = vpop.permute.xlu0 %6041
        %6043 = vrot.lane.b32.xlu0 %v4688, 64
        %v6044 = vpop.permute.xlu0 %6043
        %6045 = vrot.lane.b32.xlu0 %v4693, 64
        %v6046 = vpop.permute.xlu0 %6045
        %6047 = vrot.lane.b32.xlu0 %v4696, 64
        %v6048 = vpop.permute.xlu0 %6047
        %6049 = vrot.lane.b32.xlu0 %v4701, 64
        %v6050 = vpop.permute.xlu0 %6049
        %6051 = vrot.lane.b32.xlu0 %v4704, 64
        %v6052 = vpop.permute.xlu0 %6051
        %6053 = vrot.lane.b32.xlu0 %v4709, 64
        %v6054 = vpop.permute.xlu0 %6053
        %6055 = vrot.lane.b32.xlu0 %v4712, 64
        %v6056 = vpop.permute.xlu0 %6055
        %6057 = vrot.lane.b32.xlu0 %v4717, 64
        %v6058 = vpop.permute.xlu0 %6057
        %6059 = vrot.lane.b32.xlu0 %v4720, 64
        %v6060 = vpop.permute.xlu0 %6059
        %6061 = vrot.lane.b32.xlu0 %v4725, 64
        %v6062 = vpop.permute.xlu0 %6061
        %6063 = vrot.lane.b32.xlu0 %v4728, 64
        %v6064 = vpop.permute.xlu0 %6063
        %6065 = vrot.lane.b32.xlu0 %v4733, 64
        %v6066 = vpop.permute.xlu0 %6065
        %6067 = vrot.lane.b32.xlu0 %v4736, 64
        %v6068 = vpop.permute.xlu0 %6067
        %6069 = vrot.lane.b32.xlu0 %v4741, 64
        %v6070 = vpop.permute.xlu0 %6069
        %6071 = vrot.lane.b32.xlu0 %v4744, 64
        %v6072 = vpop.permute.xlu0 %6071
        %6073 = vrot.lane.b32.xlu0 %v4749, 64
        %v6074 = vpop.permute.xlu0 %6073
        %6075 = vrot.lane.b32.xlu0 %v4752, 64
        %v6076 = vpop.permute.xlu0 %6075
        %6077 = vrot.lane.b32.xlu0 %v4757, 64
        %v6078 = vpop.permute.xlu0 %6077
        %6079 = vrot.lane.b32.xlu0 %v4760, 64
        %v6080 = vpop.permute.xlu0 %6079
        %6081 = vrot.lane.b32.xlu0 %v4765, 64
        %v6082 = vpop.permute.xlu0 %6081
        %6083 = vrot.lane.b32.xlu0 %v4768, 64
        %v6084 = vpop.permute.xlu0 %6083
        %6085 = vrot.lane.b32.xlu0 %v4773, 64
        %v6086 = vpop.permute.xlu0 %6085
        %6087 = vrot.lane.b32.xlu0 %v4776, 64
        %v6088 = vpop.permute.xlu0 %6087
        %6089 = vrot.lane.b32.xlu0 %v4781, 64
        %v6090 = vpop.permute.xlu0 %6089
        %6091 = vrot.lane.b32.xlu0 %v4784, 64
        %v6092 = vpop.permute.xlu0 %6091
        %6093 = vrot.lane.b32.xlu0 %v4789, 64
        %v6094 = vpop.permute.xlu0 %6093
        %6095 = vrot.lane.b32.xlu0 %v4792, 64
        %v6096 = vpop.permute.xlu0 %6095
        %6097 = vrot.lane.b32.xlu0 %v4797, 64
        %v6098 = vpop.permute.xlu0 %6097
        %6099 = vrot.lane.b32.xlu0 %v4800, 64
        %v6100 = vpop.permute.xlu0 %6099
        %6165 = vrot.lane.b32.xlu0 %v5751, 96
        %v6166 = vpop.permute.xlu0 %6165
        %6167 = vrot.lane.b32.xlu0 %v5754, 96
        %v6168 = vpop.permute.xlu0 %6167
        %6169 = vrot.lane.b32.xlu0 %v5759, 96
        %v6170 = vpop.permute.xlu0 %6169
        %6171 = vrot.lane.b32.xlu0 %v5762, 96
        %v6172 = vpop.permute.xlu0 %6171
        %6173 = vrot.lane.b32.xlu0 %v5767, 96
        %v6174 = vpop.permute.xlu0 %6173
        %6175 = vrot.lane.b32.xlu0 %v5770, 96
        %v6176 = vpop.permute.xlu0 %6175
        %6177 = vrot.lane.b32.xlu0 %v5775, 96
        %v6178 = vpop.permute.xlu0 %6177
        %6179 = vrot.lane.b32.xlu0 %v5778, 96
        %v6180 = vpop.permute.xlu0 %6179
        %6181 = vrot.lane.b32.xlu0 %v5783, 96
        %v6182 = vpop.permute.xlu0 %6181
        %6183 = vrot.lane.b32.xlu0 %v5786, 96
        %v6184 = vpop.permute.xlu0 %6183
        %6185 = vrot.lane.b32.xlu0 %v5791, 96
        %v6186 = vpop.permute.xlu0 %6185
        %6187 = vrot.lane.b32.xlu0 %v5794, 96
        %v6188 = vpop.permute.xlu0 %6187
        %6189 = vrot.lane.b32.xlu0 %v5799, 96
        %v6190 = vpop.permute.xlu0 %6189
        %6191 = vrot.lane.b32.xlu0 %v5802, 96
        %v6192 = vpop.permute.xlu0 %6191
        %6193 = vrot.lane.b32.xlu0 %v5807, 96
        %v6194 = vpop.permute.xlu0 %6193
        %6195 = vrot.lane.b32.xlu0 %v5810, 96
        %v6196 = vpop.permute.xlu0 %6195
        %6197 = vrot.lane.b32.xlu0 %v5815, 96
        %v6198 = vpop.permute.xlu0 %6197
        %6199 = vrot.lane.b32.xlu0 %v5818, 96
        %v6200 = vpop.permute.xlu0 %6199
        %6201 = vrot.lane.b32.xlu0 %v5823, 96
        %v6202 = vpop.permute.xlu0 %6201
        %6203 = vrot.lane.b32.xlu0 %v5826, 96
        %v6204 = vpop.permute.xlu0 %6203
        %6205 = vrot.lane.b32.xlu0 %v5831, 96
        %v6206 = vpop.permute.xlu0 %6205
        %6207 = vrot.lane.b32.xlu0 %v5834, 96
        %v6208 = vpop.permute.xlu0 %6207
        %6209 = vrot.lane.b32.xlu0 %v5839, 96
        %v6210 = vpop.permute.xlu0 %6209
        %6211 = vrot.lane.b32.xlu0 %v5842, 96
        %v6212 = vpop.permute.xlu0 %6211
        %6213 = vrot.lane.b32.xlu0 %v5847, 96
        %v6214 = vpop.permute.xlu0 %6213
        %6215 = vrot.lane.b32.xlu0 %v5850, 96
        %v6216 = vpop.permute.xlu0 %6215
        %6217 = vrot.lane.b32.xlu0 %v5855, 96
        %v6218 = vpop.permute.xlu0 %6217
        %6219 = vrot.lane.b32.xlu0 %v5858, 96
        %v6220 = vpop.permute.xlu0 %6219
        %6221 = vrot.lane.b32.xlu0 %v5863, 96
        %v6222 = vpop.permute.xlu0 %6221
        %6223 = vrot.lane.b32.xlu0 %v5866, 96
        %v6224 = vpop.permute.xlu0 %6223
        %6225 = vrot.lane.b32.xlu0 %v5871, 96
        %v6226 = vpop.permute.xlu0 %6225
        %6227 = vrot.lane.b32.xlu0 %v5874, 96
        %v6228 = vpop.permute.xlu0 %6227
        %v6261 = vsel %vm497, %v2481, %v5910
        %v6262 = vsel %vm497, %v2484, %v5912
        %v6263 = vsel %vm497, %v2489, %v5914
        %v6264 = vsel %vm497, %v2492, %v5916
        %v6265 = vsel %vm497, %v2497, %v5918
        %v6266 = vsel %vm497, %v2500, %v5920
        %v6267 = vsel %vm497, %v2505, %v5922
        %v6268 = vsel %vm497, %v2508, %v5924
        %v6269 = vsel %vm497, %v2513, %v5926
        %v6270 = vsel %vm497, %v2516, %v5928
        %v6271 = vsel %vm497, %v2521, %v5930
        %v6272 = vsel %vm497, %v2524, %v5932
        %v6273 = vsel %vm497, %v2529, %v5934
        %v6274 = vsel %vm497, %v2532, %v5936
        %v6275 = vsel %vm497, %v2537, %v5938
        %v6276 = vsel %vm497, %v2540, %v5940
        %v6277 = vsel %vm497, %v2545, %v5942
        %v6278 = vsel %vm497, %v2548, %v5944
        %v6279 = vsel %vm497, %v2553, %v5946
        %v6280 = vsel %vm497, %v2556, %v5948
        %v6281 = vsel %vm497, %v2561, %v5950
        %v6282 = vsel %vm497, %v2564, %v5952
        %v6283 = vsel %vm497, %v2569, %v5954
        %v6284 = vsel %vm497, %v2572, %v5956
        %v6285 = vsel %vm497, %v2577, %v5958
        %v6286 = vsel %vm497, %v2580, %v5960
        %v6287 = vsel %vm497, %v2585, %v5962
        %v6288 = vsel %vm497, %v2588, %v5964
        %v6289 = vsel %vm497, %v2593, %v5966
        %v6290 = vsel %vm497, %v2596, %v5968
        %v6291 = vsel %vm497, %v2601, %v5970
        %v6292 = vsel %vm497, %v2604, %v5972
        %vm6293 = vcmask 523264
        %v6294 = vsel %vm6293, %v6261, %v6038
        %v6295 = vsel %vm6293, %v6262, %v6040
        %v6296 = vsel %vm6293, %v6263, %v6042
        %v6297 = vsel %vm6293, %v6264, %v6044
        %v6298 = vsel %vm6293, %v6265, %v6046
        %v6299 = vsel %vm6293, %v6266, %v6048
        %v6300 = vsel %vm6293, %v6267, %v6050
        %v6301 = vsel %vm6293, %v6268, %v6052
        %v6302 = vsel %vm6293, %v6269, %v6054
        %v6303 = vsel %vm6293, %v6270, %v6056
        %v6304 = vsel %vm6293, %v6271, %v6058
        %v6305 = vsel %vm6293, %v6272, %v6060
        %v6306 = vsel %vm6293, %v6273, %v6062
        %v6307 = vsel %vm6293, %v6274, %v6064
        %v6308 = vsel %vm6293, %v6275, %v6066
        %v6309 = vsel %vm6293, %v6276, %v6068
        %v6310 = vsel %vm6293, %v6277, %v6070
        %v6311 = vsel %vm6293, %v6278, %v6072
        %v6312 = vsel %vm6293, %v6279, %v6074
        %v6313 = vsel %vm6293, %v6280, %v6076
        %v6314 = vsel %vm6293, %v6281, %v6078
        %v6315 = vsel %vm6293, %v6282, %v6080
        %v6316 = vsel %vm6293, %v6283, %v6082
        %v6317 = vsel %vm6293, %v6284, %v6084
        %v6318 = vsel %vm6293, %v6285, %v6086
        %v6319 = vsel %vm6293, %v6286, %v6088
        %v6320 = vsel %vm6293, %v6287, %v6090
        %v6321 = vsel %vm6293, %v6288, %v6092
        %v6322 = vsel %vm6293, %v6289, %v6094
        %v6323 = vsel %vm6293, %v6290, %v6096
        %v6324 = vsel %vm6293, %v6291, %v6098
        %v6325 = vsel %vm6293, %v6292, %v6100
        %vm6326 = vcmask 785408
        %v6327 = vsel %vm6326, %v6294, %v6166
        %v6328 = vsel %vm6326, %v6295, %v6168
        %v6329 = vsel %vm6326, %v6296, %v6170
        %v6330 = vsel %vm6326, %v6297, %v6172
        %v6331 = vsel %vm6326, %v6298, %v6174
        %v6332 = vsel %vm6326, %v6299, %v6176
        %v6333 = vsel %vm6326, %v6300, %v6178
        %v6334 = vsel %vm6326, %v6301, %v6180
        %v6335 = vsel %vm6326, %v6302, %v6182
        %v6336 = vsel %vm6326, %v6303, %v6184
        %v6337 = vsel %vm6326, %v6304, %v6186
        %v6338 = vsel %vm6326, %v6305, %v6188
        %v6339 = vsel %vm6326, %v6306, %v6190
        %v6340 = vsel %vm6326, %v6307, %v6192
        %v6341 = vsel %vm6326, %v6308, %v6194
        %v6342 = vsel %vm6326, %v6309, %v6196
        %v6343 = vsel %vm6326, %v6310, %v6198
        %v6344 = vsel %vm6326, %v6311, %v6200
        %v6345 = vsel %vm6326, %v6312, %v6202
        %v6346 = vsel %vm6326, %v6313, %v6204
        %v6347 = vsel %vm6326, %v6314, %v6206
        %v6348 = vsel %vm6326, %v6315, %v6208
        %v6349 = vsel %vm6326, %v6316, %v6210
        %v6350 = vsel %vm6326, %v6317, %v6212
        %v6351 = vsel %vm6326, %v6318, %v6214
        %v6352 = vsel %vm6326, %v6319, %v6216
        %v6353 = vsel %vm6326, %v6320, %v6218
        %v6354 = vsel %vm6326, %v6321, %v6220
        %v6355 = vsel %vm6326, %v6322, %v6222
        %v6356 = vsel %vm6326, %v6323, %v6224
        %v6357 = vsel %vm6326, %v6324, %v6226
        %v6358 = vsel %vm6326, %v6325, %v6228
        %v6359 = vpack.c.bf16 %v6328, %v6327
        %v6360 = vpack.c.bf16 %v6330, %v6329
        %v6361 = vpack.c.bf16 %v6332, %v6331
        %v6362 = vpack.c.bf16 %v6334, %v6333
        %v6363 = vpack.c.bf16 %v6336, %v6335
        %v6364 = vpack.c.bf16 %v6338, %v6337
        %v6365 = vpack.c.bf16 %v6340, %v6339
        %v6366 = vpack.c.bf16 %v6342, %v6341
        %v6367 = vpack.c.bf16 %v6344, %v6343
        %v6368 = vpack.c.bf16 %v6346, %v6345
        %v6369 = vpack.c.bf16 %v6348, %v6347
        %v6370 = vpack.c.bf16 %v6350, %v6349
        %v6371 = vpack.c.bf16 %v6352, %v6351
        %v6372 = vpack.c.bf16 %v6354, %v6353
        %v6373 = vpack.c.bf16 %v6356, %v6355
        %v6374 = vpack.c.bf16 %v6358, %v6357
        %v6375 = vld [vmem:[#allocation11] sm:$0xf]
        %v6376 = vld [vmem:[#allocation11 + $0x4] sm:$0xf]
        %v6377 = vld [vmem:[#allocation11 + $0x8] sm:$0xf]
        %v6378 = vld [vmem:[#allocation11 + $0xc] sm:$0xf]
        %v6379 = vld [vmem:[#allocation11 + $0x10] sm:$0xf]
        %v6380 = vld [vmem:[#allocation11 + $0x14] sm:$0xf]
        %v6381 = vld [vmem:[#allocation11 + $0x18] sm:$0xf]
        %v6382 = vld [vmem:[#allocation11 + $0x1c] sm:$0xf]
        %v6383 = vld [vmem:[#allocation11 + $0x20] sm:$0xf]
        %v6384 = vld [vmem:[#allocation11 + $0x24] sm:$0xf]
        %v6385 = vld [vmem:[#allocation11 + $0x28] sm:$0xf]
        %v6386 = vld [vmem:[#allocation11 + $0x2c] sm:$0xf]
        %v6387 = vld [vmem:[#allocation11 + $0x30] sm:$0xf]
        %v6388 = vld [vmem:[#allocation11 + $0x34] sm:$0xf]
        %v6389 = vld [vmem:[#allocation11 + $0x38] sm:$0xf]
        %v6390 = vld [vmem:[#allocation11 + $0x3c] sm:$0xf]
        %v6407 = vunpack.c.l.b16 %v6375
        %v6408 = vunpack.c.l.b16 %v6376
        %v6409 = vunpack.c.l.b16 %v6377
        %v6410 = vunpack.c.l.b16 %v6378
        %v6411 = vunpack.c.l.b16 %v6379
        %v6412 = vunpack.c.l.b16 %v6380
        %v6413 = vunpack.c.l.b16 %v6381
        %v6414 = vunpack.c.l.b16 %v6382
        %v6415 = vunpack.c.l.b16 %v6383
        %v6416 = vunpack.c.l.b16 %v6384
        %v6417 = vunpack.c.l.b16 %v6385
        %v6418 = vunpack.c.l.b16 %v6386
        %v6419 = vunpack.c.l.b16 %v6387
        %v6420 = vunpack.c.l.b16 %v6388
        %v6421 = vunpack.c.l.b16 %v6389
        %v6422 = vunpack.c.l.b16 %v6390
        %v6423 = vpack.c.b16 %v6408, %v6407
        %v6424 = vpack.c.b16 %v6410, %v6409
        %v6425 = vpack.c.b16 %v6412, %v6411
        %v6426 = vpack.c.b16 %v6414, %v6413
        %v6427 = vpack.c.b16 %v6416, %v6415
        %v6428 = vpack.c.b16 %v6418, %v6417
        %v6429 = vpack.c.b16 %v6420, %v6419
        %v6430 = vpack.c.b16 %v6422, %v6421
        %6439 = vmatprep.subr.bf16.mxu0 0
        %6440 = vmatpush1.bf16.msra.mxu0 %v6430
        %6441 = vmatprep.subr.bf16.mxu0 0
        %6442 = vmatpush1.bf16.msra.mxu0 %v6429
        %6443 = vmatprep.subr.bf16.mxu0 0
        %6444 = vmatpush1.bf16.msra.mxu0 %v6428
        %6445 = vmatprep.subr.bf16.mxu0 0
        %6446 = vmatpush1.bf16.msra.mxu0 %v6427
        %6447 = vmatprep.subr.bf16.mxu0 0
        %6448 = vmatpush1.bf16.msra.mxu0 %v6426
        %6449 = vmatprep.subr.bf16.mxu0 0
        %6450 = vmatpush1.bf16.msra.mxu0 %v6425
        %6451 = vmatprep.subr.bf16.mxu0 0
        %6452 = vmatpush1.bf16.msra.mxu0 %v6424
        %6453 = vmatprep.subr.bf16.mxu0 0
        %6454 = vmatpush1.bf16.msra.mxu0 %v6423
        %6455 = vmatprep.subr.bf16.mxu0 0
        %6456 = vmatpush2.bf16.msra.mxu0 0
        %6457 = vmatprep.subr.bf16.mxu0 0
        %6458 = vmatpush2.bf16.msra.mxu0 0
        %6459 = vmatprep.subr.bf16.mxu0 0
        %6460 = vmatpush2.bf16.msra.mxu0 0
        %6461 = vmatprep.subr.bf16.mxu0 0
        %6462 = vmatpush2.bf16.msra.mxu0 0
        %6463 = vmatprep.subr.bf16.mxu0 0
        %6464 = vmatpush2.bf16.msra.mxu0 0
        %6465 = vmatprep.subr.bf16.mxu0 0
        %6466 = vmatpush2.bf16.msra.mxu0 0
        %6467 = vmatprep.subr.bf16.mxu0 0
        %6468 = vmatpush2.bf16.msra.mxu0 0
        %6469 = vmatprep.subr.bf16.mxu0 0
        %6470 = vmatpush2.bf16.msra.mxu0 0
        %6471 = vmatprep.mubr.bf16.mxu0 0
        %6472 = vmatmul.mubr.bf16.gmra.mxu0 %v6359
        %v6473 = vpop.f32.mrf.mxu0
        %v6474 = vadd.f32 0.0, %v6473
        %v6475 = vpop.f32.mrf.mxu0
        %v6476 = vpop.f32.mrf.mxu0
        %v6477 = vadd.f32 0.0, %v6476
        %v6478 = vpop.f32.mrf.mxu0
        %6479 = vmatprep.mubr.bf16.mxu0 0
        %6480 = vmatmul.mubr.bf16.gmra.mxu0 %v6360
        %v6481 = vpop.f32.mrf.mxu0
        %v6482 = vadd.f32 0.0, %v6481
        %v6483 = vpop.f32.mrf.mxu0
        %v6484 = vpop.f32.mrf.mxu0
        %v6485 = vadd.f32 0.0, %v6484
        %v6486 = vpop.f32.mrf.mxu0
        %6487 = vmatprep.mubr.bf16.mxu0 0
        %6488 = vmatmul.mubr.bf16.gmra.mxu0 %v6361
        %v6489 = vpop.f32.mrf.mxu0
        %v6490 = vadd.f32 0.0, %v6489
        %v6491 = vpop.f32.mrf.mxu0
        %v6492 = vpop.f32.mrf.mxu0
        %v6493 = vadd.f32 0.0, %v6492
        %v6494 = vpop.f32.mrf.mxu0
        %6495 = vmatprep.mubr.bf16.mxu0 0
        %6496 = vmatmul.mubr.bf16.gmra.mxu0 %v6362
        %v6497 = vpop.f32.mrf.mxu0
        %v6498 = vadd.f32 0.0, %v6497
        %v6499 = vpop.f32.mrf.mxu0
        %v6500 = vpop.f32.mrf.mxu0
        %v6501 = vadd.f32 0.0, %v6500
        %v6502 = vpop.f32.mrf.mxu0
        %6503 = vmatprep.mubr.bf16.mxu0 0
        %6504 = vmatmul.mubr.bf16.gmra.mxu0 %v6363
        %v6505 = vpop.f32.mrf.mxu0
        %v6506 = vadd.f32 0.0, %v6505
        %v6507 = vpop.f32.mrf.mxu0
        %v6508 = vpop.f32.mrf.mxu0
        %v6509 = vadd.f32 0.0, %v6508
        %v6510 = vpop.f32.mrf.mxu0
        %6511 = vmatprep.mubr.bf16.mxu0 0
        %6512 = vmatmul.mubr.bf16.gmra.mxu0 %v6364
        %v6513 = vpop.f32.mrf.mxu0
        %v6514 = vadd.f32 0.0, %v6513
        %v6515 = vpop.f32.mrf.mxu0
        %v6516 = vpop.f32.mrf.mxu0
        %v6517 = vadd.f32 0.0, %v6516
        %v6518 = vpop.f32.mrf.mxu0
        %6519 = vmatprep.mubr.bf16.mxu0 0
        %6520 = vmatmul.mubr.bf16.gmra.mxu0 %v6365
        %v6521 = vpop.f32.mrf.mxu0
        %v6522 = vadd.f32 0.0, %v6521
        %v6523 = vpop.f32.mrf.mxu0
        %v6524 = vpop.f32.mrf.mxu0
        %v6525 = vadd.f32 0.0, %v6524
        %v6526 = vpop.f32.mrf.mxu0
        %6527 = vmatprep.mubr.bf16.mxu0 0
        %6528 = vmatmul.mubr.bf16.gmra.mxu0 %v6366
        %v6529 = vpop.f32.mrf.mxu0
        %v6530 = vadd.f32 0.0, %v6529
        %v6531 = vpop.f32.mrf.mxu0
        %v6532 = vpop.f32.mrf.mxu0
        %v6533 = vadd.f32 0.0, %v6532
        %v6534 = vpop.f32.mrf.mxu0
        %6535 = vmatprep.mubr.bf16.mxu0 0
        %6536 = vmatmul.mubr.bf16.gmra.mxu0 %v6367
        %v6537 = vpop.f32.mrf.mxu0
        %v6538 = vadd.f32 0.0, %v6537
        %v6539 = vpop.f32.mrf.mxu0
        %v6540 = vpop.f32.mrf.mxu0
        %v6541 = vadd.f32 0.0, %v6540
        %v6542 = vpop.f32.mrf.mxu0
        %6543 = vmatprep.mubr.bf16.mxu0 0
        %6544 = vmatmul.mubr.bf16.gmra.mxu0 %v6368
        %v6545 = vpop.f32.mrf.mxu0
        %v6546 = vadd.f32 0.0, %v6545
        %v6547 = vpop.f32.mrf.mxu0
        %v6548 = vpop.f32.mrf.mxu0
        %v6549 = vadd.f32 0.0, %v6548
        %v6550 = vpop.f32.mrf.mxu0
        %6551 = vmatprep.mubr.bf16.mxu0 0
        %6552 = vmatmul.mubr.bf16.gmra.mxu0 %v6369
        %v6553 = vpop.f32.mrf.mxu0
        %v6554 = vadd.f32 0.0, %v6553
        %v6555 = vpop.f32.mrf.mxu0
        %v6556 = vpop.f32.mrf.mxu0
        %v6557 = vadd.f32 0.0, %v6556
        %v6558 = vpop.f32.mrf.mxu0
        %6559 = vmatprep.mubr.bf16.mxu0 0
        %6560 = vmatmul.mubr.bf16.gmra.mxu0 %v6370
        %v6561 = vpop.f32.mrf.mxu0
        %v6562 = vadd.f32 0.0, %v6561
        %v6563 = vpop.f32.mrf.mxu0
        %v6564 = vpop.f32.mrf.mxu0
        %v6565 = vadd.f32 0.0, %v6564
        %v6566 = vpop.f32.mrf.mxu0
        %6567 = vmatprep.mubr.bf16.mxu0 0
        %6568 = vmatmul.mubr.bf16.gmra.mxu0 %v6371
        %v6569 = vpop.f32.mrf.mxu0
        %v6570 = vadd.f32 0.0, %v6569
        %v6571 = vpop.f32.mrf.mxu0
        %v6572 = vpop.f32.mrf.mxu0
        %v6573 = vadd.f32 0.0, %v6572
        %v6574 = vpop.f32.mrf.mxu0
        %6575 = vmatprep.mubr.bf16.mxu0 0
        %6576 = vmatmul.mubr.bf16.gmra.mxu0 %v6372
        %v6577 = vpop.f32.mrf.mxu0
        %v6578 = vadd.f32 0.0, %v6577
        %v6579 = vpop.f32.mrf.mxu0
        %v6580 = vpop.f32.mrf.mxu0
        %v6581 = vadd.f32 0.0, %v6580
        %v6582 = vpop.f32.mrf.mxu0
        %6583 = vmatprep.mubr.bf16.mxu0 0
        %6584 = vmatmul.mubr.bf16.gmra.mxu0 %v6373
        %v6585 = vpop.f32.mrf.mxu0
        %v6586 = vadd.f32 0.0, %v6585
        %v6587 = vpop.f32.mrf.mxu0
        %v6588 = vpop.f32.mrf.mxu0
        %v6589 = vadd.f32 0.0, %v6588
        %v6590 = vpop.f32.mrf.mxu0
        %6591 = vmatprep.mubr.bf16.mxu0 0
        %6592 = vmatmul.mubr.bf16.gmra.mxu0 %v6374
        %v6593 = vpop.f32.mrf.mxu0
        %v6594 = vadd.f32 0.0, %v6593
        %v6595 = vpop.f32.mrf.mxu0
        %v6596 = vpop.f32.mrf.mxu0
        %v6597 = vadd.f32 0.0, %v6596
        %v6598 = vpop.f32.mrf.mxu0
        %6599 = vdwg.mxu0
        %v6600 = vadd.f32 %v444, %v6474
        %v6601 = vadd.f32 %v445, %v6477
        %v6602 = vadd.f32 %v446, %v6482
        %v6603 = vadd.f32 %v447, %v6485
        %v6604 = vadd.f32 %v448, %v6490
        %v6605 = vadd.f32 %v449, %v6493
        %v6606 = vadd.f32 %v450, %v6498
        %v6607 = vadd.f32 %v451, %v6501
        %v6608 = vadd.f32 %v452, %v6506
        %v6609 = vadd.f32 %v453, %v6509
        %v6610 = vadd.f32 %v454, %v6514
        %v6611 = vadd.f32 %v455, %v6517
        %v6612 = vadd.f32 %v456, %v6522
        %v6613 = vadd.f32 %v457, %v6525
        %v6614 = vadd.f32 %v458, %v6530
        %v6615 = vadd.f32 %v459, %v6533
        %v6616 = vadd.f32 %v460, %v6538
        %v6617 = vadd.f32 %v461, %v6541
        %v6618 = vadd.f32 %v462, %v6546
        %v6619 = vadd.f32 %v463, %v6549
        %v6620 = vadd.f32 %v464, %v6554
        %v6621 = vadd.f32 %v465, %v6557
        %v6622 = vadd.f32 %v466, %v6562
        %v6623 = vadd.f32 %v467, %v6565
        %v6624 = vadd.f32 %v468, %v6570
        %v6625 = vadd.f32 %v469, %v6573
        %v6626 = vadd.f32 %v470, %v6578
        %v6627 = vadd.f32 %v471, %v6581
        %v6628 = vadd.f32 %v472, %v6586
        %v6629 = vadd.f32 %v473, %v6589
        %v6630 = vadd.f32 %v474, %v6594
        %v6631 = vadd.f32 %v475, %v6597
        %v6632 = vld [vmem:[%s8] sm:$0x1]
        %v6634 = vlaneseq
        %v6635 = vshrl.u32 %v6634, 7
        %v6636 = vsub.s32 0, %v6635
        %v6637 = vrot.slane %v6632, %v6636
        %v6639 = vadd.f32 %v6600, %v6637
        %v6640 = vadd.f32 %v6601, %v6637
        %v6641 = vadd.f32 %v6602, %v6637
        %v6642 = vadd.f32 %v6603, %v6637
        %v6643 = vadd.f32 %v6604, %v6637
        %v6644 = vadd.f32 %v6605, %v6637
        %v6645 = vadd.f32 %v6606, %v6637
        %v6646 = vadd.f32 %v6607, %v6637
        %v6647 = vadd.f32 %v6608, %v6637
        %v6648 = vadd.f32 %v6609, %v6637
        %v6649 = vadd.f32 %v6610, %v6637
        %v6650 = vadd.f32 %v6611, %v6637
        %v6651 = vadd.f32 %v6612, %v6637
        %v6652 = vadd.f32 %v6613, %v6637
        %v6653 = vadd.f32 %v6614, %v6637
        %v6654 = vadd.f32 %v6615, %v6637
        %v6655 = vadd.f32 %v6616, %v6637
        %v6656 = vadd.f32 %v6617, %v6637
        %v6657 = vadd.f32 %v6618, %v6637
        %v6658 = vadd.f32 %v6619, %v6637
        %v6659 = vadd.f32 %v6620, %v6637
        %v6660 = vadd.f32 %v6621, %v6637
        %v6661 = vadd.f32 %v6622, %v6637
        %v6662 = vadd.f32 %v6623, %v6637
        %v6663 = vadd.f32 %v6624, %v6637
        %v6664 = vadd.f32 %v6625, %v6637
        %v6665 = vadd.f32 %v6626, %v6637
        %v6666 = vadd.f32 %v6627, %v6637
        %v6667 = vadd.f32 %v6628, %v6637
        %v6668 = vadd.f32 %v6629, %v6637
        %v6669 = vadd.f32 %v6630, %v6637
        %v6670 = vadd.f32 %v6631, %v6637
        %6671 = vst [vmem:[%s442] sm:$0xff] %v6639
        %6672 = vst [vmem:[%s442 + $0x8] sm:$0xff] %v6640
        %6673 = vst [vmem:[%s442 + $0x10] sm:$0xff] %v6641
        %6674 = vst [vmem:[%s442 + $0x18] sm:$0xff] %v6642
        %6675 = vst [vmem:[%s442 + $0x20] sm:$0xff] %v6643
        %6676 = vst [vmem:[%s442 + $0x28] sm:$0xff] %v6644
        %6677 = vst [vmem:[%s442 + $0x30] sm:$0xff] %v6645
        %6678 = vst [vmem:[%s442 + $0x38] sm:$0xff] %v6646
        %6679 = vst [vmem:[%s442 + $0x40] sm:$0xff] %v6647
        %6680 = vst [vmem:[%s442 + $0x48] sm:$0xff] %v6648
        %6681 = vst [vmem:[%s442 + $0x50] sm:$0xff] %v6649
        %6682 = vst [vmem:[%s442 + $0x58] sm:$0xff] %v6650
        %6683 = vst [vmem:[%s442 + $0x60] sm:$0xff] %v6651
        %6684 = vst [vmem:[%s442 + $0x68] sm:$0xff] %v6652
        %6685 = vst [vmem:[%s442 + $0x70] sm:$0xff] %v6653
        %6686 = vst [vmem:[%s442 + $0x78] sm:$0xff] %v6654
        %6687 = vst [vmem:[%s442 + $0x80] sm:$0xff] %v6655
        %6688 = vst [vmem:[%s442 + $0x88] sm:$0xff] %v6656
        %6689 = vst [vmem:[%s442 + $0x90] sm:$0xff] %v6657
        %6690 = vst [vmem:[%s442 + $0x98] sm:$0xff] %v6658
        %6691 = vst [vmem:[%s442 + $0xa0] sm:$0xff] %v6659
        %6692 = vst [vmem:[%s442 + $0xa8] sm:$0xff] %v6660
        %6693 = vst [vmem:[%s442 + $0xb0] sm:$0xff] %v6661
        %6694 = vst [vmem:[%s442 + $0xb8] sm:$0xff] %v6662
        %6695 = vst [vmem:[%s442 + $0xc0] sm:$0xff] %v6663
        %6696 = vst [vmem:[%s442 + $0xc8] sm:$0xff] %v6664
        %6697 = vst [vmem:[%s442 + $0xd0] sm:$0xff] %v6665
        %6698 = vst [vmem:[%s442 + $0xd8] sm:$0xff] %v6666
        %6699 = vst [vmem:[%s442 + $0xe0] sm:$0xff] %v6667
        %6700 = vst [vmem:[%s442 + $0xe8] sm:$0xff] %v6668
        %6701 = vst [vmem:[%s442 + $0xf0] sm:$0xff] %v6669
        %6702 = vst [vmem:[%s442 + $0xf8] sm:$0xff] %v6670
        %s6703 = sand.u32 %s238, 1
        %s6704 = scalar_lea.sflag [#allocation4], %s6703
        %s6705 = sand.u32 %s238, 1
        %s6706 = smul.addr %s6705, 256
        %s6707 = scalar_lea.vmem [#allocation13], %s6706
        // Predicated region
        $region81: #{tpu_custom_call.1} parent=55 // pred_check
          %p6708 = pneg %p248
        $region82: #{tpu_custom_call.1} parent=55 // pred_check_branch
          %6710 = sbr.rel (%p6708) target = $region84
        $region83: #{tpu_custom_call.1} parent=55 // pred_region
          %s6712 = ssub.s32 4096, 4096
          %6713 = vsyncadd %s6704, %s6712
          %s6714 = smul.addr %s31, 32
          %s6715 = smul.addr %s6714, 128
          %s6716 = scalar_lea.hbm %s9, %s6715
          %s6717 = sshll.u32 %s6707, 4
          %s6718 = int_to_ptr.vmem [resolvable:$true] %s6717
          %6723 = dma.vmem_to_hbm [thread:$0]  %s6718, 4096, %s6716, %s6704, 128, 128, 8
        $region84: #{tpu_custom_call.1} parent=55 // pred_fallthru
          _
      $region56: #{tpu_custom_call.1} parent=5 // pred_fallthru
        _
      %p6724 = scmp.le.s32.totalorder 2, %s26
      // Predicated region
      $region85: #{tpu_custom_call.1} parent=5 // pred_check
        %p6725 = pneg %p6724
      $region86: #{tpu_custom_call.1} parent=5 // pred_check_branch
        %6727 = sbr.rel (%p6725) target = $region88
      $region87: #{tpu_custom_call.1} parent=5 // pred_region
        %s6728 = ssub.s32 %s26, 2
        // Predicated region
        $region89: #{tpu_custom_call.1} parent=87 // pred_check
          %p6729 = pneg %p254
        $region90: #{tpu_custom_call.1} parent=87 // pred_check_branch
          %6731 = sbr.rel (%p6729) target = $region92
        $region91: #{tpu_custom_call.1} parent=87 // pred_region
          %s6732 = sand.u32 %s239, 1
          %s6733 = scalar_lea.sflag [#allocation4], %s6732
          %s6734 = sand.u32 %s239, 1
          %s6735 = smul.addr %s6734, 256
          %s6736 = scalar_lea.vmem [#allocation13], %s6735
          %6737 = dma.done %s6733, 4096
        $region92: #{tpu_custom_call.1} parent=87 // pred_fallthru
          _
      $region88: #{tpu_custom_call.1} parent=5 // pred_fallthru
        _
    $region6: #{tpu_custom_call.1} parent=1 // loop_footer
      %s30 = sadd.s32 1, %s26
    $region7: #{tpu_custom_call.1} parent=1 // loop_footer_branch
      %25 = sbr.rel target = $region3
    $region8: #{tpu_custom_call.1} parent=1 // loop_exit
      _
    %6738 = vsyncpa [#allocation3], 1
    %s6739 = scalar_lea.sflag [#allocation3], 1
    %6740 = vsyncpa %s6739, 1
    %6741 = vsyncpa [#allocation6], 1
    %s6742 = scalar_lea.sflag [#allocation6], 1
    %6743 = vsyncpa %s6742, 1
    %6744 = vsyncpa [#allocation9], 1
    %6745 = vsyncpa [#allocation12], 1
    %6746 = vsyncpa [#allocation4], 1
    %s6747 = scalar_lea.sflag [#allocation4], 1
    %6748 = vsyncpa %s6747, 1

</llo_original>
